<compile_context>
chip_gen: v6e
topology: v6e:2x2x1
jax: 0.10.0
libtpu: 0.0.40
codegen_flags: <defaults>
</compile_context>

<pallas_src>
import functools

import jax
import jax.numpy as jnp
from jax import lax
from jax.experimental import pallas as pl
from jax.experimental.pallas import tpu as pltpu

F32 = jnp.float32
BF16 = jnp.bfloat16


# ---------------------------------------------------------------------------
# In-kernel math helpers
# ---------------------------------------------------------------------------
def _leaky(x):
    return jnp.where(x > 0, x, 0.01 * x)


def _elu(x):
    return jnp.where(x > 0, x, jnp.exp(jnp.minimum(x, 0.0)) - 1.0)


def _dot_bf(a, b):
    # bf16 MXU operands, f32 accumulation.
    return jnp.dot(a.astype(BF16), b.astype(BF16), preferred_element_type=F32)


def _dot_nt(a, b):
    # a [M,K] x b [N,K] -> [M,N] (rhs used transposed via dot_general dims).
    return lax.dot_general(a, b, (((1,), (1,)), ((), ())),
                           preferred_element_type=F32)


def _edge_softmax(logits, mask):
    # Softmax over the src axis restricted to mask>0.  Zero-in-degree rows get
    # an all-zero attention row (DGL edge_softmax + sum-aggregation semantics).
    neg = jnp.full_like(logits, -1e30)
    ml = jnp.where(mask > 0, logits, neg)
    mx = jnp.max(ml, axis=-1, keepdims=True)
    e = jnp.exp(ml - mx) * mask
    den = jnp.sum(e, axis=-1, keepdims=True)
    return e / jnp.maximum(den, 1e-30)


def _gru(x, h, wih, whh, bih, bhh, hid):
    # PyTorch nn.GRUCell, gate order (r, z, n); fused 3-gate matmuls (bf16 MXU,
    # f32 accumulation); hidden state / gates stay f32.
    gi = _dot_bf(x, wih) + bih
    gh = _dot_bf(h, whh) + bhh
    r = jax.nn.sigmoid(gi[:, :hid] + gh[:, :hid])
    z = jax.nn.sigmoid(gi[:, hid:2 * hid] + gh[:, hid:2 * hid])
    n = jnp.tanh(gi[:, 2 * hid:] + r * gh[:, 2 * hid:])
    return (1.0 - z) * n + z * h


# ---------------------------------------------------------------------------
# BlockSpec helpers
# ---------------------------------------------------------------------------
def _full_spec(arr):
    """Whole array in VMEM, DMA'd once (constant block index)."""
    zeros = (0,) * arr.ndim
    return pl.BlockSpec(arr.shape, lambda *_: zeros)


def _stacked_spec(arr):
    """Per-layer [L, ...] weight: block index follows the layer grid axis."""
    trailing = arr.shape[1:]
    zeros = (0,) * (arr.ndim - 1)
    return pl.BlockSpec((1,) + trailing, lambda l, d: (l,) + zeros)


def _vmem_limit_bytes():
    try:
        cap = int(pltpu.get_tpu_info().vmem_capacity_bytes)
        if cap > 0:
            # ~75% of physical VMEM, leave headroom for double buffers.
            return min(int(cap * 0.75), 112 * 1024 * 1024)
    except Exception:
        pass
    return 48 * 1024 * 1024   # safe on every generation (incl. v7x 64 MiB)


def _choose_tile_d(n, g, fe, vmem_budget):
    """Largest dst-tile (multiple of 8, dividing N) whose working set fits."""
    best = 8
    cand = 8
    while cand <= n:
        if n % cand == 0:
            he1 = cand * n * g * 4                       # f32 he1 tile
            ef = cand * n * max(fe, 128) * 2 * 2          # bf16, lane-padded, 2x buffered
            adj = cand * n * 4 * 2
            if he1 + ef + adj < 0.5 * vmem_budget:
                best = cand
        cand += 8
    return best


# ---------------------------------------------------------------------------
# Kernel 1: GetContext, gridded over dst tiles ("parallel" axis)
# ---------------------------------------------------------------------------
def _get_context_kernel(hv_full_ref, hv_dst_ref, ef_ref, adj_ref,
                        pn_w, pn_b, pe1_wn, pe1_we, pe1_b,
                        pe2_wd, pe2_we, et_w, et_b,
                        wih, whh, bih, bhh,
                        pe2_b_s,                      # SMEM scalar
                        out_ref, *, n, tile_d, g):
    hv = hv_full_ref[...]                                   # [N, F]   (sources)
    hvd = hv_dst_ref[...]                                   # [T, F]   (this tile's dsts)
    adj = adj_ref[...]                                      # [T, N]
    ef = ef_ref[...]                                        # [T*N, Fe] (bf16)

    # project_node: hv_new = leaky_relu(hv @ W + b)         (dst rows only)
    hv_new = _leaky(_dot_bf(hvd, pn_w[...]) + pn_b[...])    # [T, G]

    # project_edge1 (split weights): he1[d,s] = leaky(hv[s]@Wn + ef[d,s]@We + b)
    hn_src = _dot_bf(hv, pe1_wn[...])                       # [N, G]
    he_edge = _dot_bf(ef, pe1_we[...]).reshape(tile_d, n, g)
    he1 = _leaky(hn_src[None, :, :] + he_edge + pe1_b[...][None, :, :])  # [T,N,G]

    # project_edge2 (split weights) -> [T, N] logits (both he1 reductions are
    # done back-to-back on the VMEM-resident he1 tile).
    t_dst = jnp.sum(hv_new * pe2_wd[...], axis=-1, keepdims=True)        # [T, 1]
    t_edge = jnp.sum(he1 * pe2_we[...][None, :, :], axis=-1)             # [T, N]
    logits = _leaky(t_dst + t_edge + pe2_b_s[0, 0])

    a = _edge_softmax(logits, adj)                                       # [T, N]

    # AttentiveGRU1: context = elu(sum_s a * edge_transform(he1))
    #              = elu((sum_s a*he1) @ et_w + (sum_s a) * et_b)   (linearity)
    agg = jnp.sum(a[:, :, None] * he1, axis=1)                           # [T, G]
    rowsum = jnp.sum(a, axis=-1, keepdims=True)                          # [T, 1]
    context = _elu(_dot_bf(agg, et_w[...]) + rowsum * et_b[...])

    hy = _gru(context, hv_new, wih[...], whh[...], bih[...], bhh[...], g)
    out_ref[...] = jnp.maximum(hy, 0.0)


def get_context(node_feats, ef_flat, adj, p, g, tile_d, vmem_limit):
    n, f = node_feats.shape
    fe = ef_flat.shape[-1]
    d_tiles = n // tile_d

    weights = [p["pn_w"], p["pn_b"], p["pe1_wn"], p["pe1_we"], p["pe1_b"],
               p["pe2_wd"], p["pe2_we"], p["et_w"], p["et_b"],
               p["gru_wih"], p["gru_whh"], p["gru_bih"], p["gru_bhh"]]
    args = [node_feats, node_feats, ef_flat, adj] + weights + [p["pe2_b"]]

    in_specs = ([pl.BlockSpec((n, f), lambda d: (0, 0)),            # hv (all src)
                 pl.BlockSpec((tile_d, f), lambda d: (d, 0)),       # hv (dst tile)
                 pl.BlockSpec((tile_d * n, fe), lambda d: (d, 0)),  # edge feats
                 pl.BlockSpec((tile_d, n), lambda d: (d, 0))]       # adjacency
                + [_full_spec(wt) for wt in weights]
                + [pl.BlockSpec(memory_space=pltpu.MemorySpace.SMEM)])

    kernel = functools.partial(_get_context_kernel, n=n, tile_d=tile_d, g=g)
    return pl.pallas_call(
        kernel,
        grid=(d_tiles,),
        out_shape=jax.ShapeDtypeStruct((n, g), F32),
        in_specs=in_specs,
        out_specs=pl.BlockSpec((tile_d, g), lambda d: (d, 0)),
        compiler_params=pltpu.CompilerParams(
            dimension_semantics=("parallel",),
            vmem_limit_bytes=vmem_limit),
    )(*args)


# ---------------------------------------------------------------------------
# Kernel 2: all GNN layers fused, grid = (layers, dst tiles)
# ---------------------------------------------------------------------------
def _gnn_stack_kernel(node_in_ref, adj_ref,
                      pe_wd, pe_ws, pn_w, pn_b,
                      wih, whh, bih, bhh,
                      pe_b_s,                         # SMEM [L, 1]
                      out_ref, node_cur, hvp, *, tile_d, g):
    l = pl.program_id(0)
    d = pl.program_id(1)
    n_l = pl.num_programs(0)
    n_d = pl.num_programs(1)

    @pl.when((l == 0) & (d == 0))
    def _init():                                      # load node state once
        node_cur[...] = node_in_ref[...]

    @pl.when(d == 0)
    def _per_layer():                                 # project_node once/layer
        hvp[...] = _dot_bf(node_cur[...], pn_w[0]) + pn_b[0]        # [N, G]

    doff = pl.multiple_of(d * tile_d, tile_d)
    node = node_cur[...]                                            # [N, G]
    node_d = node_cur[pl.ds(doff, tile_d), :]                       # [T, G]
    adj = adj_ref[...]                                              # [T, N]

    # project_edge (split weights): logits[d,s] = leaky(n[d]@Wd + n[s]@Ws + b)
    td = jnp.sum(node_d * pe_wd[0], axis=-1, keepdims=True)         # [T, 1]
    ts = _dot_nt(pe_ws[0], node)                                    # [1, N]
    logits = _leaky(td + ts + pe_b_s[l, 0])                         # [T, N]

    a = _edge_softmax(logits, adj)
    context = _elu(_dot_bf(a, hvp[...]))                            # MXU agg
    hy = _gru(context, node_d, wih[0], whh[0], bih[0], bhh[0], g)
    out_ref[pl.ds(doff, tile_d), :] = jnp.maximum(hy, 0.0)

    @pl.when((d == n_d - 1) & (l < n_l - 1))
    def _advance():                                   # publish layer l -> l+1
        node_cur[...] = out_ref[...]


def gnn_stack(node, adj, sp, g, tile_d, vmem_limit):
    n = node.shape[0]
    d_tiles = n // tile_d
    n_layers = sp["pn_w"].shape[0]

    stacked = [sp["pe_wd"], sp["pe_ws"], sp["pn_w"], sp["pn_b"],
               sp["gru_wih"], sp["gru_whh"], sp["gru_bih"], sp["gru_bhh"]]
    args = [node, adj] + stacked + [sp["pe_b"]]

    in_specs = ([pl.BlockSpec((n, g), lambda l, d: (0, 0)),
                 pl.BlockSpec((tile_d, n), lambda l, d: (d, 0))]
                + [_stacked_spec(wt) for wt in stacked]
                + [pl.BlockSpec(memory_space=pltpu.MemorySpace.SMEM)])

    kernel = functools.partial(_gnn_stack_kernel, tile_d=tile_d, g=g)
    return pl.pallas_call(
        kernel,
        grid=(n_layers, d_tiles),
        out_shape=jax.ShapeDtypeStruct((n, g), F32),
        in_specs=in_specs,
        out_specs=pl.BlockSpec((n, g), lambda l, d: (0, 0)),   # VMEM-resident
        scratch_shapes=[pltpu.VMEM((n, g), F32),               # node state
                        pltpu.VMEM((n, g), F32)],              # node @ pn_w
        compiler_params=pltpu.CompilerParams(
            dimension_semantics=("arbitrary", "arbitrary"),
            vmem_limit_bytes=vmem_limit),
    )(*args)


# ---------------------------------------------------------------------------
# Kernel 3: readout (num_timesteps GlobalPools) + dense head + predictor
# ---------------------------------------------------------------------------
def _readout_dense_kernel(*args, n_timesteps, n_dense, g):
    (node_ref, cl_wg, cl_wn, cl_b_s, pn_w, pn_b,
     wih, whh, bih, bhh) = args[:10]
    dense_refs = args[10:10 + 2 * n_dense]
    pred_w, pred_b, out_ref = args[10 + 2 * n_dense:]

    node = node_ref[...]                                            # [N, G]
    gf = jnp.sum(node, axis=0, keepdims=True)                       # sum_nodes [1,G]

    for t in range(n_timesteps):                                    # static unroll
        # compute_logits (split weights): z[i] = leaky(relu(g)@Wg + node[i]@Wn + b)
        zg = jnp.sum(jnp.maximum(gf, 0.0) * cl_wg[t], axis=-1, keepdims=True)
        zn = _dot_nt(cl_wn[t], node)                                # [1, N]
        z = _leaky(zg + zn + cl_b_s[t, 0])                          # [1, N]
        mx = jnp.max(z, axis=-1, keepdims=True)
        e = jnp.exp(z - mx)
        a = e / jnp.sum(e, axis=-1, keepdims=True)                  # softmax_nodes
        hv_p = _dot_bf(node, pn_w[t]) + pn_b[t]                     # [N, G]
        context = _elu(_dot_bf(a, hv_p))                            # [1, G]
        gf = _gru(context, gf, wih[t], whh[t], bih[t], bhh[t], g)

    # dense head + predictor (dropout = identity)
    x = gf
    for dl in range(n_dense):
        x = jnp.maximum(_dot_bf(x, dense_refs[2 * dl][...])
                        + dense_refs[2 * dl + 1][...], 0.0)
    out_ref[...] = jnp.dot(x, pred_w[...], preferred_element_type=F32) + pred_b[...]


def readout_dense(node, rd, dense, pred_w, pred_b, g, n_timesteps, n_dense,
                  n_tasks, vmem_limit):
    args = [node, rd["cl_wg"], rd["cl_wn"], rd["cl_b"], rd["pn_w"], rd["pn_b"],
            rd["gru_wih"], rd["gru_whh"], rd["gru_bih"], rd["gru_bhh"]]
    for dl in dense:
        args += [dl["w"], dl["b"]]
    args += [pred_w, pred_b]

    in_specs = []
    for i, _ in enumerate(args):
        if i == 3:   # cl_b -> SMEM
            in_specs.append(pl.BlockSpec(memory_space=pltpu.MemorySpace.SMEM))
        else:
            in_specs.append(pl.BlockSpec(memory_space=pltpu.MemorySpace.VMEM))

    kernel = functools.partial(_readout_dense_kernel,
                               n_timesteps=n_timesteps, n_dense=n_dense, g=g)
    return pl.pallas_call(
        kernel,
        out_shape=jax.ShapeDtypeStruct((1, n_tasks), F32),
        in_specs=in_specs,
        out_specs=pl.BlockSpec(memory_space=pltpu.MemorySpace.VMEM),
        compiler_params=pltpu.CompilerParams(vmem_limit_bytes=vmem_limit),
    )(*args)


# ---------------------------------------------------------------------------
# Parameters (deterministic synthetic init, fused / split / stacked layout)
# ---------------------------------------------------------------------------
def init_params(key, node_feat_size, edge_feat_size, num_layers, num_timesteps,
                graph_feat_size, n_dense, n_units, n_tasks):
    keys = iter(jax.random.split(key, 256))

    def w(shape, scale=0.1):
        return scale * jax.random.normal(next(keys), shape, F32)

    G = graph_feat_size
    gc = {"pn_w": w((node_feat_size, G)), "pn_b": w((1, G)),
          "pe1_wn": w((node_feat_size, G)), "pe1_we": w((edge_feat_size, G)),
          "pe1_b": w((1, G)),
          "pe2_wd": w((1, G)), "pe2_we": w((1, G)), "pe2_b": w((1, 1)),
          "et_w": w((G, G)), "et_b": w((1, G)),
          "gru_wih": w((G, 3 * G)), "gru_whh": w((G, 3 * G)),
          "gru_bih": w((1, 3 * G)), "gru_bhh": w((1, 3 * G))}

    L = num_layers - 1
    if L > 0:
        gnn = {"pe_wd": w((L, 1, G)), "pe_ws": w((L, 1, G)), "pe_b": w((L, 1)),
               "pn_w": w((L, G, G)), "pn_b": w((L, 1, G)),
               "gru_wih": w((L, G, 3 * G)), "gru_whh": w((L, G, 3 * G)),
               "gru_bih": w((L, 1, 3 * G)), "gru_bhh": w((L, 1, 3 * G))}
    else:
        gnn = None

    T = num_timesteps
    readout = {"cl_wg": w((T, 1, G)), "cl_wn": w((T, 1, G)), "cl_b": w((T, 1)),
               "pn_w": w((T, G, G)), "pn_b": w((T, 1, G)),
               "gru_wih": w((T, G, 3 * G)), "gru_whh": w((T, G, 3 * G)),
               "gru_bih": w((T, 1, 3 * G)), "gru_bhh": w((T, 1, 3 * G))}

    params = {"gc": gc, "gnn": gnn, "readout": readout}
    if n_dense > 0:
        params["dense"] = [{"w": w((G if d == 0 else n_units, n_units)),
                            "b": w((1, n_units))} for d in range(n_dense)]
        params["pred_w"] = w((n_units, n_tasks))
    else:
        params["dense"] = []
        params["pred_w"] = w((G, n_tasks))
    params["pred_b"] = w((1, n_tasks))
    return params


# ---------------------------------------------------------------------------
# Forward pass (AttentiveFPDense.forward): 3 pallas_calls total
# ---------------------------------------------------------------------------
def attentive_fp_dense_forward(params, node_feats, edge_feats, adj_mask,
                               graph_feat_size, num_timesteps, n_dense, n_tasks,
                               tile_d=None):
    n = node_feats.shape[0]
    fe = edge_feats.shape[-1]
    assert n % 8 == 0, "node count must be a multiple of 8 (sublane tiling)"
    vmem_limit = _vmem_limit_bytes()
    if tile_d is None:
        tile_d = _choose_tile_d(n, graph_feat_size, fe, vmem_limit)
    assert n % tile_d == 0 and tile_d % 8 == 0

    # edge features stored bf16 in HBM (halves the dominant DMA); adjacency and
    # node features stay f32 (softmax / mask math stays f32).
    ef_flat = edge_feats.reshape(n * n, fe).astype(BF16)
    adj = adj_mask.astype(F32)

    node = get_context(node_feats.astype(F32), ef_flat, adj, params["gc"],
                       graph_feat_size, tile_d, vmem_limit)
    if params["gnn"] is not None:
        node = gnn_stack(node, adj, params["gnn"], graph_feat_size,
                         tile_d, vmem_limit)
    return readout_dense(node, params["readout"], params["dense"],
                         params["pred_w"], params["pred_b"],
                         graph_feat_size, num_timesteps, n_dense, n_tasks,
                         vmem_limit)


# ---------------------------------------------------------------------------
if __name__ == "__main__":
    node_feat_size, edge_feat_size = 8, 4
    num_layers, num_timesteps = 3, 2
    graph_feat_size = 128          # lane-dense (multiple of 128)
    n_dense, n_units, n_tasks = 1, 128, 1
    N = 16                         # number of nodes
    TILE_D = 8                     # 2 dst tiles -> exercises grid pipelining

    key = jax.random.PRNGKey(0)
    kp, kn, ke = jax.random.split(key, 3)
    params = init_params(kp, node_feat_size, edge_feat_size, num_layers,
                         num_timesteps, graph_feat_size, n_dense, n_units,
                         n_tasks)

    node_feats = jax.random.normal(kn, (N, node_feat_size), jnp.float32)

    # bidirectional ring graph: every node has two incoming edges
    idx = jnp.arange(N)
    adj = jnp.zeros((N, N), jnp.float32)
    adj = adj.at[idx, (idx + 1) % N].set(1.0)
    adj = adj.at[idx, (idx - 1) % N].set(1.0)
    edge_feats = (jax.random.normal(ke, (N, N, edge_feat_size), jnp.float32)
                  * adj[:, :, None])

    fwd = jax.jit(functools.partial(
        attentive_fp_dense_forward,
        graph_feat_size=graph_feat_size, num_timesteps=num_timesteps,
        n_dense=n_dense, n_tasks=n_tasks, tile_d=TILE_D))

    out = fwd(params, node_feats, edge_feats, adj)
    out = jax.block_until_ready(out)
    assert out.shape == (1, n_tasks)
    assert bool(jnp.all(jnp.isfinite(out)))
    print("KERNEL_OK")
</pallas_src>

<mosaic_0001>
module attributes {stable_mosaic.version = 11 : i64} {
  func.func @_get_context_kernel(%arg0: i32, %arg1: memref<16x8xf32, #tpu.memory_space<vmem>>, %arg2: memref<8x8xf32, #tpu.memory_space<vmem>>, %arg3: memref<128x4xbf16, #tpu.memory_space<vmem>>, %arg4: memref<8x16xf32, #tpu.memory_space<vmem>>, %arg5: memref<8x128xf32, #tpu.memory_space<vmem>>, %arg6: memref<1x128xf32, #tpu.memory_space<vmem>>, %arg7: memref<8x128xf32, #tpu.memory_space<vmem>>, %arg8: memref<4x128xf32, #tpu.memory_space<vmem>>, %arg9: memref<1x128xf32, #tpu.memory_space<vmem>>, %arg10: memref<1x128xf32, #tpu.memory_space<vmem>>, %arg11: memref<1x128xf32, #tpu.memory_space<vmem>>, %arg12: memref<128x128xf32, #tpu.memory_space<vmem>>, %arg13: memref<1x128xf32, #tpu.memory_space<vmem>>, %arg14: memref<128x384xf32, #tpu.memory_space<vmem>>, %arg15: memref<128x384xf32, #tpu.memory_space<vmem>>, %arg16: memref<1x384xf32, #tpu.memory_space<vmem>>, %arg17: memref<1x384xf32, #tpu.memory_space<vmem>>, %arg18: memref<1x1xf32, #tpu.memory_space<smem>>, %arg19: memref<8x128xf32, #tpu.memory_space<vmem>>) attributes {dimension_semantics = [#tpu.dimension_semantics<parallel>], iteration_bounds = array<i64: 2>, scalar_prefetch = 0 : i64, scratch_operands = 0 : i64, tpu.core_type = #tpu.core_type<tc>, window_params = [{pipeline_mode = #tpu.pipeline_mode<synchronous>, transform_indices = @transform_0, window_bounds = array<i64: 16, 8>}, {transform_indices = @transform_1, window_bounds = array<i64: 8, 8>}, {transform_indices = @transform_2, window_bounds = array<i64: 128, 4>}, {transform_indices = @transform_3, window_bounds = array<i64: 8, 16>}, {pipeline_mode = #tpu.pipeline_mode<synchronous>, transform_indices = @transform_4, window_bounds = array<i64: 8, 128>}, {pipeline_mode = #tpu.pipeline_mode<synchronous>, transform_indices = @transform_5, window_bounds = array<i64: 1, 128>}, {pipeline_mode = #tpu.pipeline_mode<synchronous>, transform_indices = @transform_6, window_bounds = array<i64: 8, 128>}, {pipeline_mode = #tpu.pipeline_mode<synchronous>, transform_indices = @transform_7, window_bounds = array<i64: 4, 128>}, {pipeline_mode = #tpu.pipeline_mode<synchronous>, transform_indices = @transform_8, window_bounds = array<i64: 1, 128>}, {pipeline_mode = #tpu.pipeline_mode<synchronous>, transform_indices = @transform_9, window_bounds = array<i64: 1, 128>}, {pipeline_mode = #tpu.pipeline_mode<synchronous>, transform_indices = @transform_10, window_bounds = array<i64: 1, 128>}, {pipeline_mode = #tpu.pipeline_mode<synchronous>, transform_indices = @transform_11, window_bounds = array<i64: 128, 128>}, {pipeline_mode = #tpu.pipeline_mode<synchronous>, transform_indices = @transform_12, window_bounds = array<i64: 1, 128>}, {pipeline_mode = #tpu.pipeline_mode<synchronous>, transform_indices = @transform_13, window_bounds = array<i64: 128, 384>}, {pipeline_mode = #tpu.pipeline_mode<synchronous>, transform_indices = @transform_14, window_bounds = array<i64: 128, 384>}, {pipeline_mode = #tpu.pipeline_mode<synchronous>, transform_indices = @transform_15, window_bounds = array<i64: 1, 384>}, {pipeline_mode = #tpu.pipeline_mode<synchronous>, transform_indices = @transform_16, window_bounds = array<i64: 1, 384>}, {transform_indices = @transform_17, window_bounds = array<i64: 1, 1>}, {transform_indices = @transform_18, window_bounds = array<i64: 8, 128>}]} {
    %c0 = arith.constant 0 : index
    %c0_0 = arith.constant 0 : index
    %0 = vector.load %arg1[%c0, %c0_0] : memref<16x8xf32, #tpu.memory_space<vmem>>, vector<16x8xf32>
    %c0_1 = arith.constant 0 : index
    %c0_2 = arith.constant 0 : index
    %1 = vector.load %arg2[%c0_1, %c0_2] : memref<8x8xf32, #tpu.memory_space<vmem>>, vector<8x8xf32>
    %c0_3 = arith.constant 0 : index
    %c0_4 = arith.constant 0 : index
    %2 = vector.load %arg4[%c0_3, %c0_4] : memref<8x16xf32, #tpu.memory_space<vmem>>, vector<8x16xf32>
    %c0_5 = arith.constant 0 : index
    %c0_6 = arith.constant 0 : index
    %3 = vector.load %arg3[%c0_5, %c0_6] : memref<128x4xbf16, #tpu.memory_space<vmem>>, vector<128x4xbf16>
    %c0_7 = arith.constant 0 : index
    %c0_8 = arith.constant 0 : index
    %4 = vector.load %arg5[%c0_7, %c0_8] : memref<8x128xf32, #tpu.memory_space<vmem>>, vector<8x128xf32>
    %5 = arith.truncf %1 : vector<8x8xf32> to vector<8x8xbf16>
    %6 = arith.truncf %4 : vector<8x128xf32> to vector<8x128xbf16>
    %cst = arith.constant dense<0.000000e+00> : vector<8x128xf32>
    %7 = tpu.matmul %5, %6, %cst {dimension_numbers = #tpu.dot_dimension_numbers<[1], [0], [0], [1], [0, 0, 1, 1], [], []>} : vector<8x8xbf16>, vector<8x128xbf16>, vector<8x128xf32> -> vector<8x128xf32>
    %c0_9 = arith.constant 0 : index
    %c0_10 = arith.constant 0 : index
    %8 = vector.load %arg6[%c0_9, %c0_10] : memref<1x128xf32, #tpu.memory_space<vmem>>, vector<1x128xf32>
    %9 = vector.broadcast %8 : vector<1x128xf32> to vector<8x128xf32>
    %10 = arith.addf %7, %9 : vector<8x128xf32>
    %cst_11 = arith.constant 0.000000e+00 : f32
    %11 = vector.broadcast %cst_11 : f32 to vector<8x128xf32>
    %12 = arith.cmpf ogt, %10, %11 : vector<8x128xf32>
    %cst_12 = arith.constant 0.00999999977 : f32
    %13 = vector.broadcast %cst_12 : f32 to vector<8x128xf32>
    %14 = arith.mulf %13, %10 : vector<8x128xf32>
    %15 = arith.select %12, %10, %14 : vector<8x128xi1>, vector<8x128xf32>
    %c0_13 = arith.constant 0 : index
    %c0_14 = arith.constant 0 : index
    %16 = vector.load %arg7[%c0_13, %c0_14] : memref<8x128xf32, #tpu.memory_space<vmem>>, vector<8x128xf32>
    %17 = arith.truncf %0 : vector<16x8xf32> to vector<16x8xbf16>
    %18 = arith.truncf %16 : vector<8x128xf32> to vector<8x128xbf16>
    %cst_15 = arith.constant dense<0.000000e+00> : vector<16x128xf32>
    %19 = tpu.matmul %17, %18, %cst_15 {dimension_numbers = #tpu.dot_dimension_numbers<[1], [0], [0], [1], [0, 0, 1, 1], [], []>} : vector<16x8xbf16>, vector<8x128xbf16>, vector<16x128xf32> -> vector<16x128xf32>
    %c0_16 = arith.constant 0 : index
    %c0_17 = arith.constant 0 : index
    %20 = vector.load %arg8[%c0_16, %c0_17] : memref<4x128xf32, #tpu.memory_space<vmem>>, vector<4x128xf32>
    %21 = arith.truncf %20 : vector<4x128xf32> to vector<4x128xbf16>
    %cst_18 = arith.constant dense<0.000000e+00> : vector<128x128xf32>
    %22 = tpu.matmul %3, %21, %cst_18 {dimension_numbers = #tpu.dot_dimension_numbers<[1], [0], [0], [1], [0, 0, 1, 1], [], []>} : vector<128x4xbf16>, vector<4x128xbf16>, vector<128x128xf32> -> vector<128x128xf32>
    %23 = vector.shape_cast %22 : vector<128x128xf32> to vector<8x16x128xf32>
    %24 = vector.shape_cast %19 : vector<16x128xf32> to vector<1x16x128xf32>
    %25 = vector.broadcast %24 : vector<1x16x128xf32> to vector<8x16x128xf32>
    %26 = arith.addf %25, %23 : vector<8x16x128xf32>
    %c0_19 = arith.constant 0 : index
    %c0_20 = arith.constant 0 : index
    %27 = vector.load %arg9[%c0_19, %c0_20] : memref<1x128xf32, #tpu.memory_space<vmem>>, vector<1x128xf32>
    %28 = vector.shape_cast %27 : vector<1x128xf32> to vector<1x1x128xf32>
    %29 = vector.broadcast %28 : vector<1x1x128xf32> to vector<8x16x128xf32>
    %30 = arith.addf %26, %29 : vector<8x16x128xf32>
    %cst_21 = arith.constant 0.000000e+00 : f32
    %31 = vector.broadcast %cst_21 : f32 to vector<8x16x128xf32>
    %32 = arith.cmpf ogt, %30, %31 : vector<8x16x128xf32>
    %cst_22 = arith.constant 0.00999999977 : f32
    %33 = vector.broadcast %cst_22 : f32 to vector<8x16x128xf32>
    %34 = arith.mulf %33, %30 : vector<8x16x128xf32>
    %35 = arith.select %32, %30, %34 : vector<8x16x128xi1>, vector<8x16x128xf32>
    %c0_23 = arith.constant 0 : index
    %c0_24 = arith.constant 0 : index
    %36 = vector.load %arg10[%c0_23, %c0_24] : memref<1x128xf32, #tpu.memory_space<vmem>>, vector<1x128xf32>
    %37 = vector.broadcast %36 : vector<1x128xf32> to vector<8x128xf32>
    %38 = arith.mulf %15, %37 : vector<8x128xf32>
    %cst_25 = arith.constant dense<0.000000e+00> : vector<8xf32>
    %39 = vector.multi_reduction <add>, %38, %cst_25 [1] : vector<8x128xf32> to vector<8xf32>
    %40 = vector.shape_cast %39 : vector<8xf32> to vector<8x1xf32>
    %c0_26 = arith.constant 0 : index
    %c0_27 = arith.constant 0 : index
    %41 = vector.load %arg11[%c0_26, %c0_27] : memref<1x128xf32, #tpu.memory_space<vmem>>, vector<1x128xf32>
    %42 = vector.shape_cast %41 : vector<1x128xf32> to vector<1x1x128xf32>
    %43 = vector.broadcast %42 : vector<1x1x128xf32> to vector<8x16x128xf32>
    %44 = arith.mulf %35, %43 : vector<8x16x128xf32>
    %cst_28 = arith.constant dense<0.000000e+00> : vector<8x16xf32>
    %45 = vector.multi_reduction <add>, %44, %cst_28 [2] : vector<8x16x128xf32> to vector<8x16xf32>
    %46 = vector.broadcast %40 : vector<8x1xf32> to vector<8x16xf32>
    %47 = arith.addf %46, %45 : vector<8x16xf32>
    %c0_29 = arith.constant 0 : index
    %c0_30 = arith.constant 0 : index
    %48 = memref.load %arg18[%c0_29, %c0_30] : memref<1x1xf32, #tpu.memory_space<smem>>
    %49 = vector.broadcast %48 : f32 to vector<8x16xf32>
    %50 = arith.addf %47, %49 : vector<8x16xf32>
    %cst_31 = arith.constant 0.000000e+00 : f32
    %51 = vector.broadcast %cst_31 : f32 to vector<8x16xf32>
    %52 = arith.cmpf ogt, %50, %51 : vector<8x16xf32>
    %cst_32 = arith.constant 0.00999999977 : f32
    %53 = vector.broadcast %cst_32 : f32 to vector<8x16xf32>
    %54 = arith.mulf %53, %50 : vector<8x16xf32>
    %55 = arith.select %52, %50, %54 : vector<8x16xi1>, vector<8x16xf32>
    %cst_33 = arith.constant -1.000000e+30 : f32
    %56 = vector.broadcast %cst_33 : f32 to vector<8x16xf32>
    %cst_34 = arith.constant 0.000000e+00 : f32
    %57 = vector.broadcast %cst_34 : f32 to vector<8x16xf32>
    %58 = arith.cmpf ogt, %2, %57 : vector<8x16xf32>
    %59 = arith.select %58, %55, %56 : vector<8x16xi1>, vector<8x16xf32>
    %cst_35 = arith.constant dense<0xFF800000> : vector<8xf32>
    %60 = vector.multi_reduction <maximumf>, %59, %cst_35 [1] : vector<8x16xf32> to vector<8xf32>
    %61 = vector.shape_cast %60 : vector<8xf32> to vector<8x1xf32>
    %62 = vector.broadcast %61 : vector<8x1xf32> to vector<8x16xf32>
    %63 = arith.subf %59, %62 : vector<8x16xf32>
    %64 = math.exp %63 : vector<8x16xf32>
    %65 = arith.mulf %64, %2 : vector<8x16xf32>
    %cst_36 = arith.constant dense<0.000000e+00> : vector<8xf32>
    %66 = vector.multi_reduction <add>, %65, %cst_36 [1] : vector<8x16xf32> to vector<8xf32>
    %67 = vector.shape_cast %66 : vector<8xf32> to vector<8x1xf32>
    %cst_37 = arith.constant 1.000000e-30 : f32
    %68 = vector.broadcast %cst_37 : f32 to vector<8x1xf32>
    %69 = arith.maximumf %67, %68 : vector<8x1xf32>
    %70 = vector.broadcast %69 : vector<8x1xf32> to vector<8x16xf32>
    %71 = arith.divf %65, %70 : vector<8x16xf32>
    %72 = vector.shape_cast %71 : vector<8x16xf32> to vector<8x16x1xf32>
    %73 = vector.broadcast %72 : vector<8x16x1xf32> to vector<8x16x128xf32>
    %74 = arith.mulf %73, %35 : vector<8x16x128xf32>
    %cst_38 = arith.constant dense<0.000000e+00> : vector<8x128xf32>
    %75 = vector.multi_reduction <add>, %74, %cst_38 [1] : vector<8x16x128xf32> to vector<8x128xf32>
    %cst_39 = arith.constant dense<0.000000e+00> : vector<8xf32>
    %76 = vector.multi_reduction <add>, %71, %cst_39 [1] : vector<8x16xf32> to vector<8xf32>
    %77 = vector.shape_cast %76 : vector<8xf32> to vector<8x1xf32>
    %c0_40 = arith.constant 0 : index
    %c0_41 = arith.constant 0 : index
    %78 = vector.load %arg12[%c0_40, %c0_41] : memref<128x128xf32, #tpu.memory_space<vmem>>, vector<128x128xf32>
    %79 = arith.truncf %75 : vector<8x128xf32> to vector<8x128xbf16>
    %80 = arith.truncf %78 : vector<128x128xf32> to vector<128x128xbf16>
    %cst_42 = arith.constant dense<0.000000e+00> : vector<8x128xf32>
    %81 = tpu.matmul %79, %80, %cst_42 {dimension_numbers = #tpu.dot_dimension_numbers<[1], [0], [0], [1], [0, 0, 1, 1], [], []>} : vector<8x128xbf16>, vector<128x128xbf16>, vector<8x128xf32> -> vector<8x128xf32>
    %c0_43 = arith.constant 0 : index
    %c0_44 = arith.constant 0 : index
    %82 = vector.load %arg13[%c0_43, %c0_44] : memref<1x128xf32, #tpu.memory_space<vmem>>, vector<1x128xf32>
    %83 = vector.broadcast %77 : vector<8x1xf32> to vector<8x128xf32>
    %84 = vector.broadcast %82 : vector<1x128xf32> to vector<8x128xf32>
    %85 = arith.mulf %83, %84 : vector<8x128xf32>
    %86 = arith.addf %81, %85 : vector<8x128xf32>
    %cst_45 = arith.constant 0.000000e+00 : f32
    %87 = vector.broadcast %cst_45 : f32 to vector<8x128xf32>
    %88 = arith.cmpf ogt, %86, %87 : vector<8x128xf32>
    %cst_46 = arith.constant 0.000000e+00 : f32
    %89 = vector.broadcast %cst_46 : f32 to vector<8x128xf32>
    %90 = arith.minimumf %86, %89 : vector<8x128xf32>
    %91 = math.exp %90 : vector<8x128xf32>
    %cst_47 = arith.constant 1.000000e+00 : f32
    %92 = vector.broadcast %cst_47 : f32 to vector<8x128xf32>
    %93 = arith.subf %91, %92 : vector<8x128xf32>
    %94 = arith.select %88, %86, %93 : vector<8x128xi1>, vector<8x128xf32>
    %c0_48 = arith.constant 0 : index
    %c0_49 = arith.constant 0 : index
    %95 = vector.load %arg14[%c0_48, %c0_49] : memref<128x384xf32, #tpu.memory_space<vmem>>, vector<128x384xf32>
    %c0_50 = arith.constant 0 : index
    %c0_51 = arith.constant 0 : index
    %96 = vector.load %arg15[%c0_50, %c0_51] : memref<128x384xf32, #tpu.memory_space<vmem>>, vector<128x384xf32>
    %c0_52 = arith.constant 0 : index
    %c0_53 = arith.constant 0 : index
    %97 = vector.load %arg16[%c0_52, %c0_53] : memref<1x384xf32, #tpu.memory_space<vmem>>, vector<1x384xf32>
    %c0_54 = arith.constant 0 : index
    %c0_55 = arith.constant 0 : index
    %98 = vector.load %arg17[%c0_54, %c0_55] : memref<1x384xf32, #tpu.memory_space<vmem>>, vector<1x384xf32>
    %99 = arith.truncf %94 : vector<8x128xf32> to vector<8x128xbf16>
    %100 = arith.truncf %95 : vector<128x384xf32> to vector<128x384xbf16>
    %cst_56 = arith.constant dense<0.000000e+00> : vector<8x384xf32>
    %101 = tpu.matmul %99, %100, %cst_56 {dimension_numbers = #tpu.dot_dimension_numbers<[1], [0], [0], [1], [0, 0, 1, 1], [], []>} : vector<8x128xbf16>, vector<128x384xbf16>, vector<8x384xf32> -> vector<8x384xf32>
    %102 = vector.broadcast %97 : vector<1x384xf32> to vector<8x384xf32>
    %103 = arith.addf %101, %102 : vector<8x384xf32>
    %104 = arith.truncf %15 : vector<8x128xf32> to vector<8x128xbf16>
    %105 = arith.truncf %96 : vector<128x384xf32> to vector<128x384xbf16>
    %cst_57 = arith.constant dense<0.000000e+00> : vector<8x384xf32>
    %106 = tpu.matmul %104, %105, %cst_57 {dimension_numbers = #tpu.dot_dimension_numbers<[1], [0], [0], [1], [0, 0, 1, 1], [], []>} : vector<8x128xbf16>, vector<128x384xbf16>, vector<8x384xf32> -> vector<8x384xf32>
    %107 = vector.broadcast %98 : vector<1x384xf32> to vector<8x384xf32>
    %108 = arith.addf %106, %107 : vector<8x384xf32>
    %109 = vector.extract_strided_slice %103 {offsets = [0, 0], sizes = [8, 128], strides = [1, 1]} : vector<8x384xf32> to vector<8x128xf32>
    %110 = vector.extract_strided_slice %108 {offsets = [0, 0], sizes = [8, 128], strides = [1, 1]} : vector<8x384xf32> to vector<8x128xf32>
    %111 = arith.addf %109, %110 : vector<8x128xf32>
    %112 = arith.negf %111 : vector<8x128xf32>
    %113 = math.exp %112 : vector<8x128xf32>
    %cst_58 = arith.constant 1.000000e+00 : f32
    %114 = vector.broadcast %cst_58 : f32 to vector<8x128xf32>
    %115 = arith.addf %114, %113 : vector<8x128xf32>
    %116 = arith.divf %114, %115 : vector<8x128xf32>
    %117 = vector.extract_strided_slice %103 {offsets = [0, 128], sizes = [8, 128], strides = [1, 1]} : vector<8x384xf32> to vector<8x128xf32>
    %118 = vector.extract_strided_slice %108 {offsets = [0, 128], sizes = [8, 128], strides = [1, 1]} : vector<8x384xf32> to vector<8x128xf32>
    %119 = arith.addf %117, %118 : vector<8x128xf32>
    %120 = arith.negf %119 : vector<8x128xf32>
    %121 = math.exp %120 : vector<8x128xf32>
    %cst_59 = arith.constant 1.000000e+00 : f32
    %122 = vector.broadcast %cst_59 : f32 to vector<8x128xf32>
    %123 = arith.addf %122, %121 : vector<8x128xf32>
    %124 = arith.divf %122, %123 : vector<8x128xf32>
    %125 = vector.extract_strided_slice %103 {offsets = [0, 256], sizes = [8, 128], strides = [1, 1]} : vector<8x384xf32> to vector<8x128xf32>
    %126 = vector.extract_strided_slice %108 {offsets = [0, 256], sizes = [8, 128], strides = [1, 1]} : vector<8x384xf32> to vector<8x128xf32>
    %127 = arith.mulf %116, %126 : vector<8x128xf32>
    %128 = arith.addf %125, %127 : vector<8x128xf32>
    %129 = math.tanh %128 : vector<8x128xf32>
    %cst_60 = arith.constant 1.000000e+00 : f32
    %130 = vector.broadcast %cst_60 : f32 to vector<8x128xf32>
    %131 = arith.subf %130, %124 : vector<8x128xf32>
    %132 = arith.mulf %131, %129 : vector<8x128xf32>
    %133 = arith.mulf %124, %15 : vector<8x128xf32>
    %134 = arith.addf %132, %133 : vector<8x128xf32>
    %cst_61 = arith.constant 0.000000e+00 : f32
    %135 = vector.broadcast %cst_61 : f32 to vector<8x128xf32>
    %136 = arith.maximumf %134, %135 : vector<8x128xf32>
    %c0_62 = arith.constant 0 : index
    %c0_63 = arith.constant 0 : index
    %137 = vector.load %arg19[%c0_62, %c0_63] : memref<8x128xf32, #tpu.memory_space<vmem>>, vector<8x128xf32>
    tpu.vector_store %arg19[%c0_62, %c0_63], %136 {strides = array<i32>} : memref<8x128xf32, #tpu.memory_space<vmem>>, vector<8x128xf32>,
    return
  }
  func.func @transform_0(%arg0: i32) -> (i32, i32) {
    %c0_i32 = arith.constant 0 : i32
    %c0_i32_0 = arith.constant 0 : i32
    %c0_i32_1 = arith.constant 0 : i32
    return %c0_i32, %c0_i32_0 : i32, i32
  }
  func.func @transform_1(%arg0: i32) -> (i32, i32) {
    %c0_i32 = arith.constant 0 : i32
    %c0_i32_0 = arith.constant 0 : i32
    return %arg0, %c0_i32 : i32, i32
  }
  func.func @transform_2(%arg0: i32) -> (i32, i32) {
    %c0_i32 = arith.constant 0 : i32
    %c0_i32_0 = arith.constant 0 : i32
    return %arg0, %c0_i32 : i32, i32
  }
  func.func @transform_3(%arg0: i32) -> (i32, i32) {
    %c0_i32 = arith.constant 0 : i32
    %c0_i32_0 = arith.constant 0 : i32
    return %arg0, %c0_i32 : i32, i32
  }
  func.func @transform_4(%arg0: i32) -> (i32, i32) {
    %c0_i32 = arith.constant 0 : i32
    %c0_i32_0 = arith.constant 0 : i32
    %c0_i32_1 = arith.constant 0 : i32
    return %c0_i32, %c0_i32_0 : i32, i32
  }
  func.func @transform_5(%arg0: i32) -> (i32, i32) {
    %c0_i32 = arith.constant 0 : i32
    %c0_i32_0 = arith.constant 0 : i32
    %c0_i32_1 = arith.constant 0 : i32
    return %c0_i32, %c0_i32_0 : i32, i32
  }
  func.func @transform_6(%arg0: i32) -> (i32, i32) {
    %c0_i32 = arith.constant 0 : i32
    %c0_i32_0 = arith.constant 0 : i32
    %c0_i32_1 = arith.constant 0 : i32
    return %c0_i32, %c0_i32_0 : i32, i32
  }
  func.func @transform_7(%arg0: i32) -> (i32, i32) {
    %c0_i32 = arith.constant 0 : i32
    %c0_i32_0 = arith.constant 0 : i32
    %c0_i32_1 = arith.constant 0 : i32
    return %c0_i32, %c0_i32_0 : i32, i32
  }
  func.func @transform_8(%arg0: i32) -> (i32, i32) {
    %c0_i32 = arith.constant 0 : i32
    %c0_i32_0 = arith.constant 0 : i32
    %c0_i32_1 = arith.constant 0 : i32
    return %c0_i32, %c0_i32_0 : i32, i32
  }
  func.func @transform_9(%arg0: i32) -> (i32, i32) {
    %c0_i32 = arith.constant 0 : i32
    %c0_i32_0 = arith.constant 0 : i32
    %c0_i32_1 = arith.constant 0 : i32
    return %c0_i32, %c0_i32_0 : i32, i32
  }
  func.func @transform_10(%arg0: i32) -> (i32, i32) {
    %c0_i32 = arith.constant 0 : i32
    %c0_i32_0 = arith.constant 0 : i32
    %c0_i32_1 = arith.constant 0 : i32
    return %c0_i32, %c0_i32_0 : i32, i32
  }
  func.func @transform_11(%arg0: i32) -> (i32, i32) {
    %c0_i32 = arith.constant 0 : i32
    %c0_i32_0 = arith.constant 0 : i32
    %c0_i32_1 = arith.constant 0 : i32
    return %c0_i32, %c0_i32_0 : i32, i32
  }
  func.func @transform_12(%arg0: i32) -> (i32, i32) {
    %c0_i32 = arith.constant 0 : i32
    %c0_i32_0 = arith.constant 0 : i32
    %c0_i32_1 = arith.constant 0 : i32
    return %c0_i32, %c0_i32_0 : i32, i32
  }
  func.func @transform_13(%arg0: i32) -> (i32, i32) {
    %c0_i32 = arith.constant 0 : i32
    %c0_i32_0 = arith.constant 0 : i32
    %c0_i32_1 = arith.constant 0 : i32
    return %c0_i32, %c0_i32_0 : i32, i32
  }
  func.func @transform_14(%arg0: i32) -> (i32, i32) {
    %c0_i32 = arith.constant 0 : i32
    %c0_i32_0 = arith.constant 0 : i32
    %c0_i32_1 = arith.constant 0 : i32
    return %c0_i32, %c0_i32_0 : i32, i32
  }
  func.func @transform_15(%arg0: i32) -> (i32, i32) {
    %c0_i32 = arith.constant 0 : i32
    %c0_i32_0 = arith.constant 0 : i32
    %c0_i32_1 = arith.constant 0 : i32
    return %c0_i32, %c0_i32_0 : i32, i32
  }
  func.func @transform_16(%arg0: i32) -> (i32, i32) {
    %c0_i32 = arith.constant 0 : i32
    %c0_i32_0 = arith.constant 0 : i32
    %c0_i32_1 = arith.constant 0 : i32
    return %c0_i32, %c0_i32_0 : i32, i32
  }
  func.func @transform_17(%arg0: i32) -> (i32, i32) {
    %c0_i32 = arith.constant 0 : i32
    %c0_i32_0 = arith.constant 0 : i32
    %c0_i32_1 = arith.constant 0 : i32
    return %c0_i32, %c0_i32_0 : i32, i32
  }
  func.func @transform_18(%arg0: i32) -> (i32, i32) {
    %c0_i32 = arith.constant 0 : i32
    %c0_i32_0 = arith.constant 0 : i32
    return %arg0, %c0_i32 : i32, i32
  }
}

module attributes {stable_mosaic.version = 11 : i64} {
  func.func @_gnn_stack_kernel(%arg0: i32, %arg1: i32, %arg2: memref<16x128xf32, #tpu.memory_space<vmem>>, %arg3: memref<8x16xf32, #tpu.memory_space<vmem>>, %arg4: memref<1x1x128xf32, #tpu.memory_space<vmem>>, %arg5: memref<1x1x128xf32, #tpu.memory_space<vmem>>, %arg6: memref<1x128x128xf32, #tpu.memory_space<vmem>>, %arg7: memref<1x1x128xf32, #tpu.memory_space<vmem>>, %arg8: memref<1x128x384xf32, #tpu.memory_space<vmem>>, %arg9: memref<1x128x384xf32, #tpu.memory_space<vmem>>, %arg10: memref<1x1x384xf32, #tpu.memory_space<vmem>>, %arg11: memref<1x1x384xf32, #tpu.memory_space<vmem>>, %arg12: memref<2x1xf32, #tpu.memory_space<smem>>, %arg13: memref<16x128xf32, #tpu.memory_space<vmem>>, %arg14: memref<16x128xf32, #tpu.memory_space<vmem>>, %arg15: memref<16x128xf32, #tpu.memory_space<vmem>>) attributes {dimension_semantics = [#tpu.dimension_semantics<arbitrary>, #tpu.dimension_semantics<arbitrary>], iteration_bounds = array<i64: 2, 2>, scalar_prefetch = 0 : i64, scratch_operands = 2 : i64, tpu.core_type = #tpu.core_type<tc>, window_params = [{pipeline_mode = #tpu.pipeline_mode<synchronous>, transform_indices = @transform_0, window_bounds = array<i64: 16, 128>}, {transform_indices = @transform_1, window_bounds = array<i64: 8, 16>}, {transform_indices = @transform_2, window_bounds = array<i64: 1, 1, 128>}, {transform_indices = @transform_3, window_bounds = array<i64: 1, 1, 128>}, {transform_indices = @transform_4, window_bounds = array<i64: 1, 128, 128>}, {transform_indices = @transform_5, window_bounds = array<i64: 1, 1, 128>}, {transform_indices = @transform_6, window_bounds = array<i64: 1, 128, 384>}, {transform_indices = @transform_7, window_bounds = array<i64: 1, 128, 384>}, {transform_indices = @transform_8, window_bounds = array<i64: 1, 1, 384>}, {transform_indices = @transform_9, window_bounds = array<i64: 1, 1, 384>}, {transform_indices = @transform_10, window_bounds = array<i64: 2, 1>}, {pipeline_mode = #tpu.pipeline_mode<synchronous>, transform_indices = @transform_11, window_bounds = array<i64: 16, 128>}]} {
    %c0_i32 = arith.constant 0 : i32
    %0 = arith.cmpi eq, %arg0, %c0_i32 : i32
    %c0_i32_0 = arith.constant 0 : i32
    %1 = arith.cmpi eq, %arg1, %c0_i32_0 : i32
    %2 = arith.andi %0, %1 : i1
    %3 = arith.extui %2 : i1 to i32
    %c0_i32_1 = arith.constant 0 : i32
    %4 = arith.cmpi ne, %3, %c0_i32_1 : i32
    scf.if %4 {
      %c0_50 = arith.constant 0 : index
      %c0_51 = arith.constant 0 : index
      %116 = vector.load %arg2[%c0_50, %c0_51] : memref<16x128xf32, #tpu.memory_space<vmem>>, vector<16x128xf32>
      %c0_52 = arith.constant 0 : index
      %c0_53 = arith.constant 0 : index
      %117 = vector.load %arg14[%c0_52, %c0_53] : memref<16x128xf32, #tpu.memory_space<vmem>>, vector<16x128xf32>
      tpu.vector_store %arg14[%c0_52, %c0_53], %116 {strides = array<i32>} : memref<16x128xf32, #tpu.memory_space<vmem>>, vector<16x128xf32>,
    } else {
    }
    %c0_i32_2 = arith.constant 0 : i32
    %5 = arith.cmpi eq, %arg1, %c0_i32_2 : i32
    %6 = arith.extui %5 : i1 to i32
    %c0_i32_3 = arith.constant 0 : i32
    %7 = arith.cmpi ne, %6, %c0_i32_3 : i32
    scf.if %7 {
      %c0_50 = arith.constant 0 : index
      %c0_51 = arith.constant 0 : index
      %116 = vector.load %arg14[%c0_50, %c0_51] : memref<16x128xf32, #tpu.memory_space<vmem>>, vector<16x128xf32>
      %c0_52 = arith.constant 0 : index
      %c0_53 = arith.constant 0 : index
      %c0_54 = arith.constant 0 : index
      %117 = vector.load %arg6[%c0_52, %c0_53, %c0_54] : memref<1x128x128xf32, #tpu.memory_space<vmem>>, vector<1x128x128xf32>
      %118 = vector.shape_cast %117 : vector<1x128x128xf32> to vector<128x128xf32>
      %119 = arith.truncf %116 : vector<16x128xf32> to vector<16x128xbf16>
      %120 = arith.truncf %118 : vector<128x128xf32> to vector<128x128xbf16>
      %cst_55 = arith.constant dense<0.000000e+00> : vector<16x128xf32>
      %121 = tpu.matmul %119, %120, %cst_55 {dimension_numbers = #tpu.dot_dimension_numbers<[1], [0], [0], [1], [0, 0, 1, 1], [], []>} : vector<16x128xbf16>, vector<128x128xbf16>, vector<16x128xf32> -> vector<16x128xf32>
      %c0_56 = arith.constant 0 : index
      %c0_57 = arith.constant 0 : index
      %c0_58 = arith.constant 0 : index
      %122 = vector.load %arg7[%c0_56, %c0_57, %c0_58] : memref<1x1x128xf32, #tpu.memory_space<vmem>>, vector<1x1x128xf32>
      %123 = vector.shape_cast %122 : vector<1x1x128xf32> to vector<1x128xf32>
      %124 = vector.broadcast %123 : vector<1x128xf32> to vector<16x128xf32>
      %125 = arith.addf %121, %124 : vector<16x128xf32>
      %c0_59 = arith.constant 0 : index
      %c0_60 = arith.constant 0 : index
      %126 = vector.load %arg15[%c0_59, %c0_60] : memref<16x128xf32, #tpu.memory_space<vmem>>, vector<16x128xf32>
      tpu.vector_store %arg15[%c0_59, %c0_60], %125 {strides = array<i32>} : memref<16x128xf32, #tpu.memory_space<vmem>>, vector<16x128xf32>,
    } else {
    }
    %c8_i32 = arith.constant 8 : i32
    %8 = arith.muli %arg1, %c8_i32 : i32
    %9 = tpu.assume_multiple %8, 8 : i32
    %c0 = arith.constant 0 : index
    %c0_4 = arith.constant 0 : index
    %10 = vector.load %arg14[%c0, %c0_4] : memref<16x128xf32, #tpu.memory_space<vmem>>, vector<16x128xf32>
    %11 = arith.index_cast %9 : i32 to index
    %c0_5 = arith.constant 0 : index
    %12 = vector.load %arg14[%11, %c0_5] : memref<16x128xf32, #tpu.memory_space<vmem>>, vector<8x128xf32>
    %c0_6 = arith.constant 0 : index
    %c0_7 = arith.constant 0 : index
    %13 = vector.load %arg3[%c0_6, %c0_7] : memref<8x16xf32, #tpu.memory_space<vmem>>, vector<8x16xf32>
    %c0_8 = arith.constant 0 : index
    %c0_9 = arith.constant 0 : index
    %c0_10 = arith.constant 0 : index
    %14 = vector.load %arg4[%c0_8, %c0_9, %c0_10] : memref<1x1x128xf32, #tpu.memory_space<vmem>>, vector<1x1x128xf32>
    %15 = vector.shape_cast %14 : vector<1x1x128xf32> to vector<1x128xf32>
    %16 = vector.broadcast %15 : vector<1x128xf32> to vector<8x128xf32>
    %17 = arith.mulf %12, %16 : vector<8x128xf32>
    %cst = arith.constant dense<0.000000e+00> : vector<8xf32>
    %18 = vector.multi_reduction <add>, %17, %cst [1] : vector<8x128xf32> to vector<8xf32>
    %19 = vector.shape_cast %18 : vector<8xf32> to vector<8x1xf32>
    %c0_11 = arith.constant 0 : index
    %c0_12 = arith.constant 0 : index
    %c0_13 = arith.constant 0 : index
    %20 = vector.load %arg5[%c0_11, %c0_12, %c0_13] : memref<1x1x128xf32, #tpu.memory_space<vmem>>, vector<1x1x128xf32>
    %21 = vector.shape_cast %20 : vector<1x1x128xf32> to vector<1x128xf32>
    %cst_14 = arith.constant dense<0.000000e+00> : vector<1x16xf32>
    %22 = tpu.matmul %21, %10, %cst_14 {dimension_numbers = #tpu.dot_dimension_numbers<[1], [1], [0], [0], [0, 0, 1, 0], [], []>} : vector<1x128xf32>, vector<16x128xf32>, vector<1x16xf32> -> vector<1x16xf32>
    %23 = vector.broadcast %19 : vector<8x1xf32> to vector<8x16xf32>
    %24 = vector.broadcast %22 : vector<1x16xf32> to vector<8x16xf32>
    %25 = arith.addf %23, %24 : vector<8x16xf32>
    %26 = arith.index_cast %arg0 : i32 to index
    %c0_15 = arith.constant 0 : index
    %27 = memref.load %arg12[%26, %c0_15] : memref<2x1xf32, #tpu.memory_space<smem>>
    %28 = vector.broadcast %27 : f32 to vector<8x16xf32>
    %29 = arith.addf %25, %28 : vector<8x16xf32>
    %cst_16 = arith.constant 0.000000e+00 : f32
    %30 = vector.broadcast %cst_16 : f32 to vector<8x16xf32>
    %31 = arith.cmpf ogt, %29, %30 : vector<8x16xf32>
    %cst_17 = arith.constant 0.00999999977 : f32
    %32 = vector.broadcast %cst_17 : f32 to vector<8x16xf32>
    %33 = arith.mulf %32, %29 : vector<8x16xf32>
    %34 = arith.select %31, %29, %33 : vector<8x16xi1>, vector<8x16xf32>
    %cst_18 = arith.constant -1.000000e+30 : f32
    %35 = vector.broadcast %cst_18 : f32 to vector<8x16xf32>
    %cst_19 = arith.constant 0.000000e+00 : f32
    %36 = vector.broadcast %cst_19 : f32 to vector<8x16xf32>
    %37 = arith.cmpf ogt, %13, %36 : vector<8x16xf32>
    %38 = arith.select %37, %34, %35 : vector<8x16xi1>, vector<8x16xf32>
    %cst_20 = arith.constant dense<0xFF800000> : vector<8xf32>
    %39 = vector.multi_reduction <maximumf>, %38, %cst_20 [1] : vector<8x16xf32> to vector<8xf32>
    %40 = vector.shape_cast %39 : vector<8xf32> to vector<8x1xf32>
    %41 = vector.broadcast %40 : vector<8x1xf32> to vector<8x16xf32>
    %42 = arith.subf %38, %41 : vector<8x16xf32>
    %43 = math.exp %42 : vector<8x16xf32>
    %44 = arith.mulf %43, %13 : vector<8x16xf32>
    %cst_21 = arith.constant dense<0.000000e+00> : vector<8xf32>
    %45 = vector.multi_reduction <add>, %44, %cst_21 [1] : vector<8x16xf32> to vector<8xf32>
    %46 = vector.shape_cast %45 : vector<8xf32> to vector<8x1xf32>
    %cst_22 = arith.constant 1.000000e-30 : f32
    %47 = vector.broadcast %cst_22 : f32 to vector<8x1xf32>
    %48 = arith.maximumf %46, %47 : vector<8x1xf32>
    %49 = vector.broadcast %48 : vector<8x1xf32> to vector<8x16xf32>
    %50 = arith.divf %44, %49 : vector<8x16xf32>
    %c0_23 = arith.constant 0 : index
    %c0_24 = arith.constant 0 : index
    %51 = vector.load %arg15[%c0_23, %c0_24] : memref<16x128xf32, #tpu.memory_space<vmem>>, vector<16x128xf32>
    %52 = arith.truncf %50 : vector<8x16xf32> to vector<8x16xbf16>
    %53 = arith.truncf %51 : vector<16x128xf32> to vector<16x128xbf16>
    %cst_25 = arith.constant dense<0.000000e+00> : vector<8x128xf32>
    %54 = tpu.matmul %52, %53, %cst_25 {dimension_numbers = #tpu.dot_dimension_numbers<[1], [0], [0], [1], [0, 0, 1, 1], [], []>} : vector<8x16xbf16>, vector<16x128xbf16>, vector<8x128xf32> -> vector<8x128xf32>
    %cst_26 = arith.constant 0.000000e+00 : f32
    %55 = vector.broadcast %cst_26 : f32 to vector<8x128xf32>
    %56 = arith.cmpf ogt, %54, %55 : vector<8x128xf32>
    %cst_27 = arith.constant 0.000000e+00 : f32
    %57 = vector.broadcast %cst_27 : f32 to vector<8x128xf32>
    %58 = arith.minimumf %54, %57 : vector<8x128xf32>
    %59 = math.exp %58 : vector<8x128xf32>
    %cst_28 = arith.constant 1.000000e+00 : f32
    %60 = vector.broadcast %cst_28 : f32 to vector<8x128xf32>
    %61 = arith.subf %59, %60 : vector<8x128xf32>
    %62 = arith.select %56, %54, %61 : vector<8x128xi1>, vector<8x128xf32>
    %c0_29 = arith.constant 0 : index
    %c0_30 = arith.constant 0 : index
    %c0_31 = arith.constant 0 : index
    %63 = vector.load %arg8[%c0_29, %c0_30, %c0_31] : memref<1x128x384xf32, #tpu.memory_space<vmem>>, vector<1x128x384xf32>
    %64 = vector.shape_cast %63 : vector<1x128x384xf32> to vector<128x384xf32>
    %c0_32 = arith.constant 0 : index
    %c0_33 = arith.constant 0 : index
    %c0_34 = arith.constant 0 : index
    %65 = vector.load %arg9[%c0_32, %c0_33, %c0_34] : memref<1x128x384xf32, #tpu.memory_space<vmem>>, vector<1x128x384xf32>
    %66 = vector.shape_cast %65 : vector<1x128x384xf32> to vector<128x384xf32>
    %c0_35 = arith.constant 0 : index
    %c0_36 = arith.constant 0 : index
    %c0_37 = arith.constant 0 : index
    %67 = vector.load %arg10[%c0_35, %c0_36, %c0_37] : memref<1x1x384xf32, #tpu.memory_space<vmem>>, vector<1x1x384xf32>
    %68 = vector.shape_cast %67 : vector<1x1x384xf32> to vector<1x384xf32>
    %c0_38 = arith.constant 0 : index
    %c0_39 = arith.constant 0 : index
    %c0_40 = arith.constant 0 : index
    %69 = vector.load %arg11[%c0_38, %c0_39, %c0_40] : memref<1x1x384xf32, #tpu.memory_space<vmem>>, vector<1x1x384xf32>
    %70 = vector.shape_cast %69 : vector<1x1x384xf32> to vector<1x384xf32>
    %71 = arith.truncf %62 : vector<8x128xf32> to vector<8x128xbf16>
    %72 = arith.truncf %64 : vector<128x384xf32> to vector<128x384xbf16>
    %cst_41 = arith.constant dense<0.000000e+00> : vector<8x384xf32>
    %73 = tpu.matmul %71, %72, %cst_41 {dimension_numbers = #tpu.dot_dimension_numbers<[1], [0], [0], [1], [0, 0, 1, 1], [], []>} : vector<8x128xbf16>, vector<128x384xbf16>, vector<8x384xf32> -> vector<8x384xf32>
    %74 = vector.broadcast %68 : vector<1x384xf32> to vector<8x384xf32>
    %75 = arith.addf %73, %74 : vector<8x384xf32>
    %76 = arith.truncf %12 : vector<8x128xf32> to vector<8x128xbf16>
    %77 = arith.truncf %66 : vector<128x384xf32> to vector<128x384xbf16>
    %cst_42 = arith.constant dense<0.000000e+00> : vector<8x384xf32>
    %78 = tpu.matmul %76, %77, %cst_42 {dimension_numbers = #tpu.dot_dimension_numbers<[1], [0], [0], [1], [0, 0, 1, 1], [], []>} : vector<8x128xbf16>, vector<128x384xbf16>, vector<8x384xf32> -> vector<8x384xf32>
    %79 = vector.broadcast %70 : vector<1x384xf32> to vector<8x384xf32>
    %80 = arith.addf %78, %79 : vector<8x384xf32>
    %81 = vector.extract_strided_slice %75 {offsets = [0, 0], sizes = [8, 128], strides = [1, 1]} : vector<8x384xf32> to vector<8x128xf32>
    %82 = vector.extract_strided_slice %80 {offsets = [0, 0], sizes = [8, 128], strides = [1, 1]} : vector<8x384xf32> to vector<8x128xf32>
    %83 = arith.addf %81, %82 : vector<8x128xf32>
    %84 = arith.negf %83 : vector<8x128xf32>
    %85 = math.exp %84 : vector<8x128xf32>
    %cst_43 = arith.constant 1.000000e+00 : f32
    %86 = vector.broadcast %cst_43 : f32 to vector<8x128xf32>
    %87 = arith.addf %86, %85 : vector<8x128xf32>
    %88 = arith.divf %86, %87 : vector<8x128xf32>
    %89 = vector.extract_strided_slice %75 {offsets = [0, 128], sizes = [8, 128], strides = [1, 1]} : vector<8x384xf32> to vector<8x128xf32>
    %90 = vector.extract_strided_slice %80 {offsets = [0, 128], sizes = [8, 128], strides = [1, 1]} : vector<8x384xf32> to vector<8x128xf32>
    %91 = arith.addf %89, %90 : vector<8x128xf32>
    %92 = arith.negf %91 : vector<8x128xf32>
    %93 = math.exp %92 : vector<8x128xf32>
    %cst_44 = arith.constant 1.000000e+00 : f32
    %94 = vector.broadcast %cst_44 : f32 to vector<8x128xf32>
    %95 = arith.addf %94, %93 : vector<8x128xf32>
    %96 = arith.divf %94, %95 : vector<8x128xf32>
    %97 = vector.extract_strided_slice %75 {offsets = [0, 256], sizes = [8, 128], strides = [1, 1]} : vector<8x384xf32> to vector<8x128xf32>
    %98 = vector.extract_strided_slice %80 {offsets = [0, 256], sizes = [8, 128], strides = [1, 1]} : vector<8x384xf32> to vector<8x128xf32>
    %99 = arith.mulf %88, %98 : vector<8x128xf32>
    %100 = arith.addf %97, %99 : vector<8x128xf32>
    %101 = math.tanh %100 : vector<8x128xf32>
    %cst_45 = arith.constant 1.000000e+00 : f32
    %102 = vector.broadcast %cst_45 : f32 to vector<8x128xf32>
    %103 = arith.subf %102, %96 : vector<8x128xf32>
    %104 = arith.mulf %103, %101 : vector<8x128xf32>
    %105 = arith.mulf %96, %12 : vector<8x128xf32>
    %106 = arith.addf %104, %105 : vector<8x128xf32>
    %cst_46 = arith.constant 0.000000e+00 : f32
    %107 = vector.broadcast %cst_46 : f32 to vector<8x128xf32>
    %108 = arith.maximumf %106, %107 : vector<8x128xf32>
    %109 = arith.index_cast %9 : i32 to index
    %c0_47 = arith.constant 0 : index
    %110 = vector.load %arg13[%109, %c0_47] : memref<16x128xf32, #tpu.memory_space<vmem>>, vector<8x128xf32>
    tpu.vector_store %arg13[%109, %c0_47], %108 {strides = array<i32>} : memref<16x128xf32, #tpu.memory_space<vmem>>, vector<8x128xf32>,
    %c1_i32 = arith.constant 1 : i32
    %111 = arith.cmpi eq, %arg1, %c1_i32 : i32
    %c1_i32_48 = arith.constant 1 : i32
    %112 = arith.cmpi slt, %arg0, %c1_i32_48 : i32
    %113 = arith.andi %111, %112 : i1
    %114 = arith.extui %113 : i1 to i32
    %c0_i32_49 = arith.constant 0 : i32
    %115 = arith.cmpi ne, %114, %c0_i32_49 : i32
    scf.if %115 {
      %c0_50 = arith.constant 0 : index
      %c0_51 = arith.constant 0 : index
      %116 = vector.load %arg13[%c0_50, %c0_51] : memref<16x128xf32, #tpu.memory_space<vmem>>, vector<16x128xf32>
      %c0_52 = arith.constant 0 : index
      %c0_53 = arith.constant 0 : index
      %117 = vector.load %arg14[%c0_52, %c0_53] : memref<16x128xf32, #tpu.memory_space<vmem>>, vector<16x128xf32>
      tpu.vector_store %arg14[%c0_52, %c0_53], %116 {strides = array<i32>} : memref<16x128xf32, #tpu.memory_space<vmem>>, vector<16x128xf32>,
    } else {
    }
    return
  }
  func.func @transform_0(%arg0: i32, %arg1: i32) -> (i32, i32) {
    %c0_i32 = arith.constant 0 : i32
    %c0_i32_0 = arith.constant 0 : i32
    %c0_i32_1 = arith.constant 0 : i32
    return %c0_i32, %c0_i32_0 : i32, i32
  }
  func.func @transform_1(%arg0: i32, %arg1: i32) -> (i32, i32) {
    %c0_i32 = arith.constant 0 : i32
    %c0_i32_0 = arith.constant 0 : i32
    return %arg1, %c0_i32 : i32, i32
  }
  func.func @transform_2(%arg0: i32, %arg1: i32) -> (i32, i32, i32) {
    %c0_i32 = arith.constant 0 : i32
    %c0_i32_0 = arith.constant 0 : i32
    %c0_i32_1 = arith.constant 0 : i32
    return %arg0, %c0_i32, %c0_i32_0 : i32, i32, i32
  }
  func.func @transform_3(%arg0: i32, %arg1: i32) -> (i32, i32, i32) {
    %c0_i32 = arith.constant 0 : i32
    %c0_i32_0 = arith.constant 0 : i32
    %c0_i32_1 = arith.constant 0 : i32
    return %arg0, %c0_i32, %c0_i32_0 : i32, i32, i32
  }
  func.func @transform_4(%arg0: i32, %arg1: i32) -> (i32, i32, i32) {
    %c0_i32 = arith.constant 0 : i32
    %c0_i32_0 = arith.constant 0 : i32
    %c0_i32_1 = arith.constant 0 : i32
    return %arg0, %c0_i32, %c0_i32_0 : i32, i32, i32
  }
  func.func @transform_5(%arg0: i32, %arg1: i32) -> (i32, i32, i32) {
    %c0_i32 = arith.constant 0 : i32
    %c0_i32_0 = arith.constant 0 : i32
    %c0_i32_1 = arith.constant 0 : i32
    return %arg0, %c0_i32, %c0_i32_0 : i32, i32, i32
  }
  func.func @transform_6(%arg0: i32, %arg1: i32) -> (i32, i32, i32) {
    %c0_i32 = arith.constant 0 : i32
    %c0_i32_0 = arith.constant 0 : i32
    %c0_i32_1 = arith.constant 0 : i32
    return %arg0, %c0_i32, %c0_i32_0 : i32, i32, i32
  }
  func.func @transform_7(%arg0: i32, %arg1: i32) -> (i32, i32, i32) {
    %c0_i32 = arith.constant 0 : i32
    %c0_i32_0 = arith.constant 0 : i32
    %c0_i32_1 = arith.constant 0 : i32
    return %arg0, %c0_i32, %c0_i32_0 : i32, i32, i32
  }
  func.func @transform_8(%arg0: i32, %arg1: i32) -> (i32, i32, i32) {
    %c0_i32 = arith.constant 0 : i32
    %c0_i32_0 = arith.constant 0 : i32
    %c0_i32_1 = arith.constant 0 : i32
    return %arg0, %c0_i32, %c0_i32_0 : i32, i32, i32
  }
  func.func @transform_9(%arg0: i32, %arg1: i32) -> (i32, i32, i32) {
    %c0_i32 = arith.constant 0 : i32
    %c0_i32_0 = arith.constant 0 : i32
    %c0_i32_1 = arith.constant 0 : i32
    return %arg0, %c0_i32, %c0_i32_0 : i32, i32, i32
  }
  func.func @transform_10(%arg0: i32, %arg1: i32) -> (i32, i32) {
    %c0_i32 = arith.constant 0 : i32
    %c0_i32_0 = arith.constant 0 : i32
    %c0_i32_1 = arith.constant 0 : i32
    return %c0_i32, %c0_i32_0 : i32, i32
  }
  func.func @transform_11(%arg0: i32, %arg1: i32) -> (i32, i32) {
    %c0_i32 = arith.constant 0 : i32
    %c0_i32_0 = arith.constant 0 : i32
    %c0_i32_1 = arith.constant 0 : i32
    return %c0_i32, %c0_i32_0 : i32, i32
  }
}

module attributes {stable_mosaic.version = 11 : i64} {
  func.func @_readout_dense_kernel(%arg0: memref<16x128xf32, #tpu.memory_space<vmem>>, %arg1: memref<2x1x128xf32, #tpu.memory_space<vmem>>, %arg2: memref<2x1x128xf32, #tpu.memory_space<vmem>>, %arg3: memref<2x1xf32, #tpu.memory_space<smem>>, %arg4: memref<2x128x128xf32, #tpu.memory_space<vmem>>, %arg5: memref<2x1x128xf32, #tpu.memory_space<vmem>>, %arg6: memref<2x128x384xf32, #tpu.memory_space<vmem>>, %arg7: memref<2x128x384xf32, #tpu.memory_space<vmem>>, %arg8: memref<2x1x384xf32, #tpu.memory_space<vmem>>, %arg9: memref<2x1x384xf32, #tpu.memory_space<vmem>>, %arg10: memref<128x128xf32, #tpu.memory_space<vmem>>, %arg11: memref<1x128xf32, #tpu.memory_space<vmem>>, %arg12: memref<128x1xf32, #tpu.memory_space<vmem>>, %arg13: memref<1x1xf32, #tpu.memory_space<vmem>>, %arg14: memref<1x1xf32, #tpu.memory_space<vmem>>) attributes {dimension_semantics = [], scalar_prefetch = 0 : i64, scratch_operands = 0 : i64, tpu.core_type = #tpu.core_type<tc>} {
    %c0 = arith.constant 0 : index
    %c0_0 = arith.constant 0 : index
    %0 = vector.load %arg0[%c0, %c0_0] : memref<16x128xf32, #tpu.memory_space<vmem>>, vector<16x128xf32>
    %cst = arith.constant dense<0.000000e+00> : vector<128xf32>
    %1 = vector.multi_reduction <add>, %0, %cst [0] : vector<16x128xf32> to vector<128xf32>
    %2 = vector.shape_cast %1 : vector<128xf32> to vector<1x128xf32>
    %cst_1 = arith.constant 0.000000e+00 : f32
    %3 = vector.broadcast %cst_1 : f32 to vector<1x128xf32>
    %4 = arith.maximumf %2, %3 : vector<1x128xf32>
    %c0_2 = arith.constant 0 : index
    %c0_3 = arith.constant 0 : index
    %c0_4 = arith.constant 0 : index
    %5 = vector.load %arg1[%c0_2, %c0_3, %c0_4] : memref<2x1x128xf32, #tpu.memory_space<vmem>>, vector<1x1x128xf32>
    %6 = vector.shape_cast %5 : vector<1x1x128xf32> to vector<1x128xf32>
    %7 = arith.mulf %4, %6 : vector<1x128xf32>
    %cst_5 = arith.constant dense<0.000000e+00> : vector<1xf32>
    %8 = vector.multi_reduction <add>, %7, %cst_5 [1] : vector<1x128xf32> to vector<1xf32>
    %9 = vector.shape_cast %8 : vector<1xf32> to vector<1x1xf32>
    %c0_6 = arith.constant 0 : index
    %c0_7 = arith.constant 0 : index
    %c0_8 = arith.constant 0 : index
    %10 = vector.load %arg2[%c0_6, %c0_7, %c0_8] : memref<2x1x128xf32, #tpu.memory_space<vmem>>, vector<1x1x128xf32>
    %11 = vector.shape_cast %10 : vector<1x1x128xf32> to vector<1x128xf32>
    %cst_9 = arith.constant dense<0.000000e+00> : vector<1x16xf32>
    %12 = tpu.matmul %11, %0, %cst_9 {dimension_numbers = #tpu.dot_dimension_numbers<[1], [1], [0], [0], [0, 0, 1, 0], [], []>} : vector<1x128xf32>, vector<16x128xf32>, vector<1x16xf32> -> vector<1x16xf32>
    %13 = vector.broadcast %9 : vector<1x1xf32> to vector<1x16xf32>
    %14 = arith.addf %13, %12 : vector<1x16xf32>
    %c0_10 = arith.constant 0 : index
    %c0_11 = arith.constant 0 : index
    %15 = memref.load %arg3[%c0_10, %c0_11] : memref<2x1xf32, #tpu.memory_space<smem>>
    %16 = vector.broadcast %15 : f32 to vector<1x16xf32>
    %17 = arith.addf %14, %16 : vector<1x16xf32>
    %cst_12 = arith.constant 0.000000e+00 : f32
    %18 = vector.broadcast %cst_12 : f32 to vector<1x16xf32>
    %19 = arith.cmpf ogt, %17, %18 : vector<1x16xf32>
    %cst_13 = arith.constant 0.00999999977 : f32
    %20 = vector.broadcast %cst_13 : f32 to vector<1x16xf32>
    %21 = arith.mulf %20, %17 : vector<1x16xf32>
    %22 = arith.select %19, %17, %21 : vector<1x16xi1>, vector<1x16xf32>
    %cst_14 = arith.constant dense<0xFF800000> : vector<1xf32>
    %23 = vector.multi_reduction <maximumf>, %22, %cst_14 [1] : vector<1x16xf32> to vector<1xf32>
    %24 = vector.shape_cast %23 : vector<1xf32> to vector<1x1xf32>
    %25 = vector.broadcast %24 : vector<1x1xf32> to vector<1x16xf32>
    %26 = arith.subf %22, %25 : vector<1x16xf32>
    %27 = math.exp %26 : vector<1x16xf32>
    %cst_15 = arith.constant dense<0.000000e+00> : vector<1xf32>
    %28 = vector.multi_reduction <add>, %27, %cst_15 [1] : vector<1x16xf32> to vector<1xf32>
    %29 = vector.shape_cast %28 : vector<1xf32> to vector<1x1xf32>
    %30 = vector.broadcast %29 : vector<1x1xf32> to vector<1x16xf32>
    %31 = arith.divf %27, %30 : vector<1x16xf32>
    %c0_16 = arith.constant 0 : index
    %c0_17 = arith.constant 0 : index
    %c0_18 = arith.constant 0 : index
    %32 = vector.load %arg4[%c0_16, %c0_17, %c0_18] : memref<2x128x128xf32, #tpu.memory_space<vmem>>, vector<1x128x128xf32>
    %33 = vector.shape_cast %32 : vector<1x128x128xf32> to vector<128x128xf32>
    %34 = arith.truncf %0 : vector<16x128xf32> to vector<16x128xbf16>
    %35 = arith.truncf %33 : vector<128x128xf32> to vector<128x128xbf16>
    %cst_19 = arith.constant dense<0.000000e+00> : vector<16x128xf32>
    %36 = tpu.matmul %34, %35, %cst_19 {dimension_numbers = #tpu.dot_dimension_numbers<[1], [0], [0], [1], [0, 0, 1, 1], [], []>} : vector<16x128xbf16>, vector<128x128xbf16>, vector<16x128xf32> -> vector<16x128xf32>
    %c0_20 = arith.constant 0 : index
    %c0_21 = arith.constant 0 : index
    %c0_22 = arith.constant 0 : index
    %37 = vector.load %arg5[%c0_20, %c0_21, %c0_22] : memref<2x1x128xf32, #tpu.memory_space<vmem>>, vector<1x1x128xf32>
    %38 = vector.shape_cast %37 : vector<1x1x128xf32> to vector<1x128xf32>
    %39 = vector.broadcast %38 : vector<1x128xf32> to vector<16x128xf32>
    %40 = arith.addf %36, %39 : vector<16x128xf32>
    %41 = arith.truncf %31 : vector<1x16xf32> to vector<1x16xbf16>
    %42 = arith.truncf %40 : vector<16x128xf32> to vector<16x128xbf16>
    %cst_23 = arith.constant dense<0.000000e+00> : vector<1x128xf32>
    %43 = tpu.matmul %41, %42, %cst_23 {dimension_numbers = #tpu.dot_dimension_numbers<[1], [0], [0], [1], [0, 0, 1, 1], [], []>} : vector<1x16xbf16>, vector<16x128xbf16>, vector<1x128xf32> -> vector<1x128xf32>
    %cst_24 = arith.constant 0.000000e+00 : f32
    %44 = vector.broadcast %cst_24 : f32 to vector<1x128xf32>
    %45 = arith.cmpf ogt, %43, %44 : vector<1x128xf32>
    %cst_25 = arith.constant 0.000000e+00 : f32
    %46 = vector.broadcast %cst_25 : f32 to vector<1x128xf32>
    %47 = arith.minimumf %43, %46 : vector<1x128xf32>
    %48 = math.exp %47 : vector<1x128xf32>
    %cst_26 = arith.constant 1.000000e+00 : f32
    %49 = vector.broadcast %cst_26 : f32 to vector<1x128xf32>
    %50 = arith.subf %48, %49 : vector<1x128xf32>
    %51 = arith.select %45, %43, %50 : vector<1x128xi1>, vector<1x128xf32>
    %c0_27 = arith.constant 0 : index
    %c0_28 = arith.constant 0 : index
    %c0_29 = arith.constant 0 : index
    %52 = vector.load %arg6[%c0_27, %c0_28, %c0_29] : memref<2x128x384xf32, #tpu.memory_space<vmem>>, vector<1x128x384xf32>
    %53 = vector.shape_cast %52 : vector<1x128x384xf32> to vector<128x384xf32>
    %c0_30 = arith.constant 0 : index
    %c0_31 = arith.constant 0 : index
    %c0_32 = arith.constant 0 : index
    %54 = vector.load %arg7[%c0_30, %c0_31, %c0_32] : memref<2x128x384xf32, #tpu.memory_space<vmem>>, vector<1x128x384xf32>
    %55 = vector.shape_cast %54 : vector<1x128x384xf32> to vector<128x384xf32>
    %c0_33 = arith.constant 0 : index
    %c0_34 = arith.constant 0 : index
    %c0_35 = arith.constant 0 : index
    %56 = vector.load %arg8[%c0_33, %c0_34, %c0_35] : memref<2x1x384xf32, #tpu.memory_space<vmem>>, vector<1x1x384xf32>
    %57 = vector.shape_cast %56 : vector<1x1x384xf32> to vector<1x384xf32>
    %c0_36 = arith.constant 0 : index
    %c0_37 = arith.constant 0 : index
    %c0_38 = arith.constant 0 : index
    %58 = vector.load %arg9[%c0_36, %c0_37, %c0_38] : memref<2x1x384xf32, #tpu.memory_space<vmem>>, vector<1x1x384xf32>
    %59 = vector.shape_cast %58 : vector<1x1x384xf32> to vector<1x384xf32>
    %60 = arith.truncf %51 : vector<1x128xf32> to vector<1x128xbf16>
    %61 = arith.truncf %53 : vector<128x384xf32> to vector<128x384xbf16>
    %cst_39 = arith.constant dense<0.000000e+00> : vector<1x384xf32>
    %62 = tpu.matmul %60, %61, %cst_39 {dimension_numbers = #tpu.dot_dimension_numbers<[1], [0], [0], [1], [0, 0, 1, 1], [], []>} : vector<1x128xbf16>, vector<128x384xbf16>, vector<1x384xf32> -> vector<1x384xf32>
    %63 = arith.addf %62, %57 : vector<1x384xf32>
    %64 = arith.truncf %2 : vector<1x128xf32> to vector<1x128xbf16>
    %65 = arith.truncf %55 : vector<128x384xf32> to vector<128x384xbf16>
    %cst_40 = arith.constant dense<0.000000e+00> : vector<1x384xf32>
    %66 = tpu.matmul %64, %65, %cst_40 {dimension_numbers = #tpu.dot_dimension_numbers<[1], [0], [0], [1], [0, 0, 1, 1], [], []>} : vector<1x128xbf16>, vector<128x384xbf16>, vector<1x384xf32> -> vector<1x384xf32>
    %67 = arith.addf %66, %59 : vector<1x384xf32>
    %68 = vector.extract_strided_slice %63 {offsets = [0, 0], sizes = [1, 128], strides = [1, 1]} : vector<1x384xf32> to vector<1x128xf32>
    %69 = vector.extract_strided_slice %67 {offsets = [0, 0], sizes = [1, 128], strides = [1, 1]} : vector<1x384xf32> to vector<1x128xf32>
    %70 = arith.addf %68, %69 : vector<1x128xf32>
    %71 = arith.negf %70 : vector<1x128xf32>
    %72 = math.exp %71 : vector<1x128xf32>
    %cst_41 = arith.constant 1.000000e+00 : f32
    %73 = vector.broadcast %cst_41 : f32 to vector<1x128xf32>
    %74 = arith.addf %73, %72 : vector<1x128xf32>
    %75 = arith.divf %73, %74 : vector<1x128xf32>
    %76 = vector.extract_strided_slice %63 {offsets = [0, 128], sizes = [1, 128], strides = [1, 1]} : vector<1x384xf32> to vector<1x128xf32>
    %77 = vector.extract_strided_slice %67 {offsets = [0, 128], sizes = [1, 128], strides = [1, 1]} : vector<1x384xf32> to vector<1x128xf32>
    %78 = arith.addf %76, %77 : vector<1x128xf32>
    %79 = arith.negf %78 : vector<1x128xf32>
    %80 = math.exp %79 : vector<1x128xf32>
    %cst_42 = arith.constant 1.000000e+00 : f32
    %81 = vector.broadcast %cst_42 : f32 to vector<1x128xf32>
    %82 = arith.addf %81, %80 : vector<1x128xf32>
    %83 = arith.divf %81, %82 : vector<1x128xf32>
    %84 = vector.extract_strided_slice %63 {offsets = [0, 256], sizes = [1, 128], strides = [1, 1]} : vector<1x384xf32> to vector<1x128xf32>
    %85 = vector.extract_strided_slice %67 {offsets = [0, 256], sizes = [1, 128], strides = [1, 1]} : vector<1x384xf32> to vector<1x128xf32>
    %86 = arith.mulf %75, %85 : vector<1x128xf32>
    %87 = arith.addf %84, %86 : vector<1x128xf32>
    %88 = math.tanh %87 : vector<1x128xf32>
    %cst_43 = arith.constant 1.000000e+00 : f32
    %89 = vector.broadcast %cst_43 : f32 to vector<1x128xf32>
    %90 = arith.subf %89, %83 : vector<1x128xf32>
    %91 = arith.mulf %90, %88 : vector<1x128xf32>
    %92 = arith.mulf %83, %2 : vector<1x128xf32>
    %93 = arith.addf %91, %92 : vector<1x128xf32>
    %cst_44 = arith.constant 0.000000e+00 : f32
    %94 = vector.broadcast %cst_44 : f32 to vector<1x128xf32>
    %95 = arith.maximumf %93, %94 : vector<1x128xf32>
    %c1 = arith.constant 1 : index
    %c0_45 = arith.constant 0 : index
    %c0_46 = arith.constant 0 : index
    %96 = vector.load %arg1[%c1, %c0_45, %c0_46] : memref<2x1x128xf32, #tpu.memory_space<vmem>>, vector<1x1x128xf32>
    %97 = vector.shape_cast %96 : vector<1x1x128xf32> to vector<1x128xf32>
    %98 = arith.mulf %95, %97 : vector<1x128xf32>
    %cst_47 = arith.constant dense<0.000000e+00> : vector<1xf32>
    %99 = vector.multi_reduction <add>, %98, %cst_47 [1] : vector<1x128xf32> to vector<1xf32>
    %100 = vector.shape_cast %99 : vector<1xf32> to vector<1x1xf32>
    %c1_48 = arith.constant 1 : index
    %c0_49 = arith.constant 0 : index
    %c0_50 = arith.constant 0 : index
    %101 = vector.load %arg2[%c1_48, %c0_49, %c0_50] : memref<2x1x128xf32, #tpu.memory_space<vmem>>, vector<1x1x128xf32>
    %102 = vector.shape_cast %101 : vector<1x1x128xf32> to vector<1x128xf32>
    %cst_51 = arith.constant dense<0.000000e+00> : vector<1x16xf32>
    %103 = tpu.matmul %102, %0, %cst_51 {dimension_numbers = #tpu.dot_dimension_numbers<[1], [1], [0], [0], [0, 0, 1, 0], [], []>} : vector<1x128xf32>, vector<16x128xf32>, vector<1x16xf32> -> vector<1x16xf32>
    %104 = vector.broadcast %100 : vector<1x1xf32> to vector<1x16xf32>
    %105 = arith.addf %104, %103 : vector<1x16xf32>
    %c1_52 = arith.constant 1 : index
    %c0_53 = arith.constant 0 : index
    %106 = memref.load %arg3[%c1_52, %c0_53] : memref<2x1xf32, #tpu.memory_space<smem>>
    %107 = vector.broadcast %106 : f32 to vector<1x16xf32>
    %108 = arith.addf %105, %107 : vector<1x16xf32>
    %cst_54 = arith.constant 0.000000e+00 : f32
    %109 = vector.broadcast %cst_54 : f32 to vector<1x16xf32>
    %110 = arith.cmpf ogt, %108, %109 : vector<1x16xf32>
    %cst_55 = arith.constant 0.00999999977 : f32
    %111 = vector.broadcast %cst_55 : f32 to vector<1x16xf32>
    %112 = arith.mulf %111, %108 : vector<1x16xf32>
    %113 = arith.select %110, %108, %112 : vector<1x16xi1>, vector<1x16xf32>
    %cst_56 = arith.constant dense<0xFF800000> : vector<1xf32>
    %114 = vector.multi_reduction <maximumf>, %113, %cst_56 [1] : vector<1x16xf32> to vector<1xf32>
    %115 = vector.shape_cast %114 : vector<1xf32> to vector<1x1xf32>
    %116 = vector.broadcast %115 : vector<1x1xf32> to vector<1x16xf32>
    %117 = arith.subf %113, %116 : vector<1x16xf32>
    %118 = math.exp %117 : vector<1x16xf32>
    %cst_57 = arith.constant dense<0.000000e+00> : vector<1xf32>
    %119 = vector.multi_reduction <add>, %118, %cst_57 [1] : vector<1x16xf32> to vector<1xf32>
    %120 = vector.shape_cast %119 : vector<1xf32> to vector<1x1xf32>
    %121 = vector.broadcast %120 : vector<1x1xf32> to vector<1x16xf32>
    %122 = arith.divf %118, %121 : vector<1x16xf32>
    %c1_58 = arith.constant 1 : index
    %c0_59 = arith.constant 0 : index
    %c0_60 = arith.constant 0 : index
    %123 = vector.load %arg4[%c1_58, %c0_59, %c0_60] : memref<2x128x128xf32, #tpu.memory_space<vmem>>, vector<1x128x128xf32>
    %124 = vector.shape_cast %123 : vector<1x128x128xf32> to vector<128x128xf32>
    %125 = arith.truncf %0 : vector<16x128xf32> to vector<16x128xbf16>
    %126 = arith.truncf %124 : vector<128x128xf32> to vector<128x128xbf16>
    %cst_61 = arith.constant dense<0.000000e+00> : vector<16x128xf32>
    %127 = tpu.matmul %125, %126, %cst_61 {dimension_numbers = #tpu.dot_dimension_numbers<[1], [0], [0], [1], [0, 0, 1, 1], [], []>} : vector<16x128xbf16>, vector<128x128xbf16>, vector<16x128xf32> -> vector<16x128xf32>
    %c1_62 = arith.constant 1 : index
    %c0_63 = arith.constant 0 : index
    %c0_64 = arith.constant 0 : index
    %128 = vector.load %arg5[%c1_62, %c0_63, %c0_64] : memref<2x1x128xf32, #tpu.memory_space<vmem>>, vector<1x1x128xf32>
    %129 = vector.shape_cast %128 : vector<1x1x128xf32> to vector<1x128xf32>
    %130 = vector.broadcast %129 : vector<1x128xf32> to vector<16x128xf32>
    %131 = arith.addf %127, %130 : vector<16x128xf32>
    %132 = arith.truncf %122 : vector<1x16xf32> to vector<1x16xbf16>
    %133 = arith.truncf %131 : vector<16x128xf32> to vector<16x128xbf16>
    %cst_65 = arith.constant dense<0.000000e+00> : vector<1x128xf32>
    %134 = tpu.matmul %132, %133, %cst_65 {dimension_numbers = #tpu.dot_dimension_numbers<[1], [0], [0], [1], [0, 0, 1, 1], [], []>} : vector<1x16xbf16>, vector<16x128xbf16>, vector<1x128xf32> -> vector<1x128xf32>
    %cst_66 = arith.constant 0.000000e+00 : f32
    %135 = vector.broadcast %cst_66 : f32 to vector<1x128xf32>
    %136 = arith.cmpf ogt, %134, %135 : vector<1x128xf32>
    %cst_67 = arith.constant 0.000000e+00 : f32
    %137 = vector.broadcast %cst_67 : f32 to vector<1x128xf32>
    %138 = arith.minimumf %134, %137 : vector<1x128xf32>
    %139 = math.exp %138 : vector<1x128xf32>
    %cst_68 = arith.constant 1.000000e+00 : f32
    %140 = vector.broadcast %cst_68 : f32 to vector<1x128xf32>
    %141 = arith.subf %139, %140 : vector<1x128xf32>
    %142 = arith.select %136, %134, %141 : vector<1x128xi1>, vector<1x128xf32>
    %c1_69 = arith.constant 1 : index
    %c0_70 = arith.constant 0 : index
    %c0_71 = arith.constant 0 : index
    %143 = vector.load %arg6[%c1_69, %c0_70, %c0_71] : memref<2x128x384xf32, #tpu.memory_space<vmem>>, vector<1x128x384xf32>
    %144 = vector.shape_cast %143 : vector<1x128x384xf32> to vector<128x384xf32>
    %c1_72 = arith.constant 1 : index
    %c0_73 = arith.constant 0 : index
    %c0_74 = arith.constant 0 : index
    %145 = vector.load %arg7[%c1_72, %c0_73, %c0_74] : memref<2x128x384xf32, #tpu.memory_space<vmem>>, vector<1x128x384xf32>
    %146 = vector.shape_cast %145 : vector<1x128x384xf32> to vector<128x384xf32>
    %c1_75 = arith.constant 1 : index
    %c0_76 = arith.constant 0 : index
    %c0_77 = arith.constant 0 : index
    %147 = vector.load %arg8[%c1_75, %c0_76, %c0_77] : memref<2x1x384xf32, #tpu.memory_space<vmem>>, vector<1x1x384xf32>
    %148 = vector.shape_cast %147 : vector<1x1x384xf32> to vector<1x384xf32>
    %c1_78 = arith.constant 1 : index
    %c0_79 = arith.constant 0 : index
    %c0_80 = arith.constant 0 : index
    %149 = vector.load %arg9[%c1_78, %c0_79, %c0_80] : memref<2x1x384xf32, #tpu.memory_space<vmem>>, vector<1x1x384xf32>
    %150 = vector.shape_cast %149 : vector<1x1x384xf32> to vector<1x384xf32>
    %151 = arith.truncf %142 : vector<1x128xf32> to vector<1x128xbf16>
    %152 = arith.truncf %144 : vector<128x384xf32> to vector<128x384xbf16>
    %cst_81 = arith.constant dense<0.000000e+00> : vector<1x384xf32>
    %153 = tpu.matmul %151, %152, %cst_81 {dimension_numbers = #tpu.dot_dimension_numbers<[1], [0], [0], [1], [0, 0, 1, 1], [], []>} : vector<1x128xbf16>, vector<128x384xbf16>, vector<1x384xf32> -> vector<1x384xf32>
    %154 = arith.addf %153, %148 : vector<1x384xf32>
    %155 = arith.truncf %93 : vector<1x128xf32> to vector<1x128xbf16>
    %156 = arith.truncf %146 : vector<128x384xf32> to vector<128x384xbf16>
    %cst_82 = arith.constant dense<0.000000e+00> : vector<1x384xf32>
    %157 = tpu.matmul %155, %156, %cst_82 {dimension_numbers = #tpu.dot_dimension_numbers<[1], [0], [0], [1], [0, 0, 1, 1], [], []>} : vector<1x128xbf16>, vector<128x384xbf16>, vector<1x384xf32> -> vector<1x384xf32>
    %158 = arith.addf %157, %150 : vector<1x384xf32>
    %159 = vector.extract_strided_slice %154 {offsets = [0, 0], sizes = [1, 128], strides = [1, 1]} : vector<1x384xf32> to vector<1x128xf32>
    %160 = vector.extract_strided_slice %158 {offsets = [0, 0], sizes = [1, 128], strides = [1, 1]} : vector<1x384xf32> to vector<1x128xf32>
    %161 = arith.addf %159, %160 : vector<1x128xf32>
    %162 = arith.negf %161 : vector<1x128xf32>
    %163 = math.exp %162 : vector<1x128xf32>
    %cst_83 = arith.constant 1.000000e+00 : f32
    %164 = vector.broadcast %cst_83 : f32 to vector<1x128xf32>
    %165 = arith.addf %164, %163 : vector<1x128xf32>
    %166 = arith.divf %164, %165 : vector<1x128xf32>
    %167 = vector.extract_strided_slice %154 {offsets = [0, 128], sizes = [1, 128], strides = [1, 1]} : vector<1x384xf32> to vector<1x128xf32>
    %168 = vector.extract_strided_slice %158 {offsets = [0, 128], sizes = [1, 128], strides = [1, 1]} : vector<1x384xf32> to vector<1x128xf32>
    %169 = arith.addf %167, %168 : vector<1x128xf32>
    %170 = arith.negf %169 : vector<1x128xf32>
    %171 = math.exp %170 : vector<1x128xf32>
    %cst_84 = arith.constant 1.000000e+00 : f32
    %172 = vector.broadcast %cst_84 : f32 to vector<1x128xf32>
    %173 = arith.addf %172, %171 : vector<1x128xf32>
    %174 = arith.divf %172, %173 : vector<1x128xf32>
    %175 = vector.extract_strided_slice %154 {offsets = [0, 256], sizes = [1, 128], strides = [1, 1]} : vector<1x384xf32> to vector<1x128xf32>
    %176 = vector.extract_strided_slice %158 {offsets = [0, 256], sizes = [1, 128], strides = [1, 1]} : vector<1x384xf32> to vector<1x128xf32>
    %177 = arith.mulf %166, %176 : vector<1x128xf32>
    %178 = arith.addf %175, %177 : vector<1x128xf32>
    %179 = math.tanh %178 : vector<1x128xf32>
    %cst_85 = arith.constant 1.000000e+00 : f32
    %180 = vector.broadcast %cst_85 : f32 to vector<1x128xf32>
    %181 = arith.subf %180, %174 : vector<1x128xf32>
    %182 = arith.mulf %181, %179 : vector<1x128xf32>
    %183 = arith.mulf %174, %93 : vector<1x128xf32>
    %184 = arith.addf %182, %183 : vector<1x128xf32>
    %c0_86 = arith.constant 0 : index
    %c0_87 = arith.constant 0 : index
    %185 = vector.load %arg10[%c0_86, %c0_87] : memref<128x128xf32, #tpu.memory_space<vmem>>, vector<128x128xf32>
    %186 = arith.truncf %184 : vector<1x128xf32> to vector<1x128xbf16>
    %187 = arith.truncf %185 : vector<128x128xf32> to vector<128x128xbf16>
    %cst_88 = arith.constant dense<0.000000e+00> : vector<1x128xf32>
    %188 = tpu.matmul %186, %187, %cst_88 {dimension_numbers = #tpu.dot_dimension_numbers<[1], [0], [0], [1], [0, 0, 1, 1], [], []>} : vector<1x128xbf16>, vector<128x128xbf16>, vector<1x128xf32> -> vector<1x128xf32>
    %c0_89 = arith.constant 0 : index
    %c0_90 = arith.constant 0 : index
    %189 = vector.load %arg11[%c0_89, %c0_90] : memref<1x128xf32, #tpu.memory_space<vmem>>, vector<1x128xf32>
    %190 = arith.addf %188, %189 : vector<1x128xf32>
    %cst_91 = arith.constant 0.000000e+00 : f32
    %191 = vector.broadcast %cst_91 : f32 to vector<1x128xf32>
    %192 = arith.maximumf %190, %191 : vector<1x128xf32>
    %c0_92 = arith.constant 0 : index
    %c0_93 = arith.constant 0 : index
    %193 = vector.load %arg12[%c0_92, %c0_93] : memref<128x1xf32, #tpu.memory_space<vmem>>, vector<128x1xf32>
    %cst_94 = arith.constant dense<0.000000e+00> : vector<1x1xf32>
    %194 = tpu.matmul %192, %193, %cst_94 {dimension_numbers = #tpu.dot_dimension_numbers<[1], [0], [0], [1], [0, 0, 1, 1], [], []>} : vector<1x128xf32>, vector<128x1xf32>, vector<1x1xf32> -> vector<1x1xf32>
    %c0_95 = arith.constant 0 : index
    %c0_96 = arith.constant 0 : index
    %195 = vector.load %arg13[%c0_95, %c0_96] : memref<1x1xf32, #tpu.memory_space<vmem>>, vector<1x1xf32>
    %196 = arith.addf %194, %195 : vector<1x1xf32>
    %c0_97 = arith.constant 0 : index
    %c0_98 = arith.constant 0 : index
    %197 = vector.load %arg14[%c0_97, %c0_98] : memref<1x1xf32, #tpu.memory_space<vmem>>, vector<1x1xf32>
    tpu.vector_store %arg14[%c0_97, %c0_98], %196 {strides = array<i32>} : memref<1x1xf32, #tpu.memory_space<vmem>>, vector<1x1xf32>,
    return
  }
}

</mosaic_0001>

<llo_original>
// kernel: attentive_fp_dense_forward.4
$region0: #{attentive_fp_dense_forward.4}
  #allocation0 [shape = 'u32[]', space=smem, size = 0x4, offset = 0x4, fixed_abs, tag = 'smem constant byte address 0x4 - core index']
  #allocation1 [shape = 'u32[144,128]{1,0:T(1,128)}', space=vmem, size = 0x12000, scoped, tag = 'internal scratch']
  #allocation2 [shape = 'f32[16,128]{1,0:T(8,128)}', space=vmem, size = 0x2000, scoped, tag = 'scratch operand']
  #allocation3 [shape = 'f32[16,128]{1,0:T(8,128)}', space=vmem, size = 0x2000, scoped, tag = 'scratch operand']
  %s0 = inlined_call_operand.vmem [shape: f32[16,128], index: 0, kind: input, shape index: {}]
  %s1 = inlined_call_operand.vmem [shape: f32[16,16], index: 1, kind: input, shape index: {}]
  %s2 = inlined_call_operand.vmem [shape: f32[2,1,128], index: 2, kind: input, shape index: {}]
  %s3 = inlined_call_operand.vmem [shape: f32[2,1,128], index: 3, kind: input, shape index: {}]
  %s4 = inlined_call_operand.vmem [shape: f32[2,128,128], index: 4, kind: input, shape index: {}]
  %s5 = inlined_call_operand.vmem [shape: f32[2,1,128], index: 5, kind: input, shape index: {}]
  %s6 = inlined_call_operand.vmem [shape: f32[2,128,384], index: 6, kind: input, shape index: {}]
  %s7 = inlined_call_operand.hbm [shape: f32[2,128,384], index: 7, kind: input, shape index: {}]
  %s8 = inlined_call_operand.vmem [shape: f32[2,1,384], index: 8, kind: input, shape index: {}]
  %s9 = inlined_call_operand.vmem [shape: f32[2,1,384], index: 9, kind: input, shape index: {}]
  %s10 = inlined_call_operand.vmem [shape: f32[2,1], index: 10, kind: input, shape index: {}]
  %s11 = inlined_call_operand.vmem [shape: f32[16,128], index: 11, kind: output, shape index: {}]
  %s12 = sld [smem:[#allocation0]]
  $region97: #{attentive_fp_dense_forward.4} parent=0
    _
  %s14 = ssub.s32 1, %s12
  %s15 = scalar_select 0, %s14, %s12
  $region1: #{attentive_fp_dense_forward.4} parent=0
    #allocation4 [shape = 'u8[393216]{0}', space=vmem, size = 0x60000, scoped, tag = 'input window, operand 7']
    #allocation5 [shape = 's32[2]{0}', space=sflag, size = 0x8, scoped, tag = 'scoped memory for attentive_fp_dense_forward.4']
    #allocation6 [shape = 's32[2]{0}', space=sflag, size = 0x8, scoped, tag = 'scoped memory for attentive_fp_dense_forward.4']
    #allocation7 [shape = 'u8[1024]{0}', space=smem, size = 0x400, scoped, tag = 'input window, operand 10, single buffered']
    %16 = vsyncpa [#allocation5], 0
    %s17 = scalar_lea.sflag [#allocation5], 1
    %18 = vsyncpa %s17, 0
    %19 = vsyncpa [#allocation6], 0
    loop: start=0, step=1, limit=6
    $region2: #{attentive_fp_dense_forward.4} parent=1 // loop_pre_header
      _
    $region3: #{attentive_fp_dense_forward.4} parent=1 // loop_header
      %s21 = sphi 0, %s25
      %p22 = scmp.ge.s32.totalorder %s21, 6
      %s28 = sphi 0, %s40
      %s29 = sphi 0, %s36
      %s30 = sphi 0, %s28
      %s31 = sphi 0, %s29
      %s32 = sphi 0, %s30
      %s33 = sphi 0, %s31
      %s41 = sphi 0, %s41
      %s43 = sphi 0, %s41
      %s44 = sphi 0, %s43
      %s58 = sphi 0, %s44
      %s64 = sphi 0, %s66
      %s67 = sphi 0, %s64
      %s68 = sphi 0, %s67
      %s84 = sphi 0, %s68
      %s90 = sphi 0, %s92
      %s93 = sphi 0, %s90
      %s94 = sphi 0, %s93
      %s110 = sphi 0, %s94
      %s116 = sphi 0, %s118
      %s119 = sphi 0, %s116
      %s120 = sphi 0, %s119
      %s136 = sphi 0, %s120
      %s142 = sphi 0, %s144
      %s145 = sphi 0, %s142
      %s146 = sphi 0, %s145
      %s162 = sphi 0, %s146
      %s168 = sphi 0, %s170
      %s171 = sphi 0, %s168
      %s172 = sphi 0, %s171
      %s188 = sphi 0, %s172
      %s194 = sphi 0, %s196
      %s197 = sphi 0, %s194
      %s198 = sphi 0, %s197
      %s214 = sphi 0, %s198
      %s220 = sphi 0, %s222
      %s223 = sphi 0, %s220
      %s224 = sphi 0, %s223
      %s240 = sphi 0, %s224
      %s246 = sphi 0, %s248
      %s249 = sphi 0, %s246
      %s250 = sphi 0, %s249
      %s266 = sphi 0, %s250
      %s272 = sphi 0, %s274
      %s275 = sphi 0, %s272
      %s276 = sphi 0, %s275
      %s292 = sphi 0, %s276
      %s296 = sphi 0, %s296
      %s298 = sphi 0, %s296
      %s299 = sphi 0, %s298
      %s313 = sphi 0, %s299
      %s317 = sphi 0, %s317
      %s319 = sphi 0, %s317
      %s320 = sphi 0, %s319
      %s334 = sphi 0, %s320
    $region4: #{attentive_fp_dense_forward.4} parent=1 // loop_header_branch
      %24 = sbr.rel (%p22) target = $region8
    $region5: #{attentive_fp_dense_forward.4} parent=1 // loop_body
      %s26 = ssub.s32 %s21, 1
      %s27 = ssub.s32 %s21, 2
      %s34 = sadd.s32 1, %s29
      %p35 = scmp.ge.s32.totalorder %s34, 2
      %s36 = scalar_select %p35, 0, %s34
      %s37 = sadd.s32 1, %s28
      %s38 = scalar_select %p35, %s37, %s28
      %p39 = scmp.ge.s32.totalorder %s38, 2
      %s40 = scalar_select %p39, 0, %s38
      %s42 = sadd.s32 %s41, 1
      %p45 = scmp.eq.s32.totalorder %s21, 3
      %p46 = scmp.ne.s32.totalorder %s41, %s43
      %p47 = scmp.eq.s32.totalorder %s21, 0
      %p48 = por %p46, %p47
      %p49 = scmp.ne.s32.totalorder %s41, %s43
      %p50 = scmp.eq.s32.totalorder %s26, 3
      %p51 = por %p49, %p50
      %p52 = scmp.ne.s32.totalorder %s43, %s44
      %p53 = scmp.eq.s32.totalorder %s26, 0
      %p54 = por %p52, %p53
      %p55 = scmp.ne.s32.totalorder %s43, %s44
      %p56 = scmp.eq.s32.totalorder %s27, 3
      %p57 = por %p55, %p56
      %p59 = scmp.ne.s32.totalorder %s44, %s58
      %p60 = scmp.eq.s32.totalorder %s27, 0
      %p61 = por %p59, %p60
      %s62 = ssub.s32 %s29, %s36
      %p63 = scmp.eq.s32.totalorder %s62, 0
      %s65 = sadd.s32 %s64, 1
      %s66 = scalar_select %p63, %s64, %s65
      %p69 = pneg %p63
      %p70 = scmp.eq.s32.totalorder %s21, 3
      %p71 = por %p69, %p70
      %p72 = scmp.ne.s32.totalorder %s64, %s67
      %p73 = scmp.eq.s32.totalorder %s21, 0
      %p74 = por %p72, %p73
      %p75 = scmp.ne.s32.totalorder %s64, %s67
      %p76 = scmp.eq.s32.totalorder %s26, 3
      %p77 = por %p75, %p76
      %p78 = scmp.ne.s32.totalorder %s67, %s68
      %p79 = scmp.eq.s32.totalorder %s26, 0
      %p80 = por %p78, %p79
      %p81 = scmp.ne.s32.totalorder %s67, %s68
      %p82 = scmp.eq.s32.totalorder %s27, 3
      %p83 = por %p81, %p82
      %p85 = scmp.ne.s32.totalorder %s68, %s84
      %p86 = scmp.eq.s32.totalorder %s27, 0
      %p87 = por %p85, %p86
      %s88 = ssub.s32 %s28, %s40
      %p89 = scmp.eq.s32.totalorder %s88, 0
      %s91 = sadd.s32 %s90, 1
      %s92 = scalar_select %p89, %s90, %s91
      %p95 = pneg %p89
      %p96 = scmp.eq.s32.totalorder %s21, 3
      %p97 = por %p95, %p96
      %p98 = scmp.ne.s32.totalorder %s90, %s93
      %p99 = scmp.eq.s32.totalorder %s21, 0
      %p100 = por %p98, %p99
      %p101 = scmp.ne.s32.totalorder %s90, %s93
      %p102 = scmp.eq.s32.totalorder %s26, 3
      %p103 = por %p101, %p102
      %p104 = scmp.ne.s32.totalorder %s93, %s94
      %p105 = scmp.eq.s32.totalorder %s26, 0
      %p106 = por %p104, %p105
      %p107 = scmp.ne.s32.totalorder %s93, %s94
      %p108 = scmp.eq.s32.totalorder %s27, 3
      %p109 = por %p107, %p108
      %p111 = scmp.ne.s32.totalorder %s94, %s110
      %p112 = scmp.eq.s32.totalorder %s27, 0
      %p113 = por %p111, %p112
      %s114 = ssub.s32 %s28, %s40
      %p115 = scmp.eq.s32.totalorder %s114, 0
      %s117 = sadd.s32 %s116, 1
      %s118 = scalar_select %p115, %s116, %s117
      %p121 = pneg %p115
      %p122 = scmp.eq.s32.totalorder %s21, 3
      %p123 = por %p121, %p122
      %p124 = scmp.ne.s32.totalorder %s116, %s119
      %p125 = scmp.eq.s32.totalorder %s21, 0
      %p126 = por %p124, %p125
      %p127 = scmp.ne.s32.totalorder %s116, %s119
      %p128 = scmp.eq.s32.totalorder %s26, 3
      %p129 = por %p127, %p128
      %p130 = scmp.ne.s32.totalorder %s119, %s120
      %p131 = scmp.eq.s32.totalorder %s26, 0
      %p132 = por %p130, %p131
      %p133 = scmp.ne.s32.totalorder %s119, %s120
      %p134 = scmp.eq.s32.totalorder %s27, 3
      %p135 = por %p133, %p134
      %p137 = scmp.ne.s32.totalorder %s120, %s136
      %p138 = scmp.eq.s32.totalorder %s27, 0
      %p139 = por %p137, %p138
      %s140 = ssub.s32 %s28, %s40
      %p141 = scmp.eq.s32.totalorder %s140, 0
      %s143 = sadd.s32 %s142, 1
      %s144 = scalar_select %p141, %s142, %s143
      %p147 = pneg %p141
      %p148 = scmp.eq.s32.totalorder %s21, 3
      %p149 = por %p147, %p148
      %p150 = scmp.ne.s32.totalorder %s142, %s145
      %p151 = scmp.eq.s32.totalorder %s21, 0
      %p152 = por %p150, %p151
      %p153 = scmp.ne.s32.totalorder %s142, %s145
      %p154 = scmp.eq.s32.totalorder %s26, 3
      %p155 = por %p153, %p154
      %p156 = scmp.ne.s32.totalorder %s145, %s146
      %p157 = scmp.eq.s32.totalorder %s26, 0
      %p158 = por %p156, %p157
      %p159 = scmp.ne.s32.totalorder %s145, %s146
      %p160 = scmp.eq.s32.totalorder %s27, 3
      %p161 = por %p159, %p160
      %p163 = scmp.ne.s32.totalorder %s146, %s162
      %p164 = scmp.eq.s32.totalorder %s27, 0
      %p165 = por %p163, %p164
      %s166 = ssub.s32 %s28, %s40
      %p167 = scmp.eq.s32.totalorder %s166, 0
      %s169 = sadd.s32 %s168, 1
      %s170 = scalar_select %p167, %s168, %s169
      %p173 = pneg %p167
      %p174 = scmp.eq.s32.totalorder %s21, 3
      %p175 = por %p173, %p174
      %p176 = scmp.ne.s32.totalorder %s168, %s171
      %p177 = scmp.eq.s32.totalorder %s21, 0
      %p178 = por %p176, %p177
      %p179 = scmp.ne.s32.totalorder %s168, %s171
      %p180 = scmp.eq.s32.totalorder %s26, 3
      %p181 = por %p179, %p180
      %p182 = scmp.ne.s32.totalorder %s171, %s172
      %p183 = scmp.eq.s32.totalorder %s26, 0
      %p184 = por %p182, %p183
      %p185 = scmp.ne.s32.totalorder %s171, %s172
      %p186 = scmp.eq.s32.totalorder %s27, 3
      %p187 = por %p185, %p186
      %p189 = scmp.ne.s32.totalorder %s172, %s188
      %p190 = scmp.eq.s32.totalorder %s27, 0
      %p191 = por %p189, %p190
      %s192 = ssub.s32 %s28, %s40
      %p193 = scmp.eq.s32.totalorder %s192, 0
      %s195 = sadd.s32 %s194, 1
      %s196 = scalar_select %p193, %s194, %s195
      %p199 = pneg %p193
      %p200 = scmp.eq.s32.totalorder %s21, 3
      %p201 = por %p199, %p200
      %p202 = scmp.ne.s32.totalorder %s194, %s197
      %p203 = scmp.eq.s32.totalorder %s21, 0
      %p204 = por %p202, %p203
      %p205 = scmp.ne.s32.totalorder %s194, %s197
      %p206 = scmp.eq.s32.totalorder %s26, 3
      %p207 = por %p205, %p206
      %p208 = scmp.ne.s32.totalorder %s197, %s198
      %p209 = scmp.eq.s32.totalorder %s26, 0
      %p210 = por %p208, %p209
      %p211 = scmp.ne.s32.totalorder %s197, %s198
      %p212 = scmp.eq.s32.totalorder %s27, 3
      %p213 = por %p211, %p212
      %p215 = scmp.ne.s32.totalorder %s198, %s214
      %p216 = scmp.eq.s32.totalorder %s27, 0
      %p217 = por %p215, %p216
      %s218 = ssub.s32 %s28, %s40
      %p219 = scmp.eq.s32.totalorder %s218, 0
      %s221 = sadd.s32 %s220, 1
      %s222 = scalar_select %p219, %s220, %s221
      %p225 = pneg %p219
      %p226 = scmp.eq.s32.totalorder %s21, 3
      %p227 = por %p225, %p226
      %p228 = scmp.ne.s32.totalorder %s220, %s223
      %p229 = scmp.eq.s32.totalorder %s21, 0
      %p230 = por %p228, %p229
      %p231 = scmp.ne.s32.totalorder %s220, %s223
      %p232 = scmp.eq.s32.totalorder %s26, 3
      %p233 = por %p231, %p232
      %p234 = scmp.ne.s32.totalorder %s223, %s224
      %p235 = scmp.eq.s32.totalorder %s26, 0
      %p236 = por %p234, %p235
      %p237 = scmp.ne.s32.totalorder %s223, %s224
      %p238 = scmp.eq.s32.totalorder %s27, 3
      %p239 = por %p237, %p238
      %p241 = scmp.ne.s32.totalorder %s224, %s240
      %p242 = scmp.eq.s32.totalorder %s27, 0
      %p243 = por %p241, %p242
      %s244 = ssub.s32 %s28, %s40
      %p245 = scmp.eq.s32.totalorder %s244, 0
      %s247 = sadd.s32 %s246, 1
      %s248 = scalar_select %p245, %s246, %s247
      %p251 = pneg %p245
      %p252 = scmp.eq.s32.totalorder %s21, 3
      %p253 = por %p251, %p252
      %p254 = scmp.ne.s32.totalorder %s246, %s249
      %p255 = scmp.eq.s32.totalorder %s21, 0
      %p256 = por %p254, %p255
      %p257 = scmp.ne.s32.totalorder %s246, %s249
      %p258 = scmp.eq.s32.totalorder %s26, 3
      %p259 = por %p257, %p258
      %p260 = scmp.ne.s32.totalorder %s249, %s250
      %p261 = scmp.eq.s32.totalorder %s26, 0
      %p262 = por %p260, %p261
      %p263 = scmp.ne.s32.totalorder %s249, %s250
      %p264 = scmp.eq.s32.totalorder %s27, 3
      %p265 = por %p263, %p264
      %p267 = scmp.ne.s32.totalorder %s250, %s266
      %p268 = scmp.eq.s32.totalorder %s27, 0
      %p269 = por %p267, %p268
      %s270 = ssub.s32 %s28, %s40
      %p271 = scmp.eq.s32.totalorder %s270, 0
      %s273 = sadd.s32 %s272, 1
      %s274 = scalar_select %p271, %s272, %s273
      %p277 = pneg %p271
      %p278 = scmp.eq.s32.totalorder %s21, 3
      %p279 = por %p277, %p278
      %p280 = scmp.ne.s32.totalorder %s272, %s275
      %p281 = scmp.eq.s32.totalorder %s21, 0
      %p282 = por %p280, %p281
      %p283 = scmp.ne.s32.totalorder %s272, %s275
      %p284 = scmp.eq.s32.totalorder %s26, 3
      %p285 = por %p283, %p284
      %p286 = scmp.ne.s32.totalorder %s275, %s276
      %p287 = scmp.eq.s32.totalorder %s26, 0
      %p288 = por %p286, %p287
      %p289 = scmp.ne.s32.totalorder %s275, %s276
      %p290 = scmp.eq.s32.totalorder %s27, 3
      %p291 = por %p289, %p290
      %p293 = scmp.ne.s32.totalorder %s276, %s292
      %p294 = scmp.eq.s32.totalorder %s27, 0
      %p295 = por %p293, %p294
      %s297 = sadd.s32 %s296, 1
      %p300 = scmp.eq.s32.totalorder %s21, 3
      %p301 = scmp.ne.s32.totalorder %s296, %s298
      %p302 = scmp.eq.s32.totalorder %s21, 0
      %p303 = por %p301, %p302
      %p304 = scmp.ne.s32.totalorder %s296, %s298
      %p305 = scmp.eq.s32.totalorder %s26, 3
      %p306 = por %p304, %p305
      %p307 = scmp.ne.s32.totalorder %s298, %s299
      %p308 = scmp.eq.s32.totalorder %s26, 0
      %p309 = por %p307, %p308
      %p310 = scmp.ne.s32.totalorder %s298, %s299
      %p311 = scmp.eq.s32.totalorder %s27, 3
      %p312 = por %p310, %p311
      %p314 = scmp.ne.s32.totalorder %s299, %s313
      %p315 = scmp.eq.s32.totalorder %s27, 0
      %p316 = por %p314, %p315
      %s318 = sadd.s32 %s317, 1
      %p321 = scmp.eq.s32.totalorder %s21, 3
      %p322 = scmp.ne.s32.totalorder %s317, %s319
      %p323 = scmp.eq.s32.totalorder %s21, 0
      %p324 = por %p322, %p323
      %p325 = scmp.ne.s32.totalorder %s317, %s319
      %p326 = scmp.eq.s32.totalorder %s26, 3
      %p327 = por %p325, %p326
      %p328 = scmp.ne.s32.totalorder %s319, %s320
      %p329 = scmp.eq.s32.totalorder %s26, 0
      %p330 = por %p328, %p329
      %p331 = scmp.ne.s32.totalorder %s319, %s320
      %p332 = scmp.eq.s32.totalorder %s27, 3
      %p333 = por %p331, %p332
      %p335 = scmp.ne.s32.totalorder %s320, %s334
      %p336 = scmp.eq.s32.totalorder %s27, 0
      %p337 = por %p335, %p336
      %p338 = scmp.le.s32.totalorder 1, %s21
      %p339 = scmp.lt.s32.totalorder %s21, 5
      %p340 = pnand %p338, %p339
      %p341 = pneg %p340
      // Predicated region
      $region9: #{attentive_fp_dense_forward.4} parent=5 // pred_check
        _
      $region10: #{attentive_fp_dense_forward.4} parent=5 // pred_check_branch
        %343 = sbr.rel (%p340) target = $region12
      $region11: #{attentive_fp_dense_forward.4} parent=5 // pred_region
        %s344 = ssub.s32 %s21, 1
        // Predicated region
        $region13: #{attentive_fp_dense_forward.4} parent=11 // pred_check
          %p345 = pneg %p54
        $region14: #{attentive_fp_dense_forward.4} parent=11 // pred_check_branch
          %347 = sbr.rel (%p345) target = $region16
        $region15: #{attentive_fp_dense_forward.4} parent=11 // pred_region
          _
        $region16: #{attentive_fp_dense_forward.4} parent=11 // pred_fallthru
          _
        // Predicated region
        $region17: #{attentive_fp_dense_forward.4} parent=11 // pred_check
          %p348 = pneg %p309
        $region18: #{attentive_fp_dense_forward.4} parent=11 // pred_check_branch
          %350 = sbr.rel (%p348) target = $region20
        $region19: #{attentive_fp_dense_forward.4} parent=11 // pred_region
          %s352 = ssub.s32 32, 32
          %353 = vsyncadd [#allocation6], %s352
          %s355 = sshll.u32 %s10, 4
          %s356 = int_to_ptr.vmem [resolvable:$true] %s355
          %358 = dma.vmem_to_smem %s356, 32, [#allocation7], [#allocation6]
        $region20: #{attentive_fp_dense_forward.4} parent=11 // pred_fallthru
          _
      $region12: #{attentive_fp_dense_forward.4} parent=5 // pred_fallthru
        _
      %p359 = scmp.lt.s32.totalorder %s21, 4
      // Predicated region
      $region21: #{attentive_fp_dense_forward.4} parent=5 // pred_check
        %p360 = pneg %p359
      $region22: #{attentive_fp_dense_forward.4} parent=5 // pred_check_branch
        %362 = sbr.rel (%p360) target = $region24
      $region23: #{attentive_fp_dense_forward.4} parent=5 // pred_region
        // Predicated region
        $region25: #{attentive_fp_dense_forward.4} parent=23 // pred_check
          %p363 = pneg %p74
        $region26: #{attentive_fp_dense_forward.4} parent=23 // pred_check_branch
          %365 = sbr.rel (%p363) target = $region28
        $region27: #{attentive_fp_dense_forward.4} parent=23 // pred_region
          %p366 = scmp.lt.s32.totalorder %s29, 1
          %s367 = scalar_select %p366, %s29, 1
          %s368 = smul.addr %s367, 8
          %s369 = scalar_lea.vmem %s1, %s368
        $region28: #{attentive_fp_dense_forward.4} parent=23 // pred_fallthru
          _
        // Predicated region
        $region29: #{attentive_fp_dense_forward.4} parent=23 // pred_check
          %p370 = pneg %p100
        $region30: #{attentive_fp_dense_forward.4} parent=23 // pred_check_branch
          %372 = sbr.rel (%p370) target = $region32
        $region31: #{attentive_fp_dense_forward.4} parent=23 // pred_region
          %p373 = scmp.lt.s32.totalorder %s28, 1
          %s374 = scalar_select %p373, %s28, 1
          %s375 = scalar_lea.vmem %s2, %s374
        $region32: #{attentive_fp_dense_forward.4} parent=23 // pred_fallthru
          _
        // Predicated region
        $region33: #{attentive_fp_dense_forward.4} parent=23 // pred_check
          %p376 = pneg %p126
        $region34: #{attentive_fp_dense_forward.4} parent=23 // pred_check_branch
          %378 = sbr.rel (%p376) target = $region36
        $region35: #{attentive_fp_dense_forward.4} parent=23 // pred_region
          %p379 = scmp.lt.s32.totalorder %s28, 1
          %s380 = scalar_select %p379, %s28, 1
          %s381 = scalar_lea.vmem %s3, %s380
        $region36: #{attentive_fp_dense_forward.4} parent=23 // pred_fallthru
          _
        // Predicated region
        $region37: #{attentive_fp_dense_forward.4} parent=23 // pred_check
          %p382 = pneg %p152
        $region38: #{attentive_fp_dense_forward.4} parent=23 // pred_check_branch
          %384 = sbr.rel (%p382) target = $region40
        $region39: #{attentive_fp_dense_forward.4} parent=23 // pred_region
          %p385 = scmp.lt.s32.totalorder %s28, 1
          %s386 = scalar_select %p385, %s28, 1
          %s387 = smul.addr %s386, 16
          %s388 = smul.addr %s387, 8
          %s389 = scalar_lea.vmem %s4, %s388
        $region40: #{attentive_fp_dense_forward.4} parent=23 // pred_fallthru
          _
        // Predicated region
        $region41: #{attentive_fp_dense_forward.4} parent=23 // pred_check
          %p390 = pneg %p178
        $region42: #{attentive_fp_dense_forward.4} parent=23 // pred_check_branch
          %392 = sbr.rel (%p390) target = $region44
        $region43: #{attentive_fp_dense_forward.4} parent=23 // pred_region
          %p393 = scmp.lt.s32.totalorder %s28, 1
          %s394 = scalar_select %p393, %s28, 1
          %s395 = scalar_lea.vmem %s5, %s394
        $region44: #{attentive_fp_dense_forward.4} parent=23 // pred_fallthru
          _
        // Predicated region
        $region45: #{attentive_fp_dense_forward.4} parent=23 // pred_check
          %p396 = pneg %p204
        $region46: #{attentive_fp_dense_forward.4} parent=23 // pred_check_branch
          %398 = sbr.rel (%p396) target = $region48
        $region47: #{attentive_fp_dense_forward.4} parent=23 // pred_region
          %p399 = scmp.lt.s32.totalorder %s28, 1
          %s400 = scalar_select %p399, %s28, 1
          %s401 = smul.addr %s400, 48
          %s402 = smul.addr %s401, 8
          %s403 = scalar_lea.vmem %s6, %s402
        $region48: #{attentive_fp_dense_forward.4} parent=23 // pred_fallthru
          _
        // Predicated region
        $region49: #{attentive_fp_dense_forward.4} parent=23 // pred_check
          %p404 = pneg %p230
        $region50: #{attentive_fp_dense_forward.4} parent=23 // pred_check_branch
          %406 = sbr.rel (%p404) target = $region52
        $region51: #{attentive_fp_dense_forward.4} parent=23 // pred_region
          %s407 = sand.u32 %s220, 1
          %s408 = scalar_lea.sflag [#allocation5], %s407
          %s409 = sand.u32 %s220, 1
          %s410 = smul.addr %s409, 384
          %s411 = scalar_lea.vmem [#allocation4], %s410
          %s413 = ssub.s32 6144, 6144
          %414 = vsyncadd %s408, %s413
          %s415 = smul.addr %s28, 48
          %s416 = smul.addr %s415, 128
          %s417 = scalar_lea.hbm %s7, %s416
          %s418 = sshll.u32 %s411, 4
          %s419 = int_to_ptr.vmem [resolvable:$true] %s418
          %424 = dma.hbm_to_vmem [thread:$0]  %s417, 6144, %s419, %s408, 384, 384, 24
        $region52: #{attentive_fp_dense_forward.4} parent=23 // pred_fallthru
          _
        // Predicated region
        $region53: #{attentive_fp_dense_forward.4} parent=23 // pred_check
          %p425 = pneg %p256
        $region54: #{attentive_fp_dense_forward.4} parent=23 // pred_check_branch
          %427 = sbr.rel (%p425) target = $region56
        $region55: #{attentive_fp_dense_forward.4} parent=23 // pred_region
          %p428 = scmp.lt.s32.totalorder %s28, 1
          %s429 = scalar_select %p428, %s28, 1
          %s430 = smul.addr %s429, 3
          %s431 = scalar_lea.vmem %s8, %s430
        $region56: #{attentive_fp_dense_forward.4} parent=23 // pred_fallthru
          _
        // Predicated region
        $region57: #{attentive_fp_dense_forward.4} parent=23 // pred_check
          %p432 = pneg %p282
        $region58: #{attentive_fp_dense_forward.4} parent=23 // pred_check_branch
          %434 = sbr.rel (%p432) target = $region60
        $region59: #{attentive_fp_dense_forward.4} parent=23 // pred_region
          %p435 = scmp.lt.s32.totalorder %s28, 1
          %s436 = scalar_select %p435, %s28, 1
          %s437 = smul.addr %s436, 3
          %s438 = scalar_lea.vmem %s9, %s437
        $region60: #{attentive_fp_dense_forward.4} parent=23 // pred_fallthru
          _
      $region24: #{attentive_fp_dense_forward.4} parent=5 // pred_fallthru
        _
      %p439 = scmp.le.s32.totalorder 1, %s21
      %p440 = scmp.lt.s32.totalorder %s21, 5
      %p441 = pnand %p439, %p440
      %p442 = pneg %p441
      // Predicated region
      $region61: #{attentive_fp_dense_forward.4} parent=5 // pred_check
        _
      $region62: #{attentive_fp_dense_forward.4} parent=5 // pred_check_branch
        %444 = sbr.rel (%p441) target = $region64
      $region63: #{attentive_fp_dense_forward.4} parent=5 // pred_region
        %s445 = ssub.s32 %s21, 1
        %s446 = sand.u32 %s223, 1
        %s447 = scalar_lea.sflag [#allocation5], %s446
        %s448 = sand.u32 %s223, 1
        %s449 = smul.addr %s448, 384
        %s450 = scalar_lea.vmem [#allocation4], %s449
        // Predicated region
        $region65: #{attentive_fp_dense_forward.4} parent=63 // pred_check
          %p451 = pneg %p236
        $region66: #{attentive_fp_dense_forward.4} parent=63 // pred_check_branch
          %453 = sbr.rel (%p451) target = $region68
        $region67: #{attentive_fp_dense_forward.4} parent=63 // pred_region
          %454 = dma.done %s447, 6144
        $region68: #{attentive_fp_dense_forward.4} parent=63 // pred_fallthru
          _
        // Predicated region
        $region69: #{attentive_fp_dense_forward.4} parent=63 // pred_check
          %p455 = pneg %p309
        $region70: #{attentive_fp_dense_forward.4} parent=63 // pred_check_branch
          %457 = sbr.rel (%p455) target = $region72
        $region71: #{attentive_fp_dense_forward.4} parent=63 // pred_region
          %458 = dma.done [#allocation6], 32
        $region72: #{attentive_fp_dense_forward.4} parent=63 // pred_fallthru
          _
        %459 = sfence
        %p460 = pneg %p54
        %p461 = pneg %p51
        %p462 = scmp.lt.s32.totalorder %s31, 1
        %s463 = scalar_select %p462, %s31, 1
        %s464 = smul.addr %s463, 8
        %s465 = scalar_lea.vmem %s1, %s464
        %p466 = pneg %p80
        %p467 = pneg %p77
        %p468 = scmp.lt.s32.totalorder %s30, 1
        %s469 = scalar_select %p468, %s30, 1
        %s470 = scalar_lea.vmem %s2, %s469
        %p471 = pneg %p106
        %p472 = pneg %p103
        %p473 = scmp.lt.s32.totalorder %s30, 1
        %s474 = scalar_select %p473, %s30, 1
        %s475 = scalar_lea.vmem %s3, %s474
        %p476 = pneg %p132
        %p477 = pneg %p129
        %p478 = scmp.lt.s32.totalorder %s30, 1
        %s479 = scalar_select %p478, %s30, 1
        %s480 = smul.addr %s479, 16
        %s481 = smul.addr %s480, 8
        %s482 = scalar_lea.vmem %s4, %s481
        %p483 = pneg %p158
        %p484 = pneg %p155
        %p485 = scmp.lt.s32.totalorder %s30, 1
        %s486 = scalar_select %p485, %s30, 1
        %s487 = scalar_lea.vmem %s5, %s486
        %p488 = pneg %p184
        %p489 = pneg %p181
        %p490 = scmp.lt.s32.totalorder %s30, 1
        %s491 = scalar_select %p490, %s30, 1
        %s492 = smul.addr %s491, 48
        %s493 = smul.addr %s492, 8
        %s494 = scalar_lea.vmem %s6, %s493
        %p495 = pneg %p210
        %p496 = pneg %p207
        %s497 = sand.u32 %s223, 1
        %s498 = scalar_lea.sflag [#allocation5], %s497
        %s499 = sand.u32 %s223, 1
        %s500 = smul.addr %s499, 384
        %s501 = scalar_lea.vmem [#allocation4], %s500
        %p502 = pneg %p236
        %p503 = pneg %p233
        %p504 = scmp.lt.s32.totalorder %s30, 1
        %s505 = scalar_select %p504, %s30, 1
        %s506 = smul.addr %s505, 3
        %s507 = scalar_lea.vmem %s8, %s506
        %p508 = pneg %p262
        %p509 = pneg %p259
        %p510 = scmp.lt.s32.totalorder %s30, 1
        %s511 = scalar_select %p510, %s30, 1
        %s512 = smul.addr %s511, 3
        %s513 = scalar_lea.vmem %s9, %s512
        %p514 = pneg %p288
        %p515 = pneg %p285
        %p516 = pneg %p309
        %p517 = pneg %p306
        %p518 = pneg %p330
        %p519 = pneg %p327
        %p520 = scmp.lt.s32.totalorder %s31, 1
        %s521 = scalar_select %p520, %s31, 1
        %s522 = smul.addr %s521, 8
        %s523 = scalar_lea.vmem %s1, %s522
        %p524 = scmp.lt.s32.totalorder %s30, 1
        %s525 = scalar_select %p524, %s30, 1
        %s526 = scalar_lea.vmem %s2, %s525
        %p527 = scmp.lt.s32.totalorder %s30, 1
        %s528 = scalar_select %p527, %s30, 1
        %s529 = scalar_lea.vmem %s3, %s528
        %p530 = scmp.lt.s32.totalorder %s30, 1
        %s531 = scalar_select %p530, %s30, 1
        %s532 = smul.addr %s531, 16
        %s533 = smul.addr %s532, 8
        %s534 = scalar_lea.vmem %s4, %s533
        %p535 = scmp.lt.s32.totalorder %s30, 1
        %s536 = scalar_select %p535, %s30, 1
        %s537 = scalar_lea.vmem %s5, %s536
        %p538 = scmp.lt.s32.totalorder %s30, 1
        %s539 = scalar_select %p538, %s30, 1
        %s540 = smul.addr %s539, 48
        %s541 = smul.addr %s540, 8
        %s542 = scalar_lea.vmem %s6, %s541
        %p543 = scmp.lt.s32.totalorder %s30, 1
        %s544 = scalar_select %p543, %s30, 1
        %s545 = smul.addr %s544, 3
        %s546 = scalar_lea.vmem %s8, %s545
        %p547 = scmp.lt.s32.totalorder %s30, 1
        %s548 = scalar_select %p547, %s30, 1
        %s549 = smul.addr %s548, 3
        %s550 = scalar_lea.vmem %s9, %s549
        %p552 = scmp.eq.s32.totalorder %s30, 0
        %p553 = scmp.eq.s32.totalorder %s31, 0
        %p554 = pnand %p552, %p553
        %p555 = pneg %p554
        // Predicated region
        $region73: #{attentive_fp_dense_forward.4} parent=63 // pred_check
          _
        $region74: #{attentive_fp_dense_forward.4} parent=63 // pred_check_branch
          %557 = sbr.rel (%p554) target = $region76
        $region75: #{attentive_fp_dense_forward.4} parent=63 // pred_region
          %v558 = vld [vmem:[%s0] sm:$0xff]
          %v559 = vld [vmem:[%s0 + $0x8] sm:$0xff]
          %560 = vst [vmem:[#allocation2] sm:$0xff] %v558
          %561 = vst [vmem:[#allocation2 + $0x8] sm:$0xff] %v559
        $region76: #{attentive_fp_dense_forward.4} parent=63 // pred_fallthru
          _
        // Predicated region
        $region77: #{attentive_fp_dense_forward.4} parent=63 // pred_check
          %p562 = pneg %p553
        $region78: #{attentive_fp_dense_forward.4} parent=63 // pred_check_branch
          %564 = sbr.rel (%p562) target = $region80
        $region79: #{attentive_fp_dense_forward.4} parent=63 // pred_region
          %v565 = vld [vmem:[#allocation2] sm:$0xff]
          %v566 = vld [vmem:[#allocation2 + $0x8] sm:$0xff]
          %v567 = vld [vmem:[%s534] sm:$0xff]
          %v568 = vld [vmem:[%s534 + $0x8] sm:$0xff]
          %v569 = vld [vmem:[%s534 + $0x10] sm:$0xff]
          %v570 = vld [vmem:[%s534 + $0x18] sm:$0xff]
          %v571 = vld [vmem:[%s534 + $0x20] sm:$0xff]
          %v572 = vld [vmem:[%s534 + $0x28] sm:$0xff]
          %v573 = vld [vmem:[%s534 + $0x30] sm:$0xff]
          %v574 = vld [vmem:[%s534 + $0x38] sm:$0xff]
          %v575 = vld [vmem:[%s534 + $0x40] sm:$0xff]
          %v576 = vld [vmem:[%s534 + $0x48] sm:$0xff]
          %v577 = vld [vmem:[%s534 + $0x50] sm:$0xff]
          %v578 = vld [vmem:[%s534 + $0x58] sm:$0xff]
          %v579 = vld [vmem:[%s534 + $0x60] sm:$0xff]
          %v580 = vld [vmem:[%s534 + $0x68] sm:$0xff]
          %v581 = vld [vmem:[%s534 + $0x70] sm:$0xff]
          %v582 = vld [vmem:[%s534 + $0x78] sm:$0xff]
          %v583 = vpack.c.bf16 %v566, %v565
          %v584 = vpack.c.bf16 %v568, %v567
          %v585 = vpack.c.bf16 %v570, %v569
          %v586 = vpack.c.bf16 %v572, %v571
          %v587 = vpack.c.bf16 %v574, %v573
          %v588 = vpack.c.bf16 %v576, %v575
          %v589 = vpack.c.bf16 %v578, %v577
          %v590 = vpack.c.bf16 %v580, %v579
          %v591 = vpack.c.bf16 %v582, %v581
          %v592 = vld [vmem:[%s537] sm:$0x1]
          %v594 = vlaneseq
          %v595 = vshrl.u32 %v594, 7
          %v596 = vsub.s32 0, %v595
          %v597 = vrot.slane %v592, %v596
          %599 = vmatprep.subr.bf16.mxu0 0
          %600 = vmatpush1.bf16.msra.mxu0 %v591
          %601 = vmatprep.subr.bf16.mxu0 0
          %602 = vmatpush1.bf16.msra.mxu0 %v590
          %603 = vmatprep.subr.bf16.mxu0 0
          %604 = vmatpush1.bf16.msra.mxu0 %v589
          %605 = vmatprep.subr.bf16.mxu0 0
          %606 = vmatpush1.bf16.msra.mxu0 %v588
          %607 = vmatprep.subr.bf16.mxu0 0
          %608 = vmatpush1.bf16.msra.mxu0 %v587
          %609 = vmatprep.subr.bf16.mxu0 0
          %610 = vmatpush1.bf16.msra.mxu0 %v586
          %611 = vmatprep.subr.bf16.mxu0 0
          %612 = vmatpush1.bf16.msra.mxu0 %v585
          %613 = vmatprep.subr.bf16.mxu0 0
          %614 = vmatpush1.bf16.msra.mxu0 %v584
          %615 = vmatprep.subr.bf16.mxu0 0
          %616 = vmatpush2.bf16.msra.mxu0 0
          %617 = vmatprep.subr.bf16.mxu0 0
          %618 = vmatpush2.bf16.msra.mxu0 0
          %619 = vmatprep.subr.bf16.mxu0 0
          %620 = vmatpush2.bf16.msra.mxu0 0
          %621 = vmatprep.subr.bf16.mxu0 0
          %622 = vmatpush2.bf16.msra.mxu0 0
          %623 = vmatprep.subr.bf16.mxu0 0
          %624 = vmatpush2.bf16.msra.mxu0 0
          %625 = vmatprep.subr.bf16.mxu0 0
          %626 = vmatpush2.bf16.msra.mxu0 0
          %627 = vmatprep.subr.bf16.mxu0 0
          %628 = vmatpush2.bf16.msra.mxu0 0
          %629 = vmatprep.subr.bf16.mxu0 0
          %630 = vmatpush2.bf16.msra.mxu0 0
          %631 = vmatprep.mubr.bf16.mxu0 0
          %632 = vmatmul.mubr.bf16.gmra.mxu0 %v583
          %v633 = vpop.f32.mrf.mxu0
          %v634 = vadd.f32 %v597, %v633
          %v635 = vpop.f32.mrf.mxu0
          %v636 = vpop.f32.mrf.mxu0
          %v637 = vadd.f32 %v597, %v636
          %v638 = vpop.f32.mrf.mxu0
          %639 = vdwg.mxu0
          %640 = vst [vmem:[#allocation3] sm:$0xff] %v634
          %641 = vst [vmem:[#allocation3 + $0x8] sm:$0xff] %v637
        $region80: #{attentive_fp_dense_forward.4} parent=63 // pred_fallthru
          _
        %s642 = smul.u32 %s31, 8
        %v643 = vld [vmem:[#allocation2] sm:$0xff]
        %v644 = vld [vmem:[#allocation2 + $0x8] sm:$0xff]
        %s645 = scalar_lea.vmem [#allocation2], %s642
        %v646 = vld [vmem:[%s645] sm:$0xff]
        %v647 = vld [vmem:[%s523] sm:$0xff]
        %v648 = vld [vmem:[%s526] sm:$0x1]
        %v650 = vlaneseq
        %v651 = vshrl.u32 %v650, 7
        %v652 = vsub.s32 0, %v651
        %v653 = vrot.slane %v648, %v652
        %v655 = vmul.f32 %v646, %v653
        %656 = vadd.xlane.f32.xlu0 %v655
        %v657 = vpop.xlane.xlu0 %656
        %v658 = vld [vmem:[%s529] sm:$0x1]
        %659 = vmatprep.subr.mxu0 0.0
        %660 = vmatpush1.xpose.msra.mxu0 0.0
        %661 = vmatprep.subr.mxu0 0.0
        %662 = vmatpush1.xpose.msra.mxu0 0.0
        %663 = vmatprep.subr.mxu0 0.0
        %664 = vmatpush1.xpose.msra.mxu0 0.0
        %665 = vmatprep.subr.mxu0 0.0
        %666 = vmatpush1.xpose.msra.mxu0 0.0
        %667 = vmatprep.subr.mxu0 0.0
        %668 = vmatpush1.xpose.msra.mxu0 0.0
        %669 = vmatprep.subr.mxu0 0.0
        %670 = vmatpush1.xpose.msra.mxu0 0.0
        %671 = vmatprep.subr.mxu0 0.0
        %672 = vmatpush1.xpose.msra.mxu0 0.0
        %673 = vmatprep.subr.mxu0 0.0
        %674 = vmatpush1.xpose.msra.mxu0 0.0
        %675 = vmatprep.subr.mxu0 0.0
        %676 = vmatpush1.xpose.msra.mxu0 0.0
        %677 = vmatprep.subr.mxu0 0.0
        %678 = vmatpush1.xpose.msra.mxu0 0.0
        %679 = vmatprep.subr.mxu0 0.0
        %680 = vmatpush1.xpose.msra.mxu0 0.0
        %681 = vmatprep.subr.mxu0 0.0
        %682 = vmatpush1.xpose.msra.mxu0 0.0
        %683 = vmatprep.subr.mxu0 0.0
        %684 = vmatpush1.xpose.msra.mxu0 0.0
        %685 = vmatprep.subr.mxu0 0.0
        %686 = vmatpush1.xpose.msra.mxu0 0.0
        %687 = vmatprep.subr.mxu0 0.0
        %688 = vmatpush1.xpose.msra.mxu0 %v644
        %689 = vmatprep.subr.mxu0 0.0
        %690 = vmatpush1.xpose.msra.mxu0 %v643
        %691 = vmatprep.subr.mxu0 0.0
        %692 = vmatpush2.xpose.msra.mxu0 0.0
        %693 = vmatprep.subr.mxu0 0.0
        %694 = vmatpush2.xpose.msra.mxu0 0.0
        %695 = vmatprep.subr.mxu0 0.0
        %696 = vmatpush2.xpose.msra.mxu0 0.0
        %697 = vmatprep.subr.mxu0 0.0
        %698 = vmatpush2.xpose.msra.mxu0 0.0
        %699 = vmatprep.subr.mxu0 0.0
        %700 = vmatpush2.xpose.msra.mxu0 0.0
        %701 = vmatprep.subr.mxu0 0.0
        %702 = vmatpush2.xpose.msra.mxu0 0.0
        %703 = vmatprep.subr.mxu0 0.0
        %704 = vmatpush2.xpose.msra.mxu0 0.0
        %705 = vmatprep.subr.mxu0 0.0
        %706 = vmatpush2.xpose.msra.mxu0 0.0
        %707 = vmatprep.subr.mxu0 0.0
        %708 = vmatpush2.xpose.msra.mxu0 0.0
        %709 = vmatprep.subr.mxu0 0.0
        %710 = vmatpush2.xpose.msra.mxu0 0.0
        %711 = vmatprep.subr.mxu0 0.0
        %712 = vmatpush2.xpose.msra.mxu0 0.0
        %713 = vmatprep.subr.mxu0 0.0
        %714 = vmatpush2.xpose.msra.mxu0 0.0
        %715 = vmatprep.subr.mxu0 0.0
        %716 = vmatpush2.xpose.msra.mxu0 0.0
        %717 = vmatprep.subr.mxu0 0.0
        %718 = vmatpush2.xpose.msra.mxu0 0.0
        %719 = vmatprep.subr.mxu0 0.0
        %720 = vmatpush2.xpose.msra.mxu0 0.0
        %721 = vmatprep.subr.mxu0 0.0
        %722 = vmatpush2.xpose.msra.mxu0 0.0
        %723 = vmatprep.mubr.f32.mxu0 0.0
        %724 = vmatmul.mubr.f32.gmra.mxu0 %v658
        %v725 = vpop.f32.mrf.mxu0
        %v726 = vadd.f32 0.0, %v725
        %v727 = vpop.f32.mrf.mxu0
        %728 = vdwg.mxu0
        %v729 = vlaneseq
        %v730 = vshrl.u32 %v729, 7
        %v731 = vsub.s32 0, %v730
        %v732 = vrot.slane %v726, %v731
        %v733 = vadd.f32 %v657, %v732
        %s734 = smul.u32 %s30, 128
        %s735 = sld [smem:[#allocation7 + %s734]]
        %v736 = vstv %s735
        %v737 = vadd.f32 %v733, %v736
        %vm738 = vcmp.gt.f32.partialorder %v737, 0.0
        %v739 = vmul.f32 %v737, 0.01
        %v740 = vsel %vm738, %v737, %v739
        %vm741 = vcmp.gt.f32.partialorder %v647, 0.0
        %v742 = vsel %vm741, %v740, -1e+30
        %vm743 = vcmask 130048
        %v744 = vsel %vm743, %v742, -inf
        %745 = vmax.xlane.f32.xlu0 %v744
        %v746 = vpop.xlane.xlu0 %745
        %v747 = vsub.f32 %v742, %v746
        %v748 = vmul.f32 %v747, 1.442695
        %v749 = vpow.pop %v748
        %v750 = vmul.f32 %v749, %v647
        %v751 = vsel %vm743, %v750, 0.0
        %752 = vadd.xlane.f32.xlu0 %v751
        %v753 = vpop.xlane.xlu0 %752
        %v754 = vmax.f32 %v753, 1e-30
        %v755 = vrcp.pop %v754
        %v756 = vmul.f32 %v750, %v755
        %v757 = vld [vmem:[#allocation3] sm:$0xff]
        %v758 = vld [vmem:[#allocation3 + $0x8] sm:$0xff]
        %v759 = vpack.c.bf16 %v756, %v756
        %v760 = vpack.c.bf16 %v758, %v757
        %v762 = vsel %vm743, %v759, 0
        %764 = vmatprep.subr.bf16.mxu0 0
        %765 = vmatpush1.bf16.msra.mxu0 0
        %766 = vmatprep.subr.bf16.mxu0 0
        %767 = vmatpush1.bf16.msra.mxu0 0
        %768 = vmatprep.subr.bf16.mxu0 0
        %769 = vmatpush1.bf16.msra.mxu0 0
        %770 = vmatprep.subr.bf16.mxu0 0
        %771 = vmatpush1.bf16.msra.mxu0 0
        %772 = vmatprep.subr.bf16.mxu0 0
        %773 = vmatpush1.bf16.msra.mxu0 0
        %774 = vmatprep.subr.bf16.mxu0 0
        %775 = vmatpush1.bf16.msra.mxu0 0
        %776 = vmatprep.subr.bf16.mxu0 0
        %777 = vmatpush1.bf16.msra.mxu0 0
        %778 = vmatprep.subr.bf16.mxu0 0
        %779 = vmatpush1.bf16.msra.mxu0 %v760
        %780 = vmatprep.subr.bf16.mxu0 0
        %781 = vmatpush2.bf16.msra.mxu0 0
        %782 = vmatprep.subr.bf16.mxu0 0
        %783 = vmatpush2.bf16.msra.mxu0 0
        %784 = vmatprep.subr.bf16.mxu0 0
        %785 = vmatpush2.bf16.msra.mxu0 0
        %786 = vmatprep.subr.bf16.mxu0 0
        %787 = vmatpush2.bf16.msra.mxu0 0
        %788 = vmatprep.subr.bf16.mxu0 0
        %789 = vmatpush2.bf16.msra.mxu0 0
        %790 = vmatprep.subr.bf16.mxu0 0
        %791 = vmatpush2.bf16.msra.mxu0 0
        %792 = vmatprep.subr.bf16.mxu0 0
        %793 = vmatpush2.bf16.msra.mxu0 0
        %794 = vmatprep.subr.bf16.mxu0 0
        %795 = vmatpush2.bf16.msra.mxu0 0
        %796 = vmatprep.mubr.bf16.mxu0 0
        %797 = vmatmul.mubr.bf16.gmra.mxu0 %v762
        %v798 = vpop.f32.mrf.mxu0
        %v799 = vadd.f32 0.0, %v798
        %v800 = vpop.f32.mrf.mxu0
        %v801 = vpop.f32.mrf.mxu0
        %v802 = vpop.f32.mrf.mxu0
        %803 = vdwg.mxu0
        %vm804 = vcmp.gt.f32.partialorder %v799, 0.0
        %v805 = vmin.f32 %v799, 0.0
        %v806 = vmul.f32 %v805, 1.442695
        %v807 = vpow.pop %v806
        %v808 = vsub.f32 %v807, 1.0
        %v809 = vsel %vm804, %v799, %v808
        %v810 = vld [vmem:[%s542] sm:$0xff]
        %v811 = vld [vmem:[%s542 + $0x8] sm:$0xff]
        %v812 = vld [vmem:[%s542 + $0x10] sm:$0xff]
        %v813 = vld [vmem:[%s542 + $0x18] sm:$0xff]
        %v814 = vld [vmem:[%s542 + $0x20] sm:$0xff]
        %v815 = vld [vmem:[%s542 + $0x28] sm:$0xff]
        %v816 = vld [vmem:[%s542 + $0x30] sm:$0xff]
        %v817 = vld [vmem:[%s542 + $0x38] sm:$0xff]
        %v818 = vld [vmem:[%s542 + $0x40] sm:$0xff]
        %v819 = vld [vmem:[%s542 + $0x48] sm:$0xff]
        %v820 = vld [vmem:[%s542 + $0x50] sm:$0xff]
        %v821 = vld [vmem:[%s542 + $0x58] sm:$0xff]
        %v822 = vld [vmem:[%s542 + $0x60] sm:$0xff]
        %v823 = vld [vmem:[%s542 + $0x68] sm:$0xff]
        %v824 = vld [vmem:[%s542 + $0x70] sm:$0xff]
        %v825 = vld [vmem:[%s542 + $0x78] sm:$0xff]
        %v826 = vld [vmem:[%s542 + $0x80] sm:$0xff]
        %v827 = vld [vmem:[%s542 + $0x88] sm:$0xff]
        %v828 = vld [vmem:[%s542 + $0x90] sm:$0xff]
        %v829 = vld [vmem:[%s542 + $0x98] sm:$0xff]
        %v830 = vld [vmem:[%s542 + $0xa0] sm:$0xff]
        %v831 = vld [vmem:[%s542 + $0xa8] sm:$0xff]
        %v832 = vld [vmem:[%s542 + $0xb0] sm:$0xff]
        %v833 = vld [vmem:[%s542 + $0xb8] sm:$0xff]
        %v834 = vld [vmem:[%s542 + $0xc0] sm:$0xff]
        %v835 = vld [vmem:[%s542 + $0xc8] sm:$0xff]
        %v836 = vld [vmem:[%s542 + $0xd0] sm:$0xff]
        %v837 = vld [vmem:[%s542 + $0xd8] sm:$0xff]
        %v838 = vld [vmem:[%s542 + $0xe0] sm:$0xff]
        %v839 = vld [vmem:[%s542 + $0xe8] sm:$0xff]
        %v840 = vld [vmem:[%s542 + $0xf0] sm:$0xff]
        %v841 = vld [vmem:[%s542 + $0xf8] sm:$0xff]
        %v842 = vld [vmem:[%s542 + $0x100] sm:$0xff]
        %v843 = vld [vmem:[%s542 + $0x108] sm:$0xff]
        %v844 = vld [vmem:[%s542 + $0x110] sm:$0xff]
        %v845 = vld [vmem:[%s542 + $0x118] sm:$0xff]
        %v846 = vld [vmem:[%s542 + $0x120] sm:$0xff]
        %v847 = vld [vmem:[%s542 + $0x128] sm:$0xff]
        %v848 = vld [vmem:[%s542 + $0x130] sm:$0xff]
        %v849 = vld [vmem:[%s542 + $0x138] sm:$0xff]
        %v850 = vld [vmem:[%s542 + $0x140] sm:$0xff]
        %v851 = vld [vmem:[%s542 + $0x148] sm:$0xff]
        %v852 = vld [vmem:[%s542 + $0x150] sm:$0xff]
        %v853 = vld [vmem:[%s542 + $0x158] sm:$0xff]
        %v854 = vld [vmem:[%s542 + $0x160] sm:$0xff]
        %v855 = vld [vmem:[%s542 + $0x168] sm:$0xff]
        %v856 = vld [vmem:[%s542 + $0x170] sm:$0xff]
        %v857 = vld [vmem:[%s542 + $0x178] sm:$0xff]
        %v858 = vld [vmem:[%s450] sm:$0xff]
        %v859 = vld [vmem:[%s450 + $0x8] sm:$0xff]
        %v860 = vld [vmem:[%s450 + $0x10] sm:$0xff]
        %v861 = vld [vmem:[%s450 + $0x18] sm:$0xff]
        %v862 = vld [vmem:[%s450 + $0x20] sm:$0xff]
        %v863 = vld [vmem:[%s450 + $0x28] sm:$0xff]
        %v864 = vld [vmem:[%s450 + $0x30] sm:$0xff]
        %v865 = vld [vmem:[%s450 + $0x38] sm:$0xff]
        %v866 = vld [vmem:[%s450 + $0x40] sm:$0xff]
        %v867 = vld [vmem:[%s450 + $0x48] sm:$0xff]
        %v868 = vld [vmem:[%s450 + $0x50] sm:$0xff]
        %v869 = vld [vmem:[%s450 + $0x58] sm:$0xff]
        %v870 = vld [vmem:[%s450 + $0x60] sm:$0xff]
        %v871 = vld [vmem:[%s450 + $0x68] sm:$0xff]
        %v872 = vld [vmem:[%s450 + $0x70] sm:$0xff]
        %v873 = vld [vmem:[%s450 + $0x78] sm:$0xff]
        %v874 = vld [vmem:[%s450 + $0x80] sm:$0xff]
        %v875 = vld [vmem:[%s450 + $0x88] sm:$0xff]
        %v876 = vld [vmem:[%s450 + $0x90] sm:$0xff]
        %v877 = vld [vmem:[%s450 + $0x98] sm:$0xff]
        %v878 = vld [vmem:[%s450 + $0xa0] sm:$0xff]
        %v879 = vld [vmem:[%s450 + $0xa8] sm:$0xff]
        %v880 = vld [vmem:[%s450 + $0xb0] sm:$0xff]
        %v881 = vld [vmem:[%s450 + $0xb8] sm:$0xff]
        %v882 = vld [vmem:[%s450 + $0xc0] sm:$0xff]
        %v883 = vld [vmem:[%s450 + $0xc8] sm:$0xff]
        %v884 = vld [vmem:[%s450 + $0xd0] sm:$0xff]
        %v885 = vld [vmem:[%s450 + $0xd8] sm:$0xff]
        %v886 = vld [vmem:[%s450 + $0xe0] sm:$0xff]
        %v887 = vld [vmem:[%s450 + $0xe8] sm:$0xff]
        %v888 = vld [vmem:[%s450 + $0xf0] sm:$0xff]
        %v889 = vld [vmem:[%s450 + $0xf8] sm:$0xff]
        %v890 = vld [vmem:[%s450 + $0x100] sm:$0xff]
        %v891 = vld [vmem:[%s450 + $0x108] sm:$0xff]
        %v892 = vld [vmem:[%s450 + $0x110] sm:$0xff]
        %v893 = vld [vmem:[%s450 + $0x118] sm:$0xff]
        %v894 = vld [vmem:[%s450 + $0x120] sm:$0xff]
        %v895 = vld [vmem:[%s450 + $0x128] sm:$0xff]
        %v896 = vld [vmem:[%s450 + $0x130] sm:$0xff]
        %v897 = vld [vmem:[%s450 + $0x138] sm:$0xff]
        %v898 = vld [vmem:[%s450 + $0x140] sm:$0xff]
        %v899 = vld [vmem:[%s450 + $0x148] sm:$0xff]
        %v900 = vld [vmem:[%s450 + $0x150] sm:$0xff]
        %v901 = vld [vmem:[%s450 + $0x158] sm:$0xff]
        %v902 = vld [vmem:[%s450 + $0x160] sm:$0xff]
        %v903 = vld [vmem:[%s450 + $0x168] sm:$0xff]
        %v904 = vld [vmem:[%s450 + $0x170] sm:$0xff]
        %v905 = vld [vmem:[%s450 + $0x178] sm:$0xff]
        %v906 = vld [vmem:[%s546] sm:$0x7]
        %v907 = vld [vmem:[%s550] sm:$0x7]
        %v908 = vpack.c.bf16 %v809, %v809
        %v909 = vpack.c.bf16 %v813, %v810
        %v910 = vpack.c.bf16 %v814, %v811
        %v911 = vpack.c.bf16 %v815, %v812
        %v912 = vpack.c.bf16 %v819, %v816
        %v913 = vpack.c.bf16 %v820, %v817
        %v914 = vpack.c.bf16 %v821, %v818
        %v915 = vpack.c.bf16 %v825, %v822
        %v916 = vpack.c.bf16 %v826, %v823
        %v917 = vpack.c.bf16 %v827, %v824
        %v918 = vpack.c.bf16 %v831, %v828
        %v919 = vpack.c.bf16 %v832, %v829
        %v920 = vpack.c.bf16 %v833, %v830
        %v921 = vpack.c.bf16 %v837, %v834
        %v922 = vpack.c.bf16 %v838, %v835
        %v923 = vpack.c.bf16 %v839, %v836
        %v924 = vpack.c.bf16 %v843, %v840
        %v925 = vpack.c.bf16 %v844, %v841
        %v926 = vpack.c.bf16 %v845, %v842
        %v927 = vpack.c.bf16 %v849, %v846
        %v928 = vpack.c.bf16 %v850, %v847
        %v929 = vpack.c.bf16 %v851, %v848
        %v930 = vpack.c.bf16 %v855, %v852
        %v931 = vpack.c.bf16 %v856, %v853
        %v932 = vpack.c.bf16 %v857, %v854
        %v934 = vlaneseq
        %v935 = vshrl.u32 %v934, 7
        %v936 = vsub.s32 0, %v935
        %v937 = vrot.slane %v906, %v936
        %v938 = vlaneseq
        %v939 = vshrl.u32 %v938, 7
        %v940 = vsub.s32 1, %v939
        %v941 = vrot.slane %v906, %v940
        %v942 = vlaneseq
        %v943 = vshrl.u32 %v942, 7
        %v944 = vsub.s32 2, %v943
        %v945 = vrot.slane %v906, %v944
        %949 = vmatprep.subr.bf16.mxu0 %v931
        %950 = vmatpush1.bf16.msra.mxu0 %v930
        %951 = vmatprep.subr.bf16.mxu0 %v928
        %952 = vmatpush1.bf16.msra.mxu0 %v927
        %953 = vmatprep.subr.bf16.mxu0 %v925
        %954 = vmatpush1.bf16.msra.mxu0 %v924
        %955 = vmatprep.subr.bf16.mxu0 %v922
        %956 = vmatpush1.bf16.msra.mxu0 %v921
        %957 = vmatprep.subr.bf16.mxu0 %v919
        %958 = vmatpush1.bf16.msra.mxu0 %v918
        %959 = vmatprep.subr.bf16.mxu0 %v916
        %960 = vmatpush1.bf16.msra.mxu0 %v915
        %961 = vmatprep.subr.bf16.mxu0 %v913
        %962 = vmatpush1.bf16.msra.mxu0 %v912
        %963 = vmatprep.subr.bf16.mxu0 %v910
        %964 = vmatpush1.bf16.msra.mxu0 %v909
        %965 = vmatprep.subr.bf16.mxu0 0
        %966 = vmatpush2.bf16.msra.mxu0 0
        %967 = vmatprep.subr.bf16.mxu0 0
        %968 = vmatpush2.bf16.msra.mxu0 0
        %969 = vmatprep.subr.bf16.mxu0 0
        %970 = vmatpush2.bf16.msra.mxu0 0
        %971 = vmatprep.subr.bf16.mxu0 0
        %972 = vmatpush2.bf16.msra.mxu0 0
        %973 = vmatprep.subr.bf16.mxu0 0
        %974 = vmatpush2.bf16.msra.mxu0 0
        %975 = vmatprep.subr.bf16.mxu0 0
        %976 = vmatpush2.bf16.msra.mxu0 0
        %977 = vmatprep.subr.bf16.mxu0 0
        %978 = vmatpush2.bf16.msra.mxu0 0
        %979 = vmatprep.subr.bf16.mxu0 0
        %980 = vmatpush2.bf16.msra.mxu0 0
        %981 = vmatprep.mubr.bf16.mxu0 0
        %982 = vmatmul.mubr.bf16.gmra.mxu0 %v908
        %v983 = vpop.f32.mrf.mxu0
        %v984 = vadd.f32 %v937, %v983
        %v985 = vpop.f32.mrf.mxu0
        %v986 = vadd.f32 %v941, %v985
        %v987 = vpop.f32.mrf.mxu0
        %v988 = vpop.f32.mrf.mxu0
        %989 = vdwg.mxu0
        %990 = vmatprep.subr.bf16.mxu0 0
        %991 = vmatpush1.bf16.msra.mxu0 %v932
        %992 = vmatprep.subr.bf16.mxu0 0
        %993 = vmatpush1.bf16.msra.mxu0 %v929
        %994 = vmatprep.subr.bf16.mxu0 0
        %995 = vmatpush1.bf16.msra.mxu0 %v926
        %996 = vmatprep.subr.bf16.mxu0 0
        %997 = vmatpush1.bf16.msra.mxu0 %v923
        %998 = vmatprep.subr.bf16.mxu0 0
        %999 = vmatpush1.bf16.msra.mxu0 %v920
        %1000 = vmatprep.subr.bf16.mxu0 0
        %1001 = vmatpush1.bf16.msra.mxu0 %v917
        %1002 = vmatprep.subr.bf16.mxu0 0
        %1003 = vmatpush1.bf16.msra.mxu0 %v914
        %1004 = vmatprep.subr.bf16.mxu0 0
        %1005 = vmatpush1.bf16.msra.mxu0 %v911
        %1006 = vmatprep.subr.bf16.mxu0 0
        %1007 = vmatpush2.bf16.msra.mxu0 0
        %1008 = vmatprep.subr.bf16.mxu0 0
        %1009 = vmatpush2.bf16.msra.mxu0 0
        %1010 = vmatprep.subr.bf16.mxu0 0
        %1011 = vmatpush2.bf16.msra.mxu0 0
        %1012 = vmatprep.subr.bf16.mxu0 0
        %1013 = vmatpush2.bf16.msra.mxu0 0
        %1014 = vmatprep.subr.bf16.mxu0 0
        %1015 = vmatpush2.bf16.msra.mxu0 0
        %1016 = vmatprep.subr.bf16.mxu0 0
        %1017 = vmatpush2.bf16.msra.mxu0 0
        %1018 = vmatprep.subr.bf16.mxu0 0
        %1019 = vmatpush2.bf16.msra.mxu0 0
        %1020 = vmatprep.subr.bf16.mxu0 0
        %1021 = vmatpush2.bf16.msra.mxu0 0
        %1022 = vmatprep.mubr.bf16.mxu0 0
        %1023 = vmatmul.mubr.bf16.gmra.mxu0 %v908
        %v1024 = vpop.f32.mrf.mxu0
        %v1025 = vadd.f32 %v945, %v1024
        %v1026 = vpop.f32.mrf.mxu0
        %v1027 = vpop.f32.mrf.mxu0
        %v1028 = vpop.f32.mrf.mxu0
        %1029 = vdwg.mxu0
        %v1030 = vpack.c.bf16 %v646, %v646
        %v1031 = vpack.c.bf16 %v861, %v858
        %v1032 = vpack.c.bf16 %v862, %v859
        %v1033 = vpack.c.bf16 %v863, %v860
        %v1034 = vpack.c.bf16 %v867, %v864
        %v1035 = vpack.c.bf16 %v868, %v865
        %v1036 = vpack.c.bf16 %v869, %v866
        %v1037 = vpack.c.bf16 %v873, %v870
        %v1038 = vpack.c.bf16 %v874, %v871
        %v1039 = vpack.c.bf16 %v875, %v872
        %v1040 = vpack.c.bf16 %v879, %v876
        %v1041 = vpack.c.bf16 %v880, %v877
        %v1042 = vpack.c.bf16 %v881, %v878
        %v1043 = vpack.c.bf16 %v885, %v882
        %v1044 = vpack.c.bf16 %v886, %v883
        %v1045 = vpack.c.bf16 %v887, %v884
        %v1046 = vpack.c.bf16 %v891, %v888
        %v1047 = vpack.c.bf16 %v892, %v889
        %v1048 = vpack.c.bf16 %v893, %v890
        %v1049 = vpack.c.bf16 %v897, %v894
        %v1050 = vpack.c.bf16 %v898, %v895
        %v1051 = vpack.c.bf16 %v899, %v896
        %v1052 = vpack.c.bf16 %v903, %v900
        %v1053 = vpack.c.bf16 %v904, %v901
        %v1054 = vpack.c.bf16 %v905, %v902
        %v1056 = vlaneseq
        %v1057 = vshrl.u32 %v1056, 7
        %v1058 = vsub.s32 0, %v1057
        %v1059 = vrot.slane %v907, %v1058
        %v1060 = vlaneseq
        %v1061 = vshrl.u32 %v1060, 7
        %v1062 = vsub.s32 1, %v1061
        %v1063 = vrot.slane %v907, %v1062
        %v1064 = vlaneseq
        %v1065 = vshrl.u32 %v1064, 7
        %v1066 = vsub.s32 2, %v1065
        %v1067 = vrot.slane %v907, %v1066
        %1071 = vmatprep.subr.bf16.mxu0 %v1053
        %1072 = vmatpush1.bf16.msra.mxu0 %v1052
        %1073 = vmatprep.subr.bf16.mxu0 %v1050
        %1074 = vmatpush1.bf16.msra.mxu0 %v1049
        %1075 = vmatprep.subr.bf16.mxu0 %v1047
        %1076 = vmatpush1.bf16.msra.mxu0 %v1046
        %1077 = vmatprep.subr.bf16.mxu0 %v1044
        %1078 = vmatpush1.bf16.msra.mxu0 %v1043
        %1079 = vmatprep.subr.bf16.mxu0 %v1041
        %1080 = vmatpush1.bf16.msra.mxu0 %v1040
        %1081 = vmatprep.subr.bf16.mxu0 %v1038
        %1082 = vmatpush1.bf16.msra.mxu0 %v1037
        %1083 = vmatprep.subr.bf16.mxu0 %v1035
        %1084 = vmatpush1.bf16.msra.mxu0 %v1034
        %1085 = vmatprep.subr.bf16.mxu0 %v1032
        %1086 = vmatpush1.bf16.msra.mxu0 %v1031
        %1087 = vmatprep.subr.bf16.mxu0 0
        %1088 = vmatpush2.bf16.msra.mxu0 0
        %1089 = vmatprep.subr.bf16.mxu0 0
        %1090 = vmatpush2.bf16.msra.mxu0 0
        %1091 = vmatprep.subr.bf16.mxu0 0
        %1092 = vmatpush2.bf16.msra.mxu0 0
        %1093 = vmatprep.subr.bf16.mxu0 0
        %1094 = vmatpush2.bf16.msra.mxu0 0
        %1095 = vmatprep.subr.bf16.mxu0 0
        %1096 = vmatpush2.bf16.msra.mxu0 0
        %1097 = vmatprep.subr.bf16.mxu0 0
        %1098 = vmatpush2.bf16.msra.mxu0 0
        %1099 = vmatprep.subr.bf16.mxu0 0
        %1100 = vmatpush2.bf16.msra.mxu0 0
        %1101 = vmatprep.subr.bf16.mxu0 0
        %1102 = vmatpush2.bf16.msra.mxu0 0
        %1103 = vmatprep.mubr.bf16.mxu0 0
        %1104 = vmatmul.mubr.bf16.gmra.mxu0 %v1030
        %v1105 = vpop.f32.mrf.mxu0
        %v1106 = vadd.f32 %v1059, %v1105
        %v1107 = vpop.f32.mrf.mxu0
        %v1108 = vadd.f32 %v1063, %v1107
        %v1109 = vpop.f32.mrf.mxu0
        %v1110 = vpop.f32.mrf.mxu0
        %1111 = vdwg.mxu0
        %1112 = vmatprep.subr.bf16.mxu0 0
        %1113 = vmatpush1.bf16.msra.mxu0 %v1054
        %1114 = vmatprep.subr.bf16.mxu0 0
        %1115 = vmatpush1.bf16.msra.mxu0 %v1051
        %1116 = vmatprep.subr.bf16.mxu0 0
        %1117 = vmatpush1.bf16.msra.mxu0 %v1048
        %1118 = vmatprep.subr.bf16.mxu0 0
        %1119 = vmatpush1.bf16.msra.mxu0 %v1045
        %1120 = vmatprep.subr.bf16.mxu0 0
        %1121 = vmatpush1.bf16.msra.mxu0 %v1042
        %1122 = vmatprep.subr.bf16.mxu0 0
        %1123 = vmatpush1.bf16.msra.mxu0 %v1039
        %1124 = vmatprep.subr.bf16.mxu0 0
        %1125 = vmatpush1.bf16.msra.mxu0 %v1036
        %1126 = vmatprep.subr.bf16.mxu0 0
        %1127 = vmatpush1.bf16.msra.mxu0 %v1033
        %1128 = vmatprep.subr.bf16.mxu0 0
        %1129 = vmatpush2.bf16.msra.mxu0 0
        %1130 = vmatprep.subr.bf16.mxu0 0
        %1131 = vmatpush2.bf16.msra.mxu0 0
        %1132 = vmatprep.subr.bf16.mxu0 0
        %1133 = vmatpush2.bf16.msra.mxu0 0
        %1134 = vmatprep.subr.bf16.mxu0 0
        %1135 = vmatpush2.bf16.msra.mxu0 0
        %1136 = vmatprep.subr.bf16.mxu0 0
        %1137 = vmatpush2.bf16.msra.mxu0 0
        %1138 = vmatprep.subr.bf16.mxu0 0
        %1139 = vmatpush2.bf16.msra.mxu0 0
        %1140 = vmatprep.subr.bf16.mxu0 0
        %1141 = vmatpush2.bf16.msra.mxu0 0
        %1142 = vmatprep.subr.bf16.mxu0 0
        %1143 = vmatpush2.bf16.msra.mxu0 0
        %1144 = vmatprep.mubr.bf16.mxu0 0
        %1145 = vmatmul.mubr.bf16.gmra.mxu0 %v1030
        %v1146 = vpop.f32.mrf.mxu0
        %v1147 = vadd.f32 %v1067, %v1146
        %v1148 = vpop.f32.mrf.mxu0
        %v1149 = vpop.f32.mrf.mxu0
        %v1150 = vpop.f32.mrf.mxu0
        %1151 = vdwg.mxu0
        %v1152 = vadd.f32 %v984, %v1106
        %v1153 = vxor.u32 %v1152, 2147483648
        %v1154 = vmul.f32 %v1153, 1.442695
        %v1155 = vpow.pop %v1154
        %v1156 = vadd.f32 %v1155, 1.0
        %v1157 = vrcp.pop %v1156
        %v1158 = vmul.f32 1.0, %v1157
        %v1159 = vadd.f32 %v986, %v1108
        %v1160 = vxor.u32 %v1159, 2147483648
        %v1161 = vmul.f32 %v1160, 1.442695
        %v1162 = vpow.pop %v1161
        %v1163 = vadd.f32 %v1162, 1.0
        %v1164 = vrcp.pop %v1163
        %v1165 = vmul.f32 1.0, %v1164
        %v1166 = vmul.f32 %v1158, %v1147
        %v1167 = vadd.f32 %v1025, %v1166
        %v1168 = vtanh.pop %v1167
        %v1169 = vsub.f32 1.0, %v1165
        %v1170 = vmul.f32 %v1169, %v1168
        %v1171 = vmul.f32 %v1165, %v646
        %v1172 = vadd.f32 %v1170, %v1171
        %v1173 = vmax.f32 %v1172, 0.0
        %s1174 = scalar_lea.vmem %s11, %s642
        %1175 = vst [vmem:[%s1174] sm:$0xff] %v1173
        %p1176 = scmp.eq.s32.totalorder %s31, 1
        %p1177 = scmp.lt.s32.totalorder %s30, 1
        %p1178 = pnand %p1176, %p1177
        %p1179 = pneg %p1178
        // Predicated region
        $region81: #{attentive_fp_dense_forward.4} parent=63 // pred_check
          _
        $region82: #{attentive_fp_dense_forward.4} parent=63 // pred_check_branch
          %1181 = sbr.rel (%p1178) target = $region84
        $region83: #{attentive_fp_dense_forward.4} parent=63 // pred_region
          %v1182 = vld [vmem:[%s11] sm:$0xff]
          %v1183 = vld [vmem:[%s11 + $0x8] sm:$0xff]
          %1184 = vst [vmem:[#allocation2] sm:$0xff] %v1182
          %1185 = vst [vmem:[#allocation2 + $0x8] sm:$0xff] %v1183
        $region84: #{attentive_fp_dense_forward.4} parent=63 // pred_fallthru
          _
        // Predicated region
        $region85: #{attentive_fp_dense_forward.4} parent=63 // pred_check
          %p1186 = pneg %p327
        $region86: #{attentive_fp_dense_forward.4} parent=63 // pred_check_branch
          %1188 = sbr.rel (%p1186) target = $region88
        $region87: #{attentive_fp_dense_forward.4} parent=63 // pred_region
          _
        $region88: #{attentive_fp_dense_forward.4} parent=63 // pred_fallthru
          _
        // Predicated region
        $region89: #{attentive_fp_dense_forward.4} parent=63 // pred_check
          %p1189 = pneg %p327
        $region90: #{attentive_fp_dense_forward.4} parent=63 // pred_check_branch
          %1191 = sbr.rel (%p1189) target = $region92
        $region91: #{attentive_fp_dense_forward.4} parent=63 // pred_region
          _
        $region92: #{attentive_fp_dense_forward.4} parent=63 // pred_fallthru
          _
      $region64: #{attentive_fp_dense_forward.4} parent=5 // pred_fallthru
        _
      %p1192 = scmp.le.s32.totalorder 2, %s21
      // Predicated region
      $region93: #{attentive_fp_dense_forward.4} parent=5 // pred_check
        %p1193 = pneg %p1192
      $region94: #{attentive_fp_dense_forward.4} parent=5 // pred_check_branch
        %1195 = sbr.rel (%p1193) target = $region96
      $region95: #{attentive_fp_dense_forward.4} parent=5 // pred_region
        %s1196 = ssub.s32 %s21, 2
      $region96: #{attentive_fp_dense_forward.4} parent=5 // pred_fallthru
        _
    $region6: #{attentive_fp_dense_forward.4} parent=1 // loop_footer
      %s25 = sadd.s32 1, %s21
    $region7: #{attentive_fp_dense_forward.4} parent=1 // loop_footer_branch
      %20 = sbr.rel target = $region3
    $region8: #{attentive_fp_dense_forward.4} parent=1 // loop_exit
      _
    %1197 = vsyncpa [#allocation5], 1
    %s1198 = scalar_lea.sflag [#allocation5], 1
    %1199 = vsyncpa %s1198, 1
    %1200 = vsyncpa [#allocation6], 1
    %s1201 = scalar_lea.sflag [#allocation6], 1
    %1202 = vsyncpa %s1201, 1

// kernel: attentive_fp_dense_forward.3
$region0: #{attentive_fp_dense_forward.3}
  #allocation0 [shape = 'u32[]', space=smem, size = 0x4, offset = 0x4, fixed_abs, tag = 'smem constant byte address 0x4 - core index']
  #allocation1 [shape = 'u32[144,128]{1,0:T(1,128)}', space=vmem, size = 0x12000, scoped, tag = 'internal scratch']
  #allocation2 [shape = 'f32[1,1]{1,0:T(1,128)S(6)}', space=smem, size = 0x200, scoped, tag = 'scoped memory for attentive_fp_dense_forward.3']
  %s0 = inlined_call_operand.vmem [shape: f32[16,8], index: 0, kind: input, shape index: {}, may-alias: {0,1}]
  %s1 = inlined_call_operand.vmem [shape: f32[16,8], index: 1, kind: input, shape index: {}, may-alias: {0,1}]
  %s2 = inlined_call_operand.vmem [shape: bf16[256,4], index: 2, kind: input, shape index: {}]
  %s3 = inlined_call_operand.vmem [shape: f32[16,16], index: 3, kind: input, shape index: {}]
  %s4 = inlined_call_operand.vmem [shape: f32[8,128], index: 4, kind: input, shape index: {}]
  %s5 = inlined_call_operand.vmem [shape: f32[1,128], index: 5, kind: input, shape index: {}]
  %s6 = inlined_call_operand.vmem [shape: f32[8,128], index: 6, kind: input, shape index: {}]
  %s7 = inlined_call_operand.vmem [shape: f32[4,128], index: 7, kind: input, shape index: {}]
  %s8 = inlined_call_operand.vmem [shape: f32[1,128], index: 8, kind: input, shape index: {}]
  %s9 = inlined_call_operand.vmem [shape: f32[1,128], index: 9, kind: input, shape index: {}]
  %s10 = inlined_call_operand.vmem [shape: f32[1,128], index: 10, kind: input, shape index: {}]
  %s11 = inlined_call_operand.vmem [shape: f32[128,128], index: 11, kind: input, shape index: {}]
  %s12 = inlined_call_operand.vmem [shape: f32[1,128], index: 12, kind: input, shape index: {}]
  %s13 = inlined_call_operand.hbm [shape: f32[128,384], index: 13, kind: input, shape index: {}]
  %s14 = inlined_call_operand.hbm [shape: f32[128,384], index: 14, kind: input, shape index: {}]
  %s15 = inlined_call_operand.vmem [shape: f32[1,384], index: 15, kind: input, shape index: {}]
  %s16 = inlined_call_operand.vmem [shape: f32[1,384], index: 16, kind: input, shape index: {}]
  %s17 = inlined_call_operand.<no memory space> [shape: f32[1,1], index: 17, kind: input, shape index: {}]
  %s18 = inlined_call_operand.vmem [shape: f32[16,128], index: 18, kind: output, shape index: {}]
  %s19 = sld [smem:[#allocation0]]
  $region113: #{attentive_fp_dense_forward.3} parent=0
    _
  %s21 = ssub.s32 1, %s19
  %s22 = scalar_select 0, %s21, %s19
  %23 = sst [smem:[#allocation2]] %s17
  $region1: #{attentive_fp_dense_forward.3} parent=0
    #allocation3 [shape = 'u8[196608]{0}', space=vmem, size = 0x30000, scoped, tag = 'input window, operand 13, single buffered']
    #allocation4 [shape = 's32[2]{0}', space=sflag, size = 0x8, scoped, tag = 'scoped memory for attentive_fp_dense_forward.3']
    #allocation5 [shape = 'u8[196608]{0}', space=vmem, size = 0x30000, scoped, tag = 'input window, operand 14, single buffered']
    #allocation6 [shape = 's32[1]{0}', space=sflag, size = 0x4, scoped, tag = 'scoped memory for attentive_fp_dense_forward.3']
    %24 = vsyncpa [#allocation4], 0
    %25 = vsyncpa [#allocation6], 0
    loop: start=0, step=1, limit=4
    $region2: #{attentive_fp_dense_forward.3} parent=1 // loop_pre_header
      _
    $region3: #{attentive_fp_dense_forward.3} parent=1 // loop_header
      %s27 = sphi 0, %s31
      %p28 = scmp.ge.s32.totalorder %s27, 4
      %s35 = sphi 0, %s35
      %s37 = sphi 0, %s35
      %s38 = sphi 0, %s37
      %s52 = sphi 0, %s38
      %s58 = sphi 0, %s60
      %s61 = sphi 0, %s58
      %s62 = sphi 0, %s61
      %s78 = sphi 0, %s62
      %s84 = sphi 0, %s86
      %s87 = sphi 0, %s84
      %s88 = sphi 0, %s87
      %s104 = sphi 0, %s88
      %s110 = sphi 0, %s112
      %s113 = sphi 0, %s110
      %s114 = sphi 0, %s113
      %s130 = sphi 0, %s114
      %s134 = sphi 0, %s134
      %s136 = sphi 0, %s134
      %s137 = sphi 0, %s136
      %s151 = sphi 0, %s137
      %s155 = sphi 0, %s155
      %s157 = sphi 0, %s155
      %s158 = sphi 0, %s157
      %s172 = sphi 0, %s158
      %s176 = sphi 0, %s176
      %s178 = sphi 0, %s176
      %s179 = sphi 0, %s178
      %s193 = sphi 0, %s179
      %s197 = sphi 0, %s197
      %s199 = sphi 0, %s197
      %s200 = sphi 0, %s199
      %s214 = sphi 0, %s200
      %s218 = sphi 0, %s218
      %s220 = sphi 0, %s218
      %s221 = sphi 0, %s220
      %s235 = sphi 0, %s221
      %s239 = sphi 0, %s239
      %s241 = sphi 0, %s239
      %s242 = sphi 0, %s241
      %s256 = sphi 0, %s242
      %s260 = sphi 0, %s260
      %s262 = sphi 0, %s260
      %s263 = sphi 0, %s262
      %s277 = sphi 0, %s263
      %s281 = sphi 0, %s281
      %s283 = sphi 0, %s281
      %s284 = sphi 0, %s283
      %s298 = sphi 0, %s284
      %s302 = sphi 0, %s302
      %s304 = sphi 0, %s302
      %s305 = sphi 0, %s304
      %s319 = sphi 0, %s305
      %s323 = sphi 0, %s323
      %s325 = sphi 0, %s323
      %s326 = sphi 0, %s325
      %s340 = sphi 0, %s326
      %s344 = sphi 0, %s344
      %s346 = sphi 0, %s344
      %s347 = sphi 0, %s346
      %s361 = sphi 0, %s347
      %s365 = sphi 0, %s365
      %s367 = sphi 0, %s365
      %s368 = sphi 0, %s367
      %s382 = sphi 0, %s368
      %s386 = sphi 0, %s386
      %s388 = sphi 0, %s386
      %s389 = sphi 0, %s388
      %s403 = sphi 0, %s389
      %s407 = sphi 0, %s407
      %s409 = sphi 0, %s407
      %s410 = sphi 0, %s409
      %s424 = sphi 0, %s410
      %s430 = sphi 0, %s432
      %s433 = sphi 0, %s430
      %s434 = sphi 0, %s433
      %s450 = sphi 0, %s434
    $region4: #{attentive_fp_dense_forward.3} parent=1 // loop_header_branch
      %30 = sbr.rel (%p28) target = $region8
    $region5: #{attentive_fp_dense_forward.3} parent=1 // loop_body
      %s32 = ssub.s32 %s27, 1
      %s33 = ssub.s32 %s27, 2
      %s34 = sadd.s32 %s27, 1
      %s36 = sadd.s32 %s35, 1
      %p39 = scmp.eq.s32.totalorder %s27, 1
      %p40 = scmp.ne.s32.totalorder %s35, %s37
      %p41 = scmp.eq.s32.totalorder %s27, 0
      %p42 = por %p40, %p41
      %p43 = scmp.ne.s32.totalorder %s35, %s37
      %p44 = scmp.eq.s32.totalorder %s32, 1
      %p45 = por %p43, %p44
      %p46 = scmp.ne.s32.totalorder %s37, %s38
      %p47 = scmp.eq.s32.totalorder %s32, 0
      %p48 = por %p46, %p47
      %p49 = scmp.ne.s32.totalorder %s37, %s38
      %p50 = scmp.eq.s32.totalorder %s33, 1
      %p51 = por %p49, %p50
      %p53 = scmp.ne.s32.totalorder %s38, %s52
      %p54 = scmp.eq.s32.totalorder %s33, 0
      %p55 = por %p53, %p54
      %s56 = ssub.s32 %s27, %s34
      %p57 = scmp.eq.s32.totalorder %s56, 0
      %s59 = sadd.s32 %s58, 1
      %s60 = scalar_select %p57, %s58, %s59
      %p63 = pneg %p57
      %p64 = scmp.eq.s32.totalorder %s27, 1
      %p65 = por %p63, %p64
      %p66 = scmp.ne.s32.totalorder %s58, %s61
      %p67 = scmp.eq.s32.totalorder %s27, 0
      %p68 = por %p66, %p67
      %p69 = scmp.ne.s32.totalorder %s58, %s61
      %p70 = scmp.eq.s32.totalorder %s32, 1
      %p71 = por %p69, %p70
      %p72 = scmp.ne.s32.totalorder %s61, %s62
      %p73 = scmp.eq.s32.totalorder %s32, 0
      %p74 = por %p72, %p73
      %p75 = scmp.ne.s32.totalorder %s61, %s62
      %p76 = scmp.eq.s32.totalorder %s33, 1
      %p77 = por %p75, %p76
      %p79 = scmp.ne.s32.totalorder %s62, %s78
      %p80 = scmp.eq.s32.totalorder %s33, 0
      %p81 = por %p79, %p80
      %s82 = ssub.s32 %s27, %s34
      %p83 = scmp.eq.s32.totalorder %s82, 0
      %s85 = sadd.s32 %s84, 1
      %s86 = scalar_select %p83, %s84, %s85
      %p89 = pneg %p83
      %p90 = scmp.eq.s32.totalorder %s27, 1
      %p91 = por %p89, %p90
      %p92 = scmp.ne.s32.totalorder %s84, %s87
      %p93 = scmp.eq.s32.totalorder %s27, 0
      %p94 = por %p92, %p93
      %p95 = scmp.ne.s32.totalorder %s84, %s87
      %p96 = scmp.eq.s32.totalorder %s32, 1
      %p97 = por %p95, %p96
      %p98 = scmp.ne.s32.totalorder %s87, %s88
      %p99 = scmp.eq.s32.totalorder %s32, 0
      %p100 = por %p98, %p99
      %p101 = scmp.ne.s32.totalorder %s87, %s88
      %p102 = scmp.eq.s32.totalorder %s33, 1
      %p103 = por %p101, %p102
      %p105 = scmp.ne.s32.totalorder %s88, %s104
      %p106 = scmp.eq.s32.totalorder %s33, 0
      %p107 = por %p105, %p106
      %s108 = ssub.s32 %s27, %s34
      %p109 = scmp.eq.s32.totalorder %s108, 0
      %s111 = sadd.s32 %s110, 1
      %s112 = scalar_select %p109, %s110, %s111
      %p115 = pneg %p109
      %p116 = scmp.eq.s32.totalorder %s27, 1
      %p117 = por %p115, %p116
      %p118 = scmp.ne.s32.totalorder %s110, %s113
      %p119 = scmp.eq.s32.totalorder %s27, 0
      %p120 = por %p118, %p119
      %p121 = scmp.ne.s32.totalorder %s110, %s113
      %p122 = scmp.eq.s32.totalorder %s32, 1
      %p123 = por %p121, %p122
      %p124 = scmp.ne.s32.totalorder %s113, %s114
      %p125 = scmp.eq.s32.totalorder %s32, 0
      %p126 = por %p124, %p125
      %p127 = scmp.ne.s32.totalorder %s113, %s114
      %p128 = scmp.eq.s32.totalorder %s33, 1
      %p129 = por %p127, %p128
      %p131 = scmp.ne.s32.totalorder %s114, %s130
      %p132 = scmp.eq.s32.totalorder %s33, 0
      %p133 = por %p131, %p132
      %s135 = sadd.s32 %s134, 1
      %p138 = scmp.eq.s32.totalorder %s27, 1
      %p139 = scmp.ne.s32.totalorder %s134, %s136
      %p140 = scmp.eq.s32.totalorder %s27, 0
      %p141 = por %p139, %p140
      %p142 = scmp.ne.s32.totalorder %s134, %s136
      %p143 = scmp.eq.s32.totalorder %s32, 1
      %p144 = por %p142, %p143
      %p145 = scmp.ne.s32.totalorder %s136, %s137
      %p146 = scmp.eq.s32.totalorder %s32, 0
      %p147 = por %p145, %p146
      %p148 = scmp.ne.s32.totalorder %s136, %s137
      %p149 = scmp.eq.s32.totalorder %s33, 1
      %p150 = por %p148, %p149
      %p152 = scmp.ne.s32.totalorder %s137, %s151
      %p153 = scmp.eq.s32.totalorder %s33, 0
      %p154 = por %p152, %p153
      %s156 = sadd.s32 %s155, 1
      %p159 = scmp.eq.s32.totalorder %s27, 1
      %p160 = scmp.ne.s32.totalorder %s155, %s157
      %p161 = scmp.eq.s32.totalorder %s27, 0
      %p162 = por %p160, %p161
      %p163 = scmp.ne.s32.totalorder %s155, %s157
      %p164 = scmp.eq.s32.totalorder %s32, 1
      %p165 = por %p163, %p164
      %p166 = scmp.ne.s32.totalorder %s157, %s158
      %p167 = scmp.eq.s32.totalorder %s32, 0
      %p168 = por %p166, %p167
      %p169 = scmp.ne.s32.totalorder %s157, %s158
      %p170 = scmp.eq.s32.totalorder %s33, 1
      %p171 = por %p169, %p170
      %p173 = scmp.ne.s32.totalorder %s158, %s172
      %p174 = scmp.eq.s32.totalorder %s33, 0
      %p175 = por %p173, %p174
      %s177 = sadd.s32 %s176, 1
      %p180 = scmp.eq.s32.totalorder %s27, 1
      %p181 = scmp.ne.s32.totalorder %s176, %s178
      %p182 = scmp.eq.s32.totalorder %s27, 0
      %p183 = por %p181, %p182
      %p184 = scmp.ne.s32.totalorder %s176, %s178
      %p185 = scmp.eq.s32.totalorder %s32, 1
      %p186 = por %p184, %p185
      %p187 = scmp.ne.s32.totalorder %s178, %s179
      %p188 = scmp.eq.s32.totalorder %s32, 0
      %p189 = por %p187, %p188
      %p190 = scmp.ne.s32.totalorder %s178, %s179
      %p191 = scmp.eq.s32.totalorder %s33, 1
      %p192 = por %p190, %p191
      %p194 = scmp.ne.s32.totalorder %s179, %s193
      %p195 = scmp.eq.s32.totalorder %s33, 0
      %p196 = por %p194, %p195
      %s198 = sadd.s32 %s197, 1
      %p201 = scmp.eq.s32.totalorder %s27, 1
      %p202 = scmp.ne.s32.totalorder %s197, %s199
      %p203 = scmp.eq.s32.totalorder %s27, 0
      %p204 = por %p202, %p203
      %p205 = scmp.ne.s32.totalorder %s197, %s199
      %p206 = scmp.eq.s32.totalorder %s32, 1
      %p207 = por %p205, %p206
      %p208 = scmp.ne.s32.totalorder %s199, %s200
      %p209 = scmp.eq.s32.totalorder %s32, 0
      %p210 = por %p208, %p209
      %p211 = scmp.ne.s32.totalorder %s199, %s200
      %p212 = scmp.eq.s32.totalorder %s33, 1
      %p213 = por %p211, %p212
      %p215 = scmp.ne.s32.totalorder %s200, %s214
      %p216 = scmp.eq.s32.totalorder %s33, 0
      %p217 = por %p215, %p216
      %s219 = sadd.s32 %s218, 1
      %p222 = scmp.eq.s32.totalorder %s27, 1
      %p223 = scmp.ne.s32.totalorder %s218, %s220
      %p224 = scmp.eq.s32.totalorder %s27, 0
      %p225 = por %p223, %p224
      %p226 = scmp.ne.s32.totalorder %s218, %s220
      %p227 = scmp.eq.s32.totalorder %s32, 1
      %p228 = por %p226, %p227
      %p229 = scmp.ne.s32.totalorder %s220, %s221
      %p230 = scmp.eq.s32.totalorder %s32, 0
      %p231 = por %p229, %p230
      %p232 = scmp.ne.s32.totalorder %s220, %s221
      %p233 = scmp.eq.s32.totalorder %s33, 1
      %p234 = por %p232, %p233
      %p236 = scmp.ne.s32.totalorder %s221, %s235
      %p237 = scmp.eq.s32.totalorder %s33, 0
      %p238 = por %p236, %p237
      %s240 = sadd.s32 %s239, 1
      %p243 = scmp.eq.s32.totalorder %s27, 1
      %p244 = scmp.ne.s32.totalorder %s239, %s241
      %p245 = scmp.eq.s32.totalorder %s27, 0
      %p246 = por %p244, %p245
      %p247 = scmp.ne.s32.totalorder %s239, %s241
      %p248 = scmp.eq.s32.totalorder %s32, 1
      %p249 = por %p247, %p248
      %p250 = scmp.ne.s32.totalorder %s241, %s242
      %p251 = scmp.eq.s32.totalorder %s32, 0
      %p252 = por %p250, %p251
      %p253 = scmp.ne.s32.totalorder %s241, %s242
      %p254 = scmp.eq.s32.totalorder %s33, 1
      %p255 = por %p253, %p254
      %p257 = scmp.ne.s32.totalorder %s242, %s256
      %p258 = scmp.eq.s32.totalorder %s33, 0
      %p259 = por %p257, %p258
      %s261 = sadd.s32 %s260, 1
      %p264 = scmp.eq.s32.totalorder %s27, 1
      %p265 = scmp.ne.s32.totalorder %s260, %s262
      %p266 = scmp.eq.s32.totalorder %s27, 0
      %p267 = por %p265, %p266
      %p268 = scmp.ne.s32.totalorder %s260, %s262
      %p269 = scmp.eq.s32.totalorder %s32, 1
      %p270 = por %p268, %p269
      %p271 = scmp.ne.s32.totalorder %s262, %s263
      %p272 = scmp.eq.s32.totalorder %s32, 0
      %p273 = por %p271, %p272
      %p274 = scmp.ne.s32.totalorder %s262, %s263
      %p275 = scmp.eq.s32.totalorder %s33, 1
      %p276 = por %p274, %p275
      %p278 = scmp.ne.s32.totalorder %s263, %s277
      %p279 = scmp.eq.s32.totalorder %s33, 0
      %p280 = por %p278, %p279
      %s282 = sadd.s32 %s281, 1
      %p285 = scmp.eq.s32.totalorder %s27, 1
      %p286 = scmp.ne.s32.totalorder %s281, %s283
      %p287 = scmp.eq.s32.totalorder %s27, 0
      %p288 = por %p286, %p287
      %p289 = scmp.ne.s32.totalorder %s281, %s283
      %p290 = scmp.eq.s32.totalorder %s32, 1
      %p291 = por %p289, %p290
      %p292 = scmp.ne.s32.totalorder %s283, %s284
      %p293 = scmp.eq.s32.totalorder %s32, 0
      %p294 = por %p292, %p293
      %p295 = scmp.ne.s32.totalorder %s283, %s284
      %p296 = scmp.eq.s32.totalorder %s33, 1
      %p297 = por %p295, %p296
      %p299 = scmp.ne.s32.totalorder %s284, %s298
      %p300 = scmp.eq.s32.totalorder %s33, 0
      %p301 = por %p299, %p300
      %s303 = sadd.s32 %s302, 1
      %p306 = scmp.eq.s32.totalorder %s27, 1
      %p307 = scmp.ne.s32.totalorder %s302, %s304
      %p308 = scmp.eq.s32.totalorder %s27, 0
      %p309 = por %p307, %p308
      %p310 = scmp.ne.s32.totalorder %s302, %s304
      %p311 = scmp.eq.s32.totalorder %s32, 1
      %p312 = por %p310, %p311
      %p313 = scmp.ne.s32.totalorder %s304, %s305
      %p314 = scmp.eq.s32.totalorder %s32, 0
      %p315 = por %p313, %p314
      %p316 = scmp.ne.s32.totalorder %s304, %s305
      %p317 = scmp.eq.s32.totalorder %s33, 1
      %p318 = por %p316, %p317
      %p320 = scmp.ne.s32.totalorder %s305, %s319
      %p321 = scmp.eq.s32.totalorder %s33, 0
      %p322 = por %p320, %p321
      %s324 = sadd.s32 %s323, 1
      %p327 = scmp.eq.s32.totalorder %s27, 1
      %p328 = scmp.ne.s32.totalorder %s323, %s325
      %p329 = scmp.eq.s32.totalorder %s27, 0
      %p330 = por %p328, %p329
      %p331 = scmp.ne.s32.totalorder %s323, %s325
      %p332 = scmp.eq.s32.totalorder %s32, 1
      %p333 = por %p331, %p332
      %p334 = scmp.ne.s32.totalorder %s325, %s326
      %p335 = scmp.eq.s32.totalorder %s32, 0
      %p336 = por %p334, %p335
      %p337 = scmp.ne.s32.totalorder %s325, %s326
      %p338 = scmp.eq.s32.totalorder %s33, 1
      %p339 = por %p337, %p338
      %p341 = scmp.ne.s32.totalorder %s326, %s340
      %p342 = scmp.eq.s32.totalorder %s33, 0
      %p343 = por %p341, %p342
      %s345 = sadd.s32 %s344, 1
      %p348 = scmp.eq.s32.totalorder %s27, 1
      %p349 = scmp.ne.s32.totalorder %s344, %s346
      %p350 = scmp.eq.s32.totalorder %s27, 0
      %p351 = por %p349, %p350
      %p352 = scmp.ne.s32.totalorder %s344, %s346
      %p353 = scmp.eq.s32.totalorder %s32, 1
      %p354 = por %p352, %p353
      %p355 = scmp.ne.s32.totalorder %s346, %s347
      %p356 = scmp.eq.s32.totalorder %s32, 0
      %p357 = por %p355, %p356
      %p358 = scmp.ne.s32.totalorder %s346, %s347
      %p359 = scmp.eq.s32.totalorder %s33, 1
      %p360 = por %p358, %p359
      %p362 = scmp.ne.s32.totalorder %s347, %s361
      %p363 = scmp.eq.s32.totalorder %s33, 0
      %p364 = por %p362, %p363
      %s366 = sadd.s32 %s365, 1
      %p369 = scmp.eq.s32.totalorder %s27, 1
      %p370 = scmp.ne.s32.totalorder %s365, %s367
      %p371 = scmp.eq.s32.totalorder %s27, 0
      %p372 = por %p370, %p371
      %p373 = scmp.ne.s32.totalorder %s365, %s367
      %p374 = scmp.eq.s32.totalorder %s32, 1
      %p375 = por %p373, %p374
      %p376 = scmp.ne.s32.totalorder %s367, %s368
      %p377 = scmp.eq.s32.totalorder %s32, 0
      %p378 = por %p376, %p377
      %p379 = scmp.ne.s32.totalorder %s367, %s368
      %p380 = scmp.eq.s32.totalorder %s33, 1
      %p381 = por %p379, %p380
      %p383 = scmp.ne.s32.totalorder %s368, %s382
      %p384 = scmp.eq.s32.totalorder %s33, 0
      %p385 = por %p383, %p384
      %s387 = sadd.s32 %s386, 1
      %p390 = scmp.eq.s32.totalorder %s27, 1
      %p391 = scmp.ne.s32.totalorder %s386, %s388
      %p392 = scmp.eq.s32.totalorder %s27, 0
      %p393 = por %p391, %p392
      %p394 = scmp.ne.s32.totalorder %s386, %s388
      %p395 = scmp.eq.s32.totalorder %s32, 1
      %p396 = por %p394, %p395
      %p397 = scmp.ne.s32.totalorder %s388, %s389
      %p398 = scmp.eq.s32.totalorder %s32, 0
      %p399 = por %p397, %p398
      %p400 = scmp.ne.s32.totalorder %s388, %s389
      %p401 = scmp.eq.s32.totalorder %s33, 1
      %p402 = por %p400, %p401
      %p404 = scmp.ne.s32.totalorder %s389, %s403
      %p405 = scmp.eq.s32.totalorder %s33, 0
      %p406 = por %p404, %p405
      %s408 = sadd.s32 %s407, 1
      %p411 = scmp.eq.s32.totalorder %s27, 1
      %p412 = scmp.ne.s32.totalorder %s407, %s409
      %p413 = scmp.eq.s32.totalorder %s27, 0
      %p414 = por %p412, %p413
      %p415 = scmp.ne.s32.totalorder %s407, %s409
      %p416 = scmp.eq.s32.totalorder %s32, 1
      %p417 = por %p415, %p416
      %p418 = scmp.ne.s32.totalorder %s409, %s410
      %p419 = scmp.eq.s32.totalorder %s32, 0
      %p420 = por %p418, %p419
      %p421 = scmp.ne.s32.totalorder %s409, %s410
      %p422 = scmp.eq.s32.totalorder %s33, 1
      %p423 = por %p421, %p422
      %p425 = scmp.ne.s32.totalorder %s410, %s424
      %p426 = scmp.eq.s32.totalorder %s33, 0
      %p427 = por %p425, %p426
      %s428 = ssub.s32 %s27, %s34
      %p429 = scmp.eq.s32.totalorder %s428, 0
      %s431 = sadd.s32 %s430, 1
      %s432 = scalar_select %p429, %s430, %s431
      %p435 = pneg %p429
      %p436 = scmp.eq.s32.totalorder %s27, 1
      %p437 = por %p435, %p436
      %p438 = scmp.ne.s32.totalorder %s430, %s433
      %p439 = scmp.eq.s32.totalorder %s27, 0
      %p440 = por %p438, %p439
      %p441 = scmp.ne.s32.totalorder %s430, %s433
      %p442 = scmp.eq.s32.totalorder %s32, 1
      %p443 = por %p441, %p442
      %p444 = scmp.ne.s32.totalorder %s433, %s434
      %p445 = scmp.eq.s32.totalorder %s32, 0
      %p446 = por %p444, %p445
      %p447 = scmp.ne.s32.totalorder %s433, %s434
      %p448 = scmp.eq.s32.totalorder %s33, 1
      %p449 = por %p447, %p448
      %p451 = scmp.ne.s32.totalorder %s434, %s450
      %p452 = scmp.eq.s32.totalorder %s33, 0
      %p453 = por %p451, %p452
      %p454 = scmp.le.s32.totalorder 1, %s27
      %p455 = scmp.lt.s32.totalorder %s27, 3
      %p456 = pnand %p454, %p455
      %p457 = pneg %p456
      // Predicated region
      $region9: #{attentive_fp_dense_forward.3} parent=5 // pred_check
        _
      $region10: #{attentive_fp_dense_forward.3} parent=5 // pred_check_branch
        %459 = sbr.rel (%p456) target = $region12
      $region11: #{attentive_fp_dense_forward.3} parent=5 // pred_region
        %s460 = ssub.s32 %s27, 1
        // Predicated region
        $region13: #{attentive_fp_dense_forward.3} parent=11 // pred_check
          %p461 = pneg %p48
        $region14: #{attentive_fp_dense_forward.3} parent=11 // pred_check_branch
          %463 = sbr.rel (%p461) target = $region16
        $region15: #{attentive_fp_dense_forward.3} parent=11 // pred_region
          _
        $region16: #{attentive_fp_dense_forward.3} parent=11 // pred_fallthru
          _
        // Predicated region
        $region17: #{attentive_fp_dense_forward.3} parent=11 // pred_check
          %p464 = pneg %p147
        $region18: #{attentive_fp_dense_forward.3} parent=11 // pred_check_branch
          %466 = sbr.rel (%p464) target = $region20
        $region19: #{attentive_fp_dense_forward.3} parent=11 // pred_region
          _
        $region20: #{attentive_fp_dense_forward.3} parent=11 // pred_fallthru
          _
        // Predicated region
        $region21: #{attentive_fp_dense_forward.3} parent=11 // pred_check
          %p467 = pneg %p168
        $region22: #{attentive_fp_dense_forward.3} parent=11 // pred_check_branch
          %469 = sbr.rel (%p467) target = $region24
        $region23: #{attentive_fp_dense_forward.3} parent=11 // pred_region
          _
        $region24: #{attentive_fp_dense_forward.3} parent=11 // pred_fallthru
          _
        // Predicated region
        $region25: #{attentive_fp_dense_forward.3} parent=11 // pred_check
          %p470 = pneg %p189
        $region26: #{attentive_fp_dense_forward.3} parent=11 // pred_check_branch
          %472 = sbr.rel (%p470) target = $region28
        $region27: #{attentive_fp_dense_forward.3} parent=11 // pred_region
          _
        $region28: #{attentive_fp_dense_forward.3} parent=11 // pred_fallthru
          _
        // Predicated region
        $region29: #{attentive_fp_dense_forward.3} parent=11 // pred_check
          %p473 = pneg %p210
        $region30: #{attentive_fp_dense_forward.3} parent=11 // pred_check_branch
          %475 = sbr.rel (%p473) target = $region32
        $region31: #{attentive_fp_dense_forward.3} parent=11 // pred_region
          _
        $region32: #{attentive_fp_dense_forward.3} parent=11 // pred_fallthru
          _
        // Predicated region
        $region33: #{attentive_fp_dense_forward.3} parent=11 // pred_check
          %p476 = pneg %p231
        $region34: #{attentive_fp_dense_forward.3} parent=11 // pred_check_branch
          %478 = sbr.rel (%p476) target = $region36
        $region35: #{attentive_fp_dense_forward.3} parent=11 // pred_region
          _
        $region36: #{attentive_fp_dense_forward.3} parent=11 // pred_fallthru
          _
        // Predicated region
        $region37: #{attentive_fp_dense_forward.3} parent=11 // pred_check
          %p479 = pneg %p252
        $region38: #{attentive_fp_dense_forward.3} parent=11 // pred_check_branch
          %481 = sbr.rel (%p479) target = $region40
        $region39: #{attentive_fp_dense_forward.3} parent=11 // pred_region
          _
        $region40: #{attentive_fp_dense_forward.3} parent=11 // pred_fallthru
          _
        // Predicated region
        $region41: #{attentive_fp_dense_forward.3} parent=11 // pred_check
          %p482 = pneg %p273
        $region42: #{attentive_fp_dense_forward.3} parent=11 // pred_check_branch
          %484 = sbr.rel (%p482) target = $region44
        $region43: #{attentive_fp_dense_forward.3} parent=11 // pred_region
          _
        $region44: #{attentive_fp_dense_forward.3} parent=11 // pred_fallthru
          _
        // Predicated region
        $region45: #{attentive_fp_dense_forward.3} parent=11 // pred_check
          %p485 = pneg %p294
        $region46: #{attentive_fp_dense_forward.3} parent=11 // pred_check_branch
          %487 = sbr.rel (%p485) target = $region48
        $region47: #{attentive_fp_dense_forward.3} parent=11 // pred_region
          _
        $region48: #{attentive_fp_dense_forward.3} parent=11 // pred_fallthru
          _
        // Predicated region
        $region49: #{attentive_fp_dense_forward.3} parent=11 // pred_check
          %p488 = pneg %p315
        $region50: #{attentive_fp_dense_forward.3} parent=11 // pred_check_branch
          %490 = sbr.rel (%p488) target = $region52
        $region51: #{attentive_fp_dense_forward.3} parent=11 // pred_region
          _
        $region52: #{attentive_fp_dense_forward.3} parent=11 // pred_fallthru
          _
        // Predicated region
        $region53: #{attentive_fp_dense_forward.3} parent=11 // pred_check
          %p491 = pneg %p336
        $region54: #{attentive_fp_dense_forward.3} parent=11 // pred_check_branch
          %493 = sbr.rel (%p491) target = $region56
        $region55: #{attentive_fp_dense_forward.3} parent=11 // pred_region
          %s495 = ssub.s32 6144, 6144
          %496 = vsyncadd [#allocation4], %s495
          %s497 = sshll.u32 [#allocation3], 4
          %s498 = int_to_ptr.vmem [resolvable:$true] %s497
          %503 = dma.hbm_to_vmem [thread:$0]  %s13, 6144, %s498, [#allocation4], 384, 384, 24
        $region56: #{attentive_fp_dense_forward.3} parent=11 // pred_fallthru
          _
        // Predicated region
        $region57: #{attentive_fp_dense_forward.3} parent=11 // pred_check
          %p504 = pneg %p357
        $region58: #{attentive_fp_dense_forward.3} parent=11 // pred_check_branch
          %506 = sbr.rel (%p504) target = $region60
        $region59: #{attentive_fp_dense_forward.3} parent=11 // pred_region
          %s508 = ssub.s32 6144, 6144
          %509 = vsyncadd [#allocation6], %s508
          %s510 = sshll.u32 [#allocation5], 4
          %s511 = int_to_ptr.vmem [resolvable:$true] %s510
          %516 = dma.hbm_to_vmem [thread:$0]  %s14, 6144, %s511, [#allocation6], 384, 384, 24
        $region60: #{attentive_fp_dense_forward.3} parent=11 // pred_fallthru
          _
        // Predicated region
        $region61: #{attentive_fp_dense_forward.3} parent=11 // pred_check
          %p517 = pneg %p378
        $region62: #{attentive_fp_dense_forward.3} parent=11 // pred_check_branch
          %519 = sbr.rel (%p517) target = $region64
        $region63: #{attentive_fp_dense_forward.3} parent=11 // pred_region
          _
        $region64: #{attentive_fp_dense_forward.3} parent=11 // pred_fallthru
          _
        // Predicated region
        $region65: #{attentive_fp_dense_forward.3} parent=11 // pred_check
          %p520 = pneg %p399
        $region66: #{attentive_fp_dense_forward.3} parent=11 // pred_check_branch
          %522 = sbr.rel (%p520) target = $region68
        $region67: #{attentive_fp_dense_forward.3} parent=11 // pred_region
          _
        $region68: #{attentive_fp_dense_forward.3} parent=11 // pred_fallthru
          _
        // Predicated region
        $region69: #{attentive_fp_dense_forward.3} parent=11 // pred_check
          %p523 = pneg %p420
        $region70: #{attentive_fp_dense_forward.3} parent=11 // pred_check_branch
          %525 = sbr.rel (%p523) target = $region72
        $region71: #{attentive_fp_dense_forward.3} parent=11 // pred_region
          _
        $region72: #{attentive_fp_dense_forward.3} parent=11 // pred_fallthru
          _
      $region12: #{attentive_fp_dense_forward.3} parent=5 // pred_fallthru
        _
      %p526 = scmp.lt.s32.totalorder %s27, 2
      // Predicated region
      $region73: #{attentive_fp_dense_forward.3} parent=5 // pred_check
        %p527 = pneg %p526
      $region74: #{attentive_fp_dense_forward.3} parent=5 // pred_check_branch
        %529 = sbr.rel (%p527) target = $region76
      $region75: #{attentive_fp_dense_forward.3} parent=5 // pred_region
        // Predicated region
        $region77: #{attentive_fp_dense_forward.3} parent=75 // pred_check
          %p530 = pneg %p68
        $region78: #{attentive_fp_dense_forward.3} parent=75 // pred_check_branch
          %532 = sbr.rel (%p530) target = $region80
        $region79: #{attentive_fp_dense_forward.3} parent=75 // pred_region
          %p533 = scmp.lt.s32.totalorder %s27, 1
          %s534 = scalar_select %p533, %s27, 1
          %s535 = smul.addr %s534, 8
          %s536 = scalar_lea.vmem %s1, %s535
        $region80: #{attentive_fp_dense_forward.3} parent=75 // pred_fallthru
          _
        // Predicated region
        $region81: #{attentive_fp_dense_forward.3} parent=75 // pred_check
          %p537 = pneg %p94
        $region82: #{attentive_fp_dense_forward.3} parent=75 // pred_check_branch
          %539 = sbr.rel (%p537) target = $region84
        $region83: #{attentive_fp_dense_forward.3} parent=75 // pred_region
          %s540 = smul.u32 16, %s27
          %p541 = scmp.lt.s32.totalorder %s540, 31
          %s542 = scalar_select %p541, %s540, 31
          %s543 = smul.addr %s542, 4
          %s544 = scalar_lea.vmem %s2, %s543
          %s545 = smul.u32 16, %s27
        $region84: #{attentive_fp_dense_forward.3} parent=75 // pred_fallthru
          _
        // Predicated region
        $region85: #{attentive_fp_dense_forward.3} parent=75 // pred_check
          %p546 = pneg %p120
        $region86: #{attentive_fp_dense_forward.3} parent=75 // pred_check_branch
          %548 = sbr.rel (%p546) target = $region88
        $region87: #{attentive_fp_dense_forward.3} parent=75 // pred_region
          %p549 = scmp.lt.s32.totalorder %s27, 1
          %s550 = scalar_select %p549, %s27, 1
          %s551 = smul.addr %s550, 8
          %s552 = scalar_lea.vmem %s3, %s551
        $region88: #{attentive_fp_dense_forward.3} parent=75 // pred_fallthru
          _
      $region76: #{attentive_fp_dense_forward.3} parent=5 // pred_fallthru
        _
      %p553 = scmp.le.s32.totalorder 1, %s27
      %p554 = scmp.lt.s32.totalorder %s27, 3
      %p555 = pnand %p553, %p554
      %p556 = pneg %p555
      // Predicated region
      $region89: #{attentive_fp_dense_forward.3} parent=5 // pred_check
        _
      $region90: #{attentive_fp_dense_forward.3} parent=5 // pred_check_branch
        %558 = sbr.rel (%p555) target = $region92
      $region91: #{attentive_fp_dense_forward.3} parent=5 // pred_region
        %s559 = ssub.s32 %s27, 1
        // Predicated region
        $region93: #{attentive_fp_dense_forward.3} parent=91 // pred_check
          %p560 = pneg %p336
        $region94: #{attentive_fp_dense_forward.3} parent=91 // pred_check_branch
          %562 = sbr.rel (%p560) target = $region96
        $region95: #{attentive_fp_dense_forward.3} parent=91 // pred_region
          %563 = dma.done [#allocation4], 6144
        $region96: #{attentive_fp_dense_forward.3} parent=91 // pred_fallthru
          _
        // Predicated region
        $region97: #{attentive_fp_dense_forward.3} parent=91 // pred_check
          %p564 = pneg %p357
        $region98: #{attentive_fp_dense_forward.3} parent=91 // pred_check_branch
          %566 = sbr.rel (%p564) target = $region100
        $region99: #{attentive_fp_dense_forward.3} parent=91 // pred_region
          %567 = dma.done [#allocation6], 6144
        $region100: #{attentive_fp_dense_forward.3} parent=91 // pred_fallthru
          _
        %p568 = pneg %p48
        %p569 = pneg %p45
        %p570 = scmp.lt.s32.totalorder %s32, 1
        %s571 = scalar_select %p570, %s32, 1
        %s572 = smul.addr %s571, 8
        %s573 = scalar_lea.vmem %s1, %s572
        %p574 = pneg %p74
        %p575 = pneg %p71
        %s576 = smul.u32 16, %s32
        %p577 = scmp.lt.s32.totalorder %s576, 31
        %s578 = scalar_select %p577, %s576, 31
        %s579 = smul.addr %s578, 4
        %s580 = scalar_lea.vmem %s2, %s579
        %p581 = pneg %p100
        %p582 = pneg %p97
        %p583 = scmp.lt.s32.totalorder %s32, 1
        %s584 = scalar_select %p583, %s32, 1
        %s585 = smul.addr %s584, 8
        %s586 = scalar_lea.vmem %s3, %s585
        %p587 = pneg %p126
        %p588 = pneg %p123
        %p589 = pneg %p147
        %p590 = pneg %p144
        %p591 = pneg %p168
        %p592 = pneg %p165
        %p593 = pneg %p189
        %p594 = pneg %p186
        %p595 = pneg %p210
        %p596 = pneg %p207
        %p597 = pneg %p231
        %p598 = pneg %p228
        %p599 = pneg %p252
        %p600 = pneg %p249
        %p601 = pneg %p273
        %p602 = pneg %p270
        %p603 = pneg %p294
        %p604 = pneg %p291
        %p605 = pneg %p315
        %p606 = pneg %p312
        %p607 = pneg %p336
        %p608 = pneg %p333
        %p609 = pneg %p357
        %p610 = pneg %p354
        %p611 = pneg %p378
        %p612 = pneg %p375
        %p613 = pneg %p399
        %p614 = pneg %p396
        %p615 = pneg %p420
        %p616 = pneg %p417
        %p617 = pneg %p446
        %p618 = pneg %p443
        %p619 = scmp.lt.s32.totalorder %s32, 1
        %s620 = scalar_select %p619, %s32, 1
        %s621 = smul.addr %s620, 8
        %s622 = scalar_lea.vmem %s18, %s621
        %p623 = scmp.lt.s32.totalorder %s32, 1
        %s624 = scalar_select %p623, %s32, 1
        %s625 = smul.addr %s624, 8
        %s626 = scalar_lea.vmem %s1, %s625
        %s627 = smul.u32 16, %s32
        %p628 = scmp.lt.s32.totalorder %s627, 31
        %s629 = scalar_select %p628, %s627, 31
        %s630 = smul.addr %s629, 4
        %s631 = scalar_lea.vmem %s2, %s630
        %s632 = smul.u32 16, %s32
        %p633 = scmp.lt.s32.totalorder %s32, 1
        %s634 = scalar_select %p633, %s32, 1
        %s635 = smul.addr %s634, 8
        %s636 = scalar_lea.vmem %s3, %s635
        %p637 = scmp.lt.s32.totalorder %s32, 1
        %s638 = scalar_select %p637, %s32, 1
        %s639 = smul.addr %s638, 8
        %s640 = scalar_lea.vmem %s18, %s639
        %v642 = vld [vmem:[%s0] sm:$0xff]
        %v643 = vld [vmem:[%s0 + $0x8] sm:$0xff]
        %v644 = vld [vmem:[%s626] sm:$0xff]
        %v645 = vld [vmem:[%s636] sm:$0xff]
        %v646 = vld [vmem:[%s631] sm:$0xf]
        %v647 = vld [vmem:[%s631 + $0x4] sm:$0xf]
        %v648 = vld [vmem:[%s631 + $0x8] sm:$0xf]
        %v649 = vld [vmem:[%s631 + $0xc] sm:$0xf]
        %v650 = vld [vmem:[%s631 + $0x10] sm:$0xf]
        %v651 = vld [vmem:[%s631 + $0x14] sm:$0xf]
        %v652 = vld [vmem:[%s631 + $0x18] sm:$0xf]
        %v653 = vld [vmem:[%s631 + $0x1c] sm:$0xf]
        %v654 = vld [vmem:[%s631 + $0x20] sm:$0xf]
        %v655 = vld [vmem:[%s631 + $0x24] sm:$0xf]
        %v656 = vld [vmem:[%s631 + $0x28] sm:$0xf]
        %v657 = vld [vmem:[%s631 + $0x2c] sm:$0xf]
        %v658 = vld [vmem:[%s631 + $0x30] sm:$0xf]
        %v659 = vld [vmem:[%s631 + $0x34] sm:$0xf]
        %v660 = vld [vmem:[%s631 + $0x38] sm:$0xf]
        %v661 = vld [vmem:[%s631 + $0x3c] sm:$0xf]
        %v662 = vld [vmem:[%s4] sm:$0xff]
        %v663 = vpack.c.bf16 %v644, %v644
        %v664 = vpack.c.bf16 %v662, %v662
        %v665 = vld [vmem:[%s5] sm:$0x1]
        %v667 = vlaneseq
        %v668 = vshrl.u32 %v667, 7
        %v669 = vsub.s32 0, %v668
        %v670 = vrot.slane %v665, %v669
        %vm672 = vcmask 64512
        %v674 = vsel %vm672, %v663, 0
        %vm676 = vcmask 1043456
        %v678 = vsel %vm676, %v664, 0
        %680 = vmatprep.subr.bf16.mxu0 0
        %681 = vmatpush1.bf16.msra.mxu0 0
        %682 = vmatprep.subr.bf16.mxu0 0
        %683 = vmatpush1.bf16.msra.mxu0 0
        %684 = vmatprep.subr.bf16.mxu0 0
        %685 = vmatpush1.bf16.msra.mxu0 0
        %686 = vmatprep.subr.bf16.mxu0 0
        %687 = vmatpush1.bf16.msra.mxu0 0
        %688 = vmatprep.subr.bf16.mxu0 0
        %689 = vmatpush1.bf16.msra.mxu0 0
        %690 = vmatprep.subr.bf16.mxu0 0
        %691 = vmatpush1.bf16.msra.mxu0 0
        %692 = vmatprep.subr.bf16.mxu0 0
        %693 = vmatpush1.bf16.msra.mxu0 0
        %694 = vmatprep.subr.bf16.mxu0 0
        %695 = vmatpush1.bf16.msra.mxu0 %v678
        %696 = vmatprep.subr.bf16.mxu0 0
        %697 = vmatpush2.bf16.msra.mxu0 0
        %698 = vmatprep.subr.bf16.mxu0 0
        %699 = vmatpush2.bf16.msra.mxu0 0
        %700 = vmatprep.subr.bf16.mxu0 0
        %701 = vmatpush2.bf16.msra.mxu0 0
        %702 = vmatprep.subr.bf16.mxu0 0
        %703 = vmatpush2.bf16.msra.mxu0 0
        %704 = vmatprep.subr.bf16.mxu0 0
        %705 = vmatpush2.bf16.msra.mxu0 0
        %706 = vmatprep.subr.bf16.mxu0 0
        %707 = vmatpush2.bf16.msra.mxu0 0
        %708 = vmatprep.subr.bf16.mxu0 0
        %709 = vmatpush2.bf16.msra.mxu0 0
        %710 = vmatprep.subr.bf16.mxu0 0
        %711 = vmatpush2.bf16.msra.mxu0 0
        %712 = vmatprep.mubr.bf16.mxu0 0
        %713 = vmatmul.mubr.bf16.gmra.mxu0 %v674
        %v714 = vpop.f32.mrf.mxu0
        %v715 = vadd.f32 %v670, %v714
        %v716 = vpop.f32.mrf.mxu0
        %v717 = vpop.f32.mrf.mxu0
        %v718 = vpop.f32.mrf.mxu0
        %719 = vdwg.mxu0
        %vm720 = vcmp.gt.f32.partialorder %v715, 0.0
        %v721 = vmul.f32 %v715, 0.01
        %v722 = vsel %vm720, %v715, %v721
        %v723 = vld [vmem:[%s6] sm:$0xff]
        %v724 = vpack.c.bf16 %v643, %v642
        %v725 = vpack.c.bf16 %v723, %v723
        %v727 = vsel %vm672, %v724, 0
        %v730 = vsel %vm676, %v725, 0
        %732 = vmatprep.subr.bf16.mxu0 0
        %733 = vmatpush1.bf16.msra.mxu0 0
        %734 = vmatprep.subr.bf16.mxu0 0
        %735 = vmatpush1.bf16.msra.mxu0 0
        %736 = vmatprep.subr.bf16.mxu0 0
        %737 = vmatpush1.bf16.msra.mxu0 0
        %738 = vmatprep.subr.bf16.mxu0 0
        %739 = vmatpush1.bf16.msra.mxu0 0
        %740 = vmatprep.subr.bf16.mxu0 0
        %741 = vmatpush1.bf16.msra.mxu0 0
        %742 = vmatprep.subr.bf16.mxu0 0
        %743 = vmatpush1.bf16.msra.mxu0 0
        %744 = vmatprep.subr.bf16.mxu0 0
        %745 = vmatpush1.bf16.msra.mxu0 0
        %746 = vmatprep.subr.bf16.mxu0 0
        %747 = vmatpush1.bf16.msra.mxu0 %v730
        %748 = vmatprep.subr.bf16.mxu0 0
        %749 = vmatpush2.bf16.msra.mxu0 0
        %750 = vmatprep.subr.bf16.mxu0 0
        %751 = vmatpush2.bf16.msra.mxu0 0
        %752 = vmatprep.subr.bf16.mxu0 0
        %753 = vmatpush2.bf16.msra.mxu0 0
        %754 = vmatprep.subr.bf16.mxu0 0
        %755 = vmatpush2.bf16.msra.mxu0 0
        %756 = vmatprep.subr.bf16.mxu0 0
        %757 = vmatpush2.bf16.msra.mxu0 0
        %758 = vmatprep.subr.bf16.mxu0 0
        %759 = vmatpush2.bf16.msra.mxu0 0
        %760 = vmatprep.subr.bf16.mxu0 0
        %761 = vmatpush2.bf16.msra.mxu0 0
        %762 = vmatprep.subr.bf16.mxu0 0
        %763 = vmatpush2.bf16.msra.mxu0 0
        %764 = vmatprep.mubr.bf16.mxu0 0
        %765 = vmatmul.mubr.bf16.gmra.mxu0 %v727
        %v766 = vpop.f32.mrf.mxu0
        %v767 = vadd.f32 0.0, %v766
        %v768 = vpop.f32.mrf.mxu0
        %v769 = vpop.f32.mrf.mxu0
        %v770 = vadd.f32 0.0, %v769
        %v771 = vpop.f32.mrf.mxu0
        %772 = vdwg.mxu0
        %v773 = vld [vmem:[%s7] sm:$0xf]
        %v774 = vpack.c.bf16 %v773, %v773
        %v791 = vunpack.c.l.b16 %v646
        %v792 = vunpack.c.l.b16 %v647
        %v793 = vunpack.c.l.b16 %v648
        %v794 = vunpack.c.l.b16 %v649
        %v795 = vunpack.c.l.b16 %v650
        %v796 = vunpack.c.l.b16 %v651
        %v797 = vunpack.c.l.b16 %v652
        %v798 = vunpack.c.l.b16 %v653
        %v799 = vunpack.c.l.b16 %v654
        %v800 = vunpack.c.l.b16 %v655
        %v801 = vunpack.c.l.b16 %v656
        %v802 = vunpack.c.l.b16 %v657
        %v803 = vunpack.c.l.b16 %v658
        %v804 = vunpack.c.l.b16 %v659
        %v805 = vunpack.c.l.b16 %v660
        %v806 = vunpack.c.l.b16 %v661
        %v807 = vpack.c.b16 %v792, %v791
        %v808 = vpack.c.b16 %v794, %v793
        %v809 = vpack.c.b16 %v796, %v795
        %v810 = vpack.c.b16 %v798, %v797
        %v811 = vpack.c.b16 %v800, %v799
        %v812 = vpack.c.b16 %v802, %v801
        %v813 = vpack.c.b16 %v804, %v803
        %v814 = vpack.c.b16 %v806, %v805
        %vm815 = vcmask 31744
        %v817 = vsel %vm815, %v807, 0
        %v820 = vsel %vm815, %v808, 0
        %v823 = vsel %vm815, %v809, 0
        %v826 = vsel %vm815, %v810, 0
        %v829 = vsel %vm815, %v811, 0
        %v832 = vsel %vm815, %v812, 0
        %v835 = vsel %vm815, %v813, 0
        %v838 = vsel %vm815, %v814, 0
        %vm840 = vcmask 1041408
        %v842 = vsel %vm840, %v774, 0
        %844 = vmatprep.subr.bf16.mxu0 0
        %845 = vmatpush1.bf16.msra.mxu0 0
        %846 = vmatprep.subr.bf16.mxu0 0
        %847 = vmatpush1.bf16.msra.mxu0 0
        %848 = vmatprep.subr.bf16.mxu0 0
        %849 = vmatpush1.bf16.msra.mxu0 0
        %850 = vmatprep.subr.bf16.mxu0 0
        %851 = vmatpush1.bf16.msra.mxu0 0
        %852 = vmatprep.subr.bf16.mxu0 0
        %853 = vmatpush1.bf16.msra.mxu0 0
        %854 = vmatprep.subr.bf16.mxu0 0
        %855 = vmatpush1.bf16.msra.mxu0 0
        %856 = vmatprep.subr.bf16.mxu0 0
        %857 = vmatpush1.bf16.msra.mxu0 0
        %858 = vmatprep.subr.bf16.mxu0 0
        %859 = vmatpush1.bf16.msra.mxu0 %v842
        %860 = vmatprep.subr.bf16.mxu0 0
        %861 = vmatpush2.bf16.msra.mxu0 0
        %862 = vmatprep.subr.bf16.mxu0 0
        %863 = vmatpush2.bf16.msra.mxu0 0
        %864 = vmatprep.subr.bf16.mxu0 0
        %865 = vmatpush2.bf16.msra.mxu0 0
        %866 = vmatprep.subr.bf16.mxu0 0
        %867 = vmatpush2.bf16.msra.mxu0 0
        %868 = vmatprep.subr.bf16.mxu0 0
        %869 = vmatpush2.bf16.msra.mxu0 0
        %870 = vmatprep.subr.bf16.mxu0 0
        %871 = vmatpush2.bf16.msra.mxu0 0
        %872 = vmatprep.subr.bf16.mxu0 0
        %873 = vmatpush2.bf16.msra.mxu0 0
        %874 = vmatprep.subr.bf16.mxu0 0
        %875 = vmatpush2.bf16.msra.mxu0 0
        %876 = vmatprep.mubr.bf16.mxu0 0
        %877 = vmatmul.mubr.bf16.gmra.mxu0 %v817
        %v878 = vpop.f32.mrf.mxu0
        %v879 = vadd.f32 0.0, %v878
        %v880 = vpop.f32.mrf.mxu0
        %v881 = vpop.f32.mrf.mxu0
        %v882 = vadd.f32 0.0, %v881
        %v883 = vpop.f32.mrf.mxu0
        %884 = vmatprep.mubr.bf16.mxu0 0
        %885 = vmatmul.mubr.bf16.gmra.mxu0 %v820
        %v886 = vpop.f32.mrf.mxu0
        %v887 = vadd.f32 0.0, %v886
        %v888 = vpop.f32.mrf.mxu0
        %v889 = vpop.f32.mrf.mxu0
        %v890 = vadd.f32 0.0, %v889
        %v891 = vpop.f32.mrf.mxu0
        %892 = vmatprep.mubr.bf16.mxu0 0
        %893 = vmatmul.mubr.bf16.gmra.mxu0 %v823
        %v894 = vpop.f32.mrf.mxu0
        %v895 = vadd.f32 0.0, %v894
        %v896 = vpop.f32.mrf.mxu0
        %v897 = vpop.f32.mrf.mxu0
        %v898 = vadd.f32 0.0, %v897
        %v899 = vpop.f32.mrf.mxu0
        %900 = vmatprep.mubr.bf16.mxu0 0
        %901 = vmatmul.mubr.bf16.gmra.mxu0 %v826
        %v902 = vpop.f32.mrf.mxu0
        %v903 = vadd.f32 0.0, %v902
        %v904 = vpop.f32.mrf.mxu0
        %v905 = vpop.f32.mrf.mxu0
        %v906 = vadd.f32 0.0, %v905
        %v907 = vpop.f32.mrf.mxu0
        %908 = vmatprep.mubr.bf16.mxu0 0
        %909 = vmatmul.mubr.bf16.gmra.mxu0 %v829
        %v910 = vpop.f32.mrf.mxu0
        %v911 = vadd.f32 0.0, %v910
        %v912 = vpop.f32.mrf.mxu0
        %v913 = vpop.f32.mrf.mxu0
        %v914 = vadd.f32 0.0, %v913
        %v915 = vpop.f32.mrf.mxu0
        %916 = vmatprep.mubr.bf16.mxu0 0
        %917 = vmatmul.mubr.bf16.gmra.mxu0 %v832
        %v918 = vpop.f32.mrf.mxu0
        %v919 = vadd.f32 0.0, %v918
        %v920 = vpop.f32.mrf.mxu0
        %v921 = vpop.f32.mrf.mxu0
        %v922 = vadd.f32 0.0, %v921
        %v923 = vpop.f32.mrf.mxu0
        %924 = vmatprep.mubr.bf16.mxu0 0
        %925 = vmatmul.mubr.bf16.gmra.mxu0 %v835
        %v926 = vpop.f32.mrf.mxu0
        %v927 = vadd.f32 0.0, %v926
        %v928 = vpop.f32.mrf.mxu0
        %v929 = vpop.f32.mrf.mxu0
        %v930 = vadd.f32 0.0, %v929
        %v931 = vpop.f32.mrf.mxu0
        %932 = vmatprep.mubr.bf16.mxu0 0
        %933 = vmatmul.mubr.bf16.gmra.mxu0 %v838
        %v934 = vpop.f32.mrf.mxu0
        %v935 = vadd.f32 0.0, %v934
        %v936 = vpop.f32.mrf.mxu0
        %v937 = vpop.f32.mrf.mxu0
        %v938 = vadd.f32 0.0, %v937
        %v939 = vpop.f32.mrf.mxu0
        %940 = vdwg.mxu0
        %v941 = vadd.f32 %v767, %v879
        %v942 = vadd.f32 %v770, %v882
        %v943 = vadd.f32 %v767, %v887
        %v944 = vadd.f32 %v770, %v890
        %v945 = vadd.f32 %v767, %v895
        %v946 = vadd.f32 %v770, %v898
        %v947 = vadd.f32 %v767, %v903
        %v948 = vadd.f32 %v770, %v906
        %v949 = vadd.f32 %v767, %v911
        %v950 = vadd.f32 %v770, %v914
        %v951 = vadd.f32 %v767, %v919
        %v952 = vadd.f32 %v770, %v922
        %v953 = vadd.f32 %v767, %v927
        %v954 = vadd.f32 %v770, %v930
        %v955 = vadd.f32 %v767, %v935
        %v956 = vadd.f32 %v770, %v938
        %v957 = vld [vmem:[%s8] sm:$0x1]
        %v959 = vlaneseq
        %v960 = vshrl.u32 %v959, 7
        %v961 = vsub.s32 0, %v960
        %v962 = vrot.slane %v957, %v961
        %v964 = vadd.f32 %v941, %v962
        %v965 = vadd.f32 %v942, %v962
        %v966 = vadd.f32 %v943, %v962
        %v967 = vadd.f32 %v944, %v962
        %v968 = vadd.f32 %v945, %v962
        %v969 = vadd.f32 %v946, %v962
        %v970 = vadd.f32 %v947, %v962
        %v971 = vadd.f32 %v948, %v962
        %v972 = vadd.f32 %v949, %v962
        %v973 = vadd.f32 %v950, %v962
        %v974 = vadd.f32 %v951, %v962
        %v975 = vadd.f32 %v952, %v962
        %v976 = vadd.f32 %v953, %v962
        %v977 = vadd.f32 %v954, %v962
        %v978 = vadd.f32 %v955, %v962
        %v979 = vadd.f32 %v956, %v962
        %vm980 = vcmp.gt.f32.partialorder %v964, 0.0
        %vm981 = vcmp.gt.f32.partialorder %v965, 0.0
        %vm982 = vcmp.gt.f32.partialorder %v966, 0.0
        %vm983 = vcmp.gt.f32.partialorder %v967, 0.0
        %vm984 = vcmp.gt.f32.partialorder %v968, 0.0
        %vm985 = vcmp.gt.f32.partialorder %v969, 0.0
        %vm986 = vcmp.gt.f32.partialorder %v970, 0.0
        %vm987 = vcmp.gt.f32.partialorder %v971, 0.0
        %vm988 = vcmp.gt.f32.partialorder %v972, 0.0
        %vm989 = vcmp.gt.f32.partialorder %v973, 0.0
        %vm990 = vcmp.gt.f32.partialorder %v974, 0.0
        %vm991 = vcmp.gt.f32.partialorder %v975, 0.0
        %vm992 = vcmp.gt.f32.partialorder %v976, 0.0
        %vm993 = vcmp.gt.f32.partialorder %v977, 0.0
        %vm994 = vcmp.gt.f32.partialorder %v978, 0.0
        %vm995 = vcmp.gt.f32.partialorder %v979, 0.0
        %v996 = vmul.f32 %v964, 0.01
        %v997 = vmul.f32 %v965, 0.01
        %v998 = vmul.f32 %v966, 0.01
        %v999 = vmul.f32 %v967, 0.01
        %v1000 = vmul.f32 %v968, 0.01
        %v1001 = vmul.f32 %v969, 0.01
        %v1002 = vmul.f32 %v970, 0.01
        %v1003 = vmul.f32 %v971, 0.01
        %v1004 = vmul.f32 %v972, 0.01
        %v1005 = vmul.f32 %v973, 0.01
        %v1006 = vmul.f32 %v974, 0.01
        %v1007 = vmul.f32 %v975, 0.01
        %v1008 = vmul.f32 %v976, 0.01
        %v1009 = vmul.f32 %v977, 0.01
        %v1010 = vmul.f32 %v978, 0.01
        %v1011 = vmul.f32 %v979, 0.01
        %v1012 = vsel %vm980, %v964, %v996
        %v1013 = vsel %vm981, %v965, %v997
        %v1014 = vsel %vm982, %v966, %v998
        %v1015 = vsel %vm983, %v967, %v999
        %v1016 = vsel %vm984, %v968, %v1000
        %v1017 = vsel %vm985, %v969, %v1001
        %v1018 = vsel %vm986, %v970, %v1002
        %v1019 = vsel %vm987, %v971, %v1003
        %v1020 = vsel %vm988, %v972, %v1004
        %v1021 = vsel %vm989, %v973, %v1005
        %v1022 = vsel %vm990, %v974, %v1006
        %v1023 = vsel %vm991, %v975, %v1007
        %v1024 = vsel %vm992, %v976, %v1008
        %v1025 = vsel %vm993, %v977, %v1009
        %v1026 = vsel %vm994, %v978, %v1010
        %v1027 = vsel %vm995, %v979, %v1011
        %v1028 = vld [vmem:[%s9] sm:$0x1]
        %v1030 = vlaneseq
        %v1031 = vshrl.u32 %v1030, 7
        %v1032 = vsub.s32 0, %v1031
        %v1033 = vrot.slane %v1028, %v1032
        %v1035 = vmul.f32 %v722, %v1033
        %1036 = vadd.xlane.f32.xlu0 %v1035
        %v1037 = vpop.xlane.xlu0 %1036
        %v1038 = vld [vmem:[%s10] sm:$0x1]
        %v1040 = vlaneseq
        %v1041 = vshrl.u32 %v1040, 7
        %v1042 = vsub.s32 0, %v1041
        %v1043 = vrot.slane %v1038, %v1042
        %v1045 = vmul.f32 %v1012, %v1043
        %v1046 = vmul.f32 %v1013, %v1043
        %v1047 = vmul.f32 %v1014, %v1043
        %v1048 = vmul.f32 %v1015, %v1043
        %v1049 = vmul.f32 %v1016, %v1043
        %v1050 = vmul.f32 %v1017, %v1043
        %v1051 = vmul.f32 %v1018, %v1043
        %v1052 = vmul.f32 %v1019, %v1043
        %v1053 = vmul.f32 %v1020, %v1043
        %v1054 = vmul.f32 %v1021, %v1043
        %v1055 = vmul.f32 %v1022, %v1043
        %v1056 = vmul.f32 %v1023, %v1043
        %v1057 = vmul.f32 %v1024, %v1043
        %v1058 = vmul.f32 %v1025, %v1043
        %v1059 = vmul.f32 %v1026, %v1043
        %v1060 = vmul.f32 %v1027, %v1043
        %1061 = vadd.xlane.f32.xlu0 %v1045
        %v1062 = vpop.xlane.xlu0 %1061
        %1063 = vadd.xlane.f32.xlu0 %v1046
        %v1064 = vpop.xlane.xlu0 %1063
        %1065 = vadd.xlane.f32.xlu0 %v1047
        %v1066 = vpop.xlane.xlu0 %1065
        %1067 = vadd.xlane.f32.xlu0 %v1048
        %v1068 = vpop.xlane.xlu0 %1067
        %1069 = vadd.xlane.f32.xlu0 %v1049
        %v1070 = vpop.xlane.xlu0 %1069
        %1071 = vadd.xlane.f32.xlu0 %v1050
        %v1072 = vpop.xlane.xlu0 %1071
        %1073 = vadd.xlane.f32.xlu0 %v1051
        %v1074 = vpop.xlane.xlu0 %1073
        %1075 = vadd.xlane.f32.xlu0 %v1052
        %v1076 = vpop.xlane.xlu0 %1075
        %1077 = vadd.xlane.f32.xlu0 %v1053
        %v1078 = vpop.xlane.xlu0 %1077
        %1079 = vadd.xlane.f32.xlu0 %v1054
        %v1080 = vpop.xlane.xlu0 %1079
        %1081 = vadd.xlane.f32.xlu0 %v1055
        %v1082 = vpop.xlane.xlu0 %1081
        %1083 = vadd.xlane.f32.xlu0 %v1056
        %v1084 = vpop.xlane.xlu0 %1083
        %1085 = vadd.xlane.f32.xlu0 %v1057
        %v1086 = vpop.xlane.xlu0 %1085
        %1087 = vadd.xlane.f32.xlu0 %v1058
        %v1088 = vpop.xlane.xlu0 %1087
        %1089 = vadd.xlane.f32.xlu0 %v1059
        %v1090 = vpop.xlane.xlu0 %1089
        %1091 = vadd.xlane.f32.xlu0 %v1060
        %v1092 = vpop.xlane.xlu0 %1091
        %v1109 = vlaneseq
        %v1110 = vand.u32 %v1109, 127
        %v1111 = vlaneseq
        %v1112 = vshrl.u32 %v1111, 7
        %v1113 = vsub.s32 %v1110, %v1112
        %v1114 = vrot.slane %v1062, %v1113
        %v1115 = vadd.s32 %v1110, 4294967288
        %v1116 = vlaneseq
        %v1117 = vshrl.u32 %v1116, 7
        %v1118 = vsub.s32 %v1115, %v1117
        %v1119 = vrot.slane %v1064, %v1118
        %vm1120 = vcmask 130112
        %v1121 = vsel %vm1120, %v1119, %v1114
        %v1122 = vlaneseq
        %v1123 = vshrl.u32 %v1122, 7
        %v1124 = vsub.s32 %v1110, %v1123
        %v1125 = vrot.slane %v1066, %v1124
        %v1126 = vlaneseq
        %v1127 = vshrl.u32 %v1126, 7
        %v1128 = vsub.s32 %v1115, %v1127
        %v1129 = vrot.slane %v1068, %v1128
        %v1130 = vsel %vm1120, %v1129, %v1125
        %v1131 = vlaneseq
        %v1132 = vshrl.u32 %v1131, 7
        %v1133 = vsub.s32 %v1110, %v1132
        %v1134 = vrot.slane %v1070, %v1133
        %v1135 = vlaneseq
        %v1136 = vshrl.u32 %v1135, 7
        %v1137 = vsub.s32 %v1115, %v1136
        %v1138 = vrot.slane %v1072, %v1137
        %v1139 = vsel %vm1120, %v1138, %v1134
        %v1140 = vlaneseq
        %v1141 = vshrl.u32 %v1140, 7
        %v1142 = vsub.s32 %v1110, %v1141
        %v1143 = vrot.slane %v1074, %v1142
        %v1144 = vlaneseq
        %v1145 = vshrl.u32 %v1144, 7
        %v1146 = vsub.s32 %v1115, %v1145
        %v1147 = vrot.slane %v1076, %v1146
        %v1148 = vsel %vm1120, %v1147, %v1143
        %v1149 = vlaneseq
        %v1150 = vshrl.u32 %v1149, 7
        %v1151 = vsub.s32 %v1110, %v1150
        %v1152 = vrot.slane %v1078, %v1151
        %v1153 = vlaneseq
        %v1154 = vshrl.u32 %v1153, 7
        %v1155 = vsub.s32 %v1115, %v1154
        %v1156 = vrot.slane %v1080, %v1155
        %v1157 = vsel %vm1120, %v1156, %v1152
        %v1158 = vlaneseq
        %v1159 = vshrl.u32 %v1158, 7
        %v1160 = vsub.s32 %v1110, %v1159
        %v1161 = vrot.slane %v1082, %v1160
        %v1162 = vlaneseq
        %v1163 = vshrl.u32 %v1162, 7
        %v1164 = vsub.s32 %v1115, %v1163
        %v1165 = vrot.slane %v1084, %v1164
        %v1166 = vsel %vm1120, %v1165, %v1161
        %v1167 = vlaneseq
        %v1168 = vshrl.u32 %v1167, 7
        %v1169 = vsub.s32 %v1110, %v1168
        %v1170 = vrot.slane %v1086, %v1169
        %v1171 = vlaneseq
        %v1172 = vshrl.u32 %v1171, 7
        %v1173 = vsub.s32 %v1115, %v1172
        %v1174 = vrot.slane %v1088, %v1173
        %v1175 = vsel %vm1120, %v1174, %v1170
        %v1176 = vlaneseq
        %v1177 = vshrl.u32 %v1176, 7
        %v1178 = vsub.s32 %v1110, %v1177
        %v1179 = vrot.slane %v1090, %v1178
        %v1180 = vlaneseq
        %v1181 = vshrl.u32 %v1180, 7
        %v1182 = vsub.s32 %v1115, %v1181
        %v1183 = vrot.slane %v1092, %v1182
        %v1184 = vsel %vm1120, %v1183, %v1179
        %vm1185 = vcmask 1041409
        %v1186 = vsel %vm1185, %v1130, %v1121
        %vm1187 = vcmask 1042434
        %v1188 = vsel %vm1187, %v1139, %v1186
        %vm1189 = vcmask 1043459
        %v1190 = vsel %vm1189, %v1148, %v1188
        %vm1191 = vcmask 1044484
        %v1192 = vsel %vm1191, %v1157, %v1190
        %vm1193 = vcmask 1045509
        %v1194 = vsel %vm1193, %v1166, %v1192
        %vm1195 = vcmask 1046534
        %v1196 = vsel %vm1195, %v1175, %v1194
        %vm1197 = vcmask 1047559
        %v1198 = vsel %vm1197, %v1184, %v1196
        %v1200 = vadd.f32 %v1037, %v1198
        %s1201 = sld [smem:[#allocation2]]
        %v1202 = vstv %s1201
        %v1203 = vadd.f32 %v1200, %v1202
        %vm1204 = vcmp.gt.f32.partialorder %v1203, 0.0
        %v1205 = vmul.f32 %v1203, 0.01
        %v1206 = vsel %vm1204, %v1203, %v1205
        %vm1207 = vcmp.gt.f32.partialorder %v645, 0.0
        %v1208 = vsel %vm1207, %v1206, -1e+30
        %vm1209 = vcmask 130048
        %v1210 = vsel %vm1209, %v1208, -inf
        %1211 = vmax.xlane.f32.xlu0 %v1210
        %v1212 = vpop.xlane.xlu0 %1211
        %v1213 = vsub.f32 %v1208, %v1212
        %v1214 = vmul.f32 %v1213, 1.442695
        %v1215 = vpow.pop %v1214
        %v1216 = vmul.f32 %v1215, %v645
        %v1217 = vsel %vm1209, %v1216, 0.0
        %1218 = vadd.xlane.f32.xlu0 %v1217
        %v1219 = vpop.xlane.xlu0 %1218
        %v1220 = vmax.f32 %v1219, 1e-30
        %v1221 = vrcp.pop %v1220
        %v1222 = vmul.f32 %v1216, %v1221
        %v1223 = vlaneseq
        %v1224 = vshrl.u32 %v1223, 7
        %v1225 = vsub.s32 0, %v1224
        %v1226 = vrot.slane %v1222, %v1225
        %1228 = vbcast.lane.b32.xlu0 %v1226, 256
        %v1229 = vpop.permute.xlu0 %1228
        %s1231 = sor.u32 256, 8
        %1232 = vbcast.lane.b32.xlu0 %v1226, %s1231
        %v1233 = vpop.permute.xlu0 %1232
        %v1234 = vlaneseq
        %v1235 = vshrl.u32 %v1234, 7
        %v1236 = vsub.s32 1, %v1235
        %v1237 = vrot.slane %v1222, %v1236
        %1239 = vbcast.lane.b32.xlu0 %v1237, 256
        %v1240 = vpop.permute.xlu0 %1239
        %s1242 = sor.u32 256, 8
        %1243 = vbcast.lane.b32.xlu0 %v1237, %s1242
        %v1244 = vpop.permute.xlu0 %1243
        %v1245 = vlaneseq
        %v1246 = vshrl.u32 %v1245, 7
        %v1247 = vsub.s32 2, %v1246
        %v1248 = vrot.slane %v1222, %v1247
        %1250 = vbcast.lane.b32.xlu0 %v1248, 256
        %v1251 = vpop.permute.xlu0 %1250
        %s1253 = sor.u32 256, 8
        %1254 = vbcast.lane.b32.xlu0 %v1248, %s1253
        %v1255 = vpop.permute.xlu0 %1254
        %v1256 = vlaneseq
        %v1257 = vshrl.u32 %v1256, 7
        %v1258 = vsub.s32 3, %v1257
        %v1259 = vrot.slane %v1222, %v1258
        %1261 = vbcast.lane.b32.xlu0 %v1259, 256
        %v1262 = vpop.permute.xlu0 %1261
        %s1264 = sor.u32 256, 8
        %1265 = vbcast.lane.b32.xlu0 %v1259, %s1264
        %v1266 = vpop.permute.xlu0 %1265
        %v1267 = vlaneseq
        %v1268 = vshrl.u32 %v1267, 7
        %v1269 = vsub.s32 4, %v1268
        %v1270 = vrot.slane %v1222, %v1269
        %1272 = vbcast.lane.b32.xlu0 %v1270, 256
        %v1273 = vpop.permute.xlu0 %1272
        %s1275 = sor.u32 256, 8
        %1276 = vbcast.lane.b32.xlu0 %v1270, %s1275
        %v1277 = vpop.permute.xlu0 %1276
        %v1278 = vlaneseq
        %v1279 = vshrl.u32 %v1278, 7
        %v1280 = vsub.s32 5, %v1279
        %v1281 = vrot.slane %v1222, %v1280
        %1283 = vbcast.lane.b32.xlu0 %v1281, 256
        %v1284 = vpop.permute.xlu0 %1283
        %s1286 = sor.u32 256, 8
        %1287 = vbcast.lane.b32.xlu0 %v1281, %s1286
        %v1288 = vpop.permute.xlu0 %1287
        %v1289 = vlaneseq
        %v1290 = vshrl.u32 %v1289, 7
        %v1291 = vsub.s32 6, %v1290
        %v1292 = vrot.slane %v1222, %v1291
        %1294 = vbcast.lane.b32.xlu0 %v1292, 256
        %v1295 = vpop.permute.xlu0 %1294
        %s1297 = sor.u32 256, 8
        %1298 = vbcast.lane.b32.xlu0 %v1292, %s1297
        %v1299 = vpop.permute.xlu0 %1298
        %v1300 = vlaneseq
        %v1301 = vshrl.u32 %v1300, 7
        %v1302 = vsub.s32 7, %v1301
        %v1303 = vrot.slane %v1222, %v1302
        %1305 = vbcast.lane.b32.xlu0 %v1303, 256
        %v1306 = vpop.permute.xlu0 %1305
        %s1308 = sor.u32 256, 8
        %1309 = vbcast.lane.b32.xlu0 %v1303, %s1308
        %v1310 = vpop.permute.xlu0 %1309
        %v1311 = vmul.f32 %v1229, %v1012
        %v1312 = vmul.f32 %v1233, %v1013
        %v1313 = vmul.f32 %v1240, %v1014
        %v1314 = vmul.f32 %v1244, %v1015
        %v1315 = vmul.f32 %v1251, %v1016
        %v1316 = vmul.f32 %v1255, %v1017
        %v1317 = vmul.f32 %v1262, %v1018
        %v1318 = vmul.f32 %v1266, %v1019
        %v1319 = vmul.f32 %v1273, %v1020
        %v1320 = vmul.f32 %v1277, %v1021
        %v1321 = vmul.f32 %v1284, %v1022
        %v1322 = vmul.f32 %v1288, %v1023
        %v1323 = vmul.f32 %v1295, %v1024
        %v1324 = vmul.f32 %v1299, %v1025
        %v1325 = vmul.f32 %v1306, %v1026
        %v1326 = vmul.f32 %v1310, %v1027
        %v1327 = vadd.f32 %v1311, %v1312
        %v1328 = vrot.slane %v1327, 4
        %v1329 = vadd.f32 %v1327, %v1328
        %v1330 = vrot.slane %v1329, 2
        %v1331 = vadd.f32 %v1329, %v1330
        %v1332 = vrot.slane %v1331, 1
        %v1333 = vadd.f32 %v1331, %v1332
        %v1334 = vadd.f32 %v1313, %v1314
        %v1335 = vrot.slane %v1334, 4
        %v1336 = vadd.f32 %v1334, %v1335
        %v1337 = vrot.slane %v1336, 2
        %v1338 = vadd.f32 %v1336, %v1337
        %v1339 = vrot.slane %v1338, 1
        %v1340 = vadd.f32 %v1338, %v1339
        %v1341 = vadd.f32 %v1315, %v1316
        %v1342 = vrot.slane %v1341, 4
        %v1343 = vadd.f32 %v1341, %v1342
        %v1344 = vrot.slane %v1343, 2
        %v1345 = vadd.f32 %v1343, %v1344
        %v1346 = vrot.slane %v1345, 1
        %v1347 = vadd.f32 %v1345, %v1346
        %v1348 = vadd.f32 %v1317, %v1318
        %v1349 = vrot.slane %v1348, 4
        %v1350 = vadd.f32 %v1348, %v1349
        %v1351 = vrot.slane %v1350, 2
        %v1352 = vadd.f32 %v1350, %v1351
        %v1353 = vrot.slane %v1352, 1
        %v1354 = vadd.f32 %v1352, %v1353
        %v1355 = vadd.f32 %v1319, %v1320
        %v1356 = vrot.slane %v1355, 4
        %v1357 = vadd.f32 %v1355, %v1356
        %v1358 = vrot.slane %v1357, 2
        %v1359 = vadd.f32 %v1357, %v1358
        %v1360 = vrot.slane %v1359, 1
        %v1361 = vadd.f32 %v1359, %v1360
        %v1362 = vadd.f32 %v1321, %v1322
        %v1363 = vrot.slane %v1362, 4
        %v1364 = vadd.f32 %v1362, %v1363
        %v1365 = vrot.slane %v1364, 2
        %v1366 = vadd.f32 %v1364, %v1365
        %v1367 = vrot.slane %v1366, 1
        %v1368 = vadd.f32 %v1366, %v1367
        %v1369 = vadd.f32 %v1323, %v1324
        %v1370 = vrot.slane %v1369, 4
        %v1371 = vadd.f32 %v1369, %v1370
        %v1372 = vrot.slane %v1371, 2
        %v1373 = vadd.f32 %v1371, %v1372
        %v1374 = vrot.slane %v1373, 1
        %v1375 = vadd.f32 %v1373, %v1374
        %v1376 = vadd.f32 %v1325, %v1326
        %v1377 = vrot.slane %v1376, 4
        %v1378 = vadd.f32 %v1376, %v1377
        %v1379 = vrot.slane %v1378, 2
        %v1380 = vadd.f32 %v1378, %v1379
        %v1381 = vrot.slane %v1380, 1
        %v1382 = vadd.f32 %v1380, %v1381
        %v1383 = vsel %vm1209, %v1222, 0.0
        %1384 = vadd.xlane.f32.xlu0 %v1383
        %v1385 = vpop.xlane.xlu0 %1384
        %v1386 = vld [vmem:[%s11] sm:$0xff]
        %v1387 = vld [vmem:[%s11 + $0x8] sm:$0xff]
        %v1388 = vld [vmem:[%s11 + $0x10] sm:$0xff]
        %v1389 = vld [vmem:[%s11 + $0x18] sm:$0xff]
        %v1390 = vld [vmem:[%s11 + $0x20] sm:$0xff]
        %v1391 = vld [vmem:[%s11 + $0x28] sm:$0xff]
        %v1392 = vld [vmem:[%s11 + $0x30] sm:$0xff]
        %v1393 = vld [vmem:[%s11 + $0x38] sm:$0xff]
        %v1394 = vld [vmem:[%s11 + $0x40] sm:$0xff]
        %v1395 = vld [vmem:[%s11 + $0x48] sm:$0xff]
        %v1396 = vld [vmem:[%s11 + $0x50] sm:$0xff]
        %v1397 = vld [vmem:[%s11 + $0x58] sm:$0xff]
        %v1398 = vld [vmem:[%s11 + $0x60] sm:$0xff]
        %v1399 = vld [vmem:[%s11 + $0x68] sm:$0xff]
        %v1400 = vld [vmem:[%s11 + $0x70] sm:$0xff]
        %v1401 = vld [vmem:[%s11 + $0x78] sm:$0xff]
        %v1402 = vpack.c.bf16 %v1333, %v1333
        %v1403 = vpack.c.bf16 %v1340, %v1340
        %v1404 = vpack.c.bf16 %v1347, %v1347
        %v1405 = vpack.c.bf16 %v1354, %v1354
        %v1406 = vpack.c.bf16 %v1361, %v1361
        %v1407 = vpack.c.bf16 %v1368, %v1368
        %v1408 = vpack.c.bf16 %v1375, %v1375
        %v1409 = vpack.c.bf16 %v1382, %v1382
        %v1410 = vpack.c.bf16 %v1387, %v1386
        %v1411 = vpack.c.bf16 %v1389, %v1388
        %v1412 = vpack.c.bf16 %v1391, %v1390
        %v1413 = vpack.c.bf16 %v1393, %v1392
        %v1414 = vpack.c.bf16 %v1395, %v1394
        %v1415 = vpack.c.bf16 %v1397, %v1396
        %v1416 = vpack.c.bf16 %v1399, %v1398
        %v1417 = vpack.c.bf16 %v1401, %v1400
        %v1418 = vld [vmem:[%s12] sm:$0x1]
        %v1420 = vlaneseq
        %v1421 = vshrl.u32 %v1420, 7
        %v1422 = vsub.s32 0, %v1421
        %v1423 = vrot.slane %v1418, %v1422
        %v1425 = vmul.f32 %v1385, %v1423
        %v1434 = vunpack.c.l.b16 %v1402
        %v1435 = vunpack.c.l.b16 %v1403
        %v1436 = vunpack.c.l.b16 %v1404
        %v1437 = vunpack.c.l.b16 %v1405
        %v1438 = vunpack.c.l.b16 %v1406
        %v1439 = vunpack.c.l.b16 %v1407
        %v1440 = vunpack.c.l.b16 %v1408
        %v1441 = vunpack.c.l.b16 %v1409
        %v1442 = vsel %vm1185, %v1435, %v1434
        %v1443 = vsel %vm1187, %v1436, %v1442
        %v1444 = vsel %vm1189, %v1437, %v1443
        %v1445 = vsel %vm1191, %v1438, %v1444
        %v1446 = vsel %vm1193, %v1439, %v1445
        %v1447 = vsel %vm1195, %v1440, %v1446
        %v1448 = vsel %vm1197, %v1441, %v1447
        %v1449 = vpack.c.b16 %v1448, %v1448
        %1451 = vmatprep.subr.bf16.mxu0 0
        %1452 = vmatpush1.bf16.msra.mxu0 %v1417
        %1453 = vmatprep.subr.bf16.mxu0 0
        %1454 = vmatpush1.bf16.msra.mxu0 %v1416
        %1455 = vmatprep.subr.bf16.mxu0 0
        %1456 = vmatpush1.bf16.msra.mxu0 %v1415
        %1457 = vmatprep.subr.bf16.mxu0 0
        %1458 = vmatpush1.bf16.msra.mxu0 %v1414
        %1459 = vmatprep.subr.bf16.mxu0 0
        %1460 = vmatpush1.bf16.msra.mxu0 %v1413
        %1461 = vmatprep.subr.bf16.mxu0 0
        %1462 = vmatpush1.bf16.msra.mxu0 %v1412
        %1463 = vmatprep.subr.bf16.mxu0 0
        %1464 = vmatpush1.bf16.msra.mxu0 %v1411
        %1465 = vmatprep.subr.bf16.mxu0 0
        %1466 = vmatpush1.bf16.msra.mxu0 %v1410
        %1467 = vmatprep.subr.bf16.mxu0 0
        %1468 = vmatpush2.bf16.msra.mxu0 0
        %1469 = vmatprep.subr.bf16.mxu0 0
        %1470 = vmatpush2.bf16.msra.mxu0 0
        %1471 = vmatprep.subr.bf16.mxu0 0
        %1472 = vmatpush2.bf16.msra.mxu0 0
        %1473 = vmatprep.subr.bf16.mxu0 0
        %1474 = vmatpush2.bf16.msra.mxu0 0
        %1475 = vmatprep.subr.bf16.mxu0 0
        %1476 = vmatpush2.bf16.msra.mxu0 0
        %1477 = vmatprep.subr.bf16.mxu0 0
        %1478 = vmatpush2.bf16.msra.mxu0 0
        %1479 = vmatprep.subr.bf16.mxu0 0
        %1480 = vmatpush2.bf16.msra.mxu0 0
        %1481 = vmatprep.subr.bf16.mxu0 0
        %1482 = vmatpush2.bf16.msra.mxu0 0
        %1483 = vmatprep.mubr.bf16.mxu0 0
        %1484 = vmatmul.mubr.bf16.gmra.mxu0 %v1449
        %v1485 = vpop.f32.mrf.mxu0
        %v1486 = vadd.f32 %v1425, %v1485
        %v1487 = vpop.f32.mrf.mxu0
        %v1488 = vpop.f32.mrf.mxu0
        %v1489 = vpop.f32.mrf.mxu0
        %1490 = vdwg.mxu0
        %vm1491 = vcmp.gt.f32.partialorder %v1486, 0.0
        %v1492 = vmin.f32 %v1486, 0.0
        %v1493 = vmul.f32 %v1492, 1.442695
        %v1494 = vpow.pop %v1493
        %v1495 = vsub.f32 %v1494, 1.0
        %v1496 = vsel %vm1491, %v1486, %v1495
        %v1497 = vld [vmem:[#allocation3] sm:$0xff]
        %v1498 = vld [vmem:[#allocation3 + $0x8] sm:$0xff]
        %v1499 = vld [vmem:[#allocation3 + $0x10] sm:$0xff]
        %v1500 = vld [vmem:[#allocation3 + $0x18] sm:$0xff]
        %v1501 = vld [vmem:[#allocation3 + $0x20] sm:$0xff]
        %v1502 = vld [vmem:[#allocation3 + $0x28] sm:$0xff]
        %v1503 = vld [vmem:[#allocation3 + $0x30] sm:$0xff]
        %v1504 = vld [vmem:[#allocation3 + $0x38] sm:$0xff]
        %v1505 = vld [vmem:[#allocation3 + $0x40] sm:$0xff]
        %v1506 = vld [vmem:[#allocation3 + $0x48] sm:$0xff]
        %v1507 = vld [vmem:[#allocation3 + $0x50] sm:$0xff]
        %v1508 = vld [vmem:[#allocation3 + $0x58] sm:$0xff]
        %v1509 = vld [vmem:[#allocation3 + $0x60] sm:$0xff]
        %v1510 = vld [vmem:[#allocation3 + $0x68] sm:$0xff]
        %v1511 = vld [vmem:[#allocation3 + $0x70] sm:$0xff]
        %v1512 = vld [vmem:[#allocation3 + $0x78] sm:$0xff]
        %v1513 = vld [vmem:[#allocation3 + $0x80] sm:$0xff]
        %v1514 = vld [vmem:[#allocation3 + $0x88] sm:$0xff]
        %v1515 = vld [vmem:[#allocation3 + $0x90] sm:$0xff]
        %v1516 = vld [vmem:[#allocation3 + $0x98] sm:$0xff]
        %v1517 = vld [vmem:[#allocation3 + $0xa0] sm:$0xff]
        %v1518 = vld [vmem:[#allocation3 + $0xa8] sm:$0xff]
        %v1519 = vld [vmem:[#allocation3 + $0xb0] sm:$0xff]
        %v1520 = vld [vmem:[#allocation3 + $0xb8] sm:$0xff]
        %v1521 = vld [vmem:[#allocation3 + $0xc0] sm:$0xff]
        %v1522 = vld [vmem:[#allocation3 + $0xc8] sm:$0xff]
        %v1523 = vld [vmem:[#allocation3 + $0xd0] sm:$0xff]
        %v1524 = vld [vmem:[#allocation3 + $0xd8] sm:$0xff]
        %v1525 = vld [vmem:[#allocation3 + $0xe0] sm:$0xff]
        %v1526 = vld [vmem:[#allocation3 + $0xe8] sm:$0xff]
        %v1527 = vld [vmem:[#allocation3 + $0xf0] sm:$0xff]
        %v1528 = vld [vmem:[#allocation3 + $0xf8] sm:$0xff]
        %v1529 = vld [vmem:[#allocation3 + $0x100] sm:$0xff]
        %v1530 = vld [vmem:[#allocation3 + $0x108] sm:$0xff]
        %v1531 = vld [vmem:[#allocation3 + $0x110] sm:$0xff]
        %v1532 = vld [vmem:[#allocation3 + $0x118] sm:$0xff]
        %v1533 = vld [vmem:[#allocation3 + $0x120] sm:$0xff]
        %v1534 = vld [vmem:[#allocation3 + $0x128] sm:$0xff]
        %v1535 = vld [vmem:[#allocation3 + $0x130] sm:$0xff]
        %v1536 = vld [vmem:[#allocation3 + $0x138] sm:$0xff]
        %v1537 = vld [vmem:[#allocation3 + $0x140] sm:$0xff]
        %v1538 = vld [vmem:[#allocation3 + $0x148] sm:$0xff]
        %v1539 = vld [vmem:[#allocation3 + $0x150] sm:$0xff]
        %v1540 = vld [vmem:[#allocation3 + $0x158] sm:$0xff]
        %v1541 = vld [vmem:[#allocation3 + $0x160] sm:$0xff]
        %v1542 = vld [vmem:[#allocation3 + $0x168] sm:$0xff]
        %v1543 = vld [vmem:[#allocation3 + $0x170] sm:$0xff]
        %v1544 = vld [vmem:[#allocation3 + $0x178] sm:$0xff]
        %v1545 = vld [vmem:[#allocation5] sm:$0xff]
        %v1546 = vld [vmem:[#allocation5 + $0x8] sm:$0xff]
        %v1547 = vld [vmem:[#allocation5 + $0x10] sm:$0xff]
        %v1548 = vld [vmem:[#allocation5 + $0x18] sm:$0xff]
        %v1549 = vld [vmem:[#allocation5 + $0x20] sm:$0xff]
        %v1550 = vld [vmem:[#allocation5 + $0x28] sm:$0xff]
        %v1551 = vld [vmem:[#allocation5 + $0x30] sm:$0xff]
        %v1552 = vld [vmem:[#allocation5 + $0x38] sm:$0xff]
        %v1553 = vld [vmem:[#allocation5 + $0x40] sm:$0xff]
        %v1554 = vld [vmem:[#allocation5 + $0x48] sm:$0xff]
        %v1555 = vld [vmem:[#allocation5 + $0x50] sm:$0xff]
        %v1556 = vld [vmem:[#allocation5 + $0x58] sm:$0xff]
        %v1557 = vld [vmem:[#allocation5 + $0x60] sm:$0xff]
        %v1558 = vld [vmem:[#allocation5 + $0x68] sm:$0xff]
        %v1559 = vld [vmem:[#allocation5 + $0x70] sm:$0xff]
        %v1560 = vld [vmem:[#allocation5 + $0x78] sm:$0xff]
        %v1561 = vld [vmem:[#allocation5 + $0x80] sm:$0xff]
        %v1562 = vld [vmem:[#allocation5 + $0x88] sm:$0xff]
        %v1563 = vld [vmem:[#allocation5 + $0x90] sm:$0xff]
        %v1564 = vld [vmem:[#allocation5 + $0x98] sm:$0xff]
        %v1565 = vld [vmem:[#allocation5 + $0xa0] sm:$0xff]
        %v1566 = vld [vmem:[#allocation5 + $0xa8] sm:$0xff]
        %v1567 = vld [vmem:[#allocation5 + $0xb0] sm:$0xff]
        %v1568 = vld [vmem:[#allocation5 + $0xb8] sm:$0xff]
        %v1569 = vld [vmem:[#allocation5 + $0xc0] sm:$0xff]
        %v1570 = vld [vmem:[#allocation5 + $0xc8] sm:$0xff]
        %v1571 = vld [vmem:[#allocation5 + $0xd0] sm:$0xff]
        %v1572 = vld [vmem:[#allocation5 + $0xd8] sm:$0xff]
        %v1573 = vld [vmem:[#allocation5 + $0xe0] sm:$0xff]
        %v1574 = vld [vmem:[#allocation5 + $0xe8] sm:$0xff]
        %v1575 = vld [vmem:[#allocation5 + $0xf0] sm:$0xff]
        %v1576 = vld [vmem:[#allocation5 + $0xf8] sm:$0xff]
        %v1577 = vld [vmem:[#allocation5 + $0x100] sm:$0xff]
        %v1578 = vld [vmem:[#allocation5 + $0x108] sm:$0xff]
        %v1579 = vld [vmem:[#allocation5 + $0x110] sm:$0xff]
        %v1580 = vld [vmem:[#allocation5 + $0x118] sm:$0xff]
        %v1581 = vld [vmem:[#allocation5 + $0x120] sm:$0xff]
        %v1582 = vld [vmem:[#allocation5 + $0x128] sm:$0xff]
        %v1583 = vld [vmem:[#allocation5 + $0x130] sm:$0xff]
        %v1584 = vld [vmem:[#allocation5 + $0x138] sm:$0xff]
        %v1585 = vld [vmem:[#allocation5 + $0x140] sm:$0xff]
        %v1586 = vld [vmem:[#allocation5 + $0x148] sm:$0xff]
        %v1587 = vld [vmem:[#allocation5 + $0x150] sm:$0xff]
        %v1588 = vld [vmem:[#allocation5 + $0x158] sm:$0xff]
        %v1589 = vld [vmem:[#allocation5 + $0x160] sm:$0xff]
        %v1590 = vld [vmem:[#allocation5 + $0x168] sm:$0xff]
        %v1591 = vld [vmem:[#allocation5 + $0x170] sm:$0xff]
        %v1592 = vld [vmem:[#allocation5 + $0x178] sm:$0xff]
        %v1593 = vld [vmem:[%s15] sm:$0x7]
        %v1594 = vld [vmem:[%s16] sm:$0x7]
        %v1595 = vpack.c.bf16 %v1496, %v1496
        %v1596 = vpack.c.bf16 %v1500, %v1497
        %v1597 = vpack.c.bf16 %v1501, %v1498
        %v1598 = vpack.c.bf16 %v1502, %v1499
        %v1599 = vpack.c.bf16 %v1506, %v1503
        %v1600 = vpack.c.bf16 %v1507, %v1504
        %v1601 = vpack.c.bf16 %v1508, %v1505
        %v1602 = vpack.c.bf16 %v1512, %v1509
        %v1603 = vpack.c.bf16 %v1513, %v1510
        %v1604 = vpack.c.bf16 %v1514, %v1511
        %v1605 = vpack.c.bf16 %v1518, %v1515
        %v1606 = vpack.c.bf16 %v1519, %v1516
        %v1607 = vpack.c.bf16 %v1520, %v1517
        %v1608 = vpack.c.bf16 %v1524, %v1521
        %v1609 = vpack.c.bf16 %v1525, %v1522
        %v1610 = vpack.c.bf16 %v1526, %v1523
        %v1611 = vpack.c.bf16 %v1530, %v1527
        %v1612 = vpack.c.bf16 %v1531, %v1528
        %v1613 = vpack.c.bf16 %v1532, %v1529
        %v1614 = vpack.c.bf16 %v1536, %v1533
        %v1615 = vpack.c.bf16 %v1537, %v1534
        %v1616 = vpack.c.bf16 %v1538, %v1535
        %v1617 = vpack.c.bf16 %v1542, %v1539
        %v1618 = vpack.c.bf16 %v1543, %v1540
        %v1619 = vpack.c.bf16 %v1544, %v1541
        %v1621 = vlaneseq
        %v1622 = vshrl.u32 %v1621, 7
        %v1623 = vsub.s32 0, %v1622
        %v1624 = vrot.slane %v1593, %v1623
        %v1625 = vlaneseq
        %v1626 = vshrl.u32 %v1625, 7
        %v1627 = vsub.s32 1, %v1626
        %v1628 = vrot.slane %v1593, %v1627
        %v1629 = vlaneseq
        %v1630 = vshrl.u32 %v1629, 7
        %v1631 = vsub.s32 2, %v1630
        %v1632 = vrot.slane %v1593, %v1631
        %1636 = vmatprep.subr.bf16.mxu0 %v1618
        %1637 = vmatpush1.bf16.msra.mxu0 %v1617
        %1638 = vmatprep.subr.bf16.mxu0 %v1615
        %1639 = vmatpush1.bf16.msra.mxu0 %v1614
        %1640 = vmatprep.subr.bf16.mxu0 %v1612
        %1641 = vmatpush1.bf16.msra.mxu0 %v1611
        %1642 = vmatprep.subr.bf16.mxu0 %v1609
        %1643 = vmatpush1.bf16.msra.mxu0 %v1608
        %1644 = vmatprep.subr.bf16.mxu0 %v1606
        %1645 = vmatpush1.bf16.msra.mxu0 %v1605
        %1646 = vmatprep.subr.bf16.mxu0 %v1603
        %1647 = vmatpush1.bf16.msra.mxu0 %v1602
        %1648 = vmatprep.subr.bf16.mxu0 %v1600
        %1649 = vmatpush1.bf16.msra.mxu0 %v1599
        %1650 = vmatprep.subr.bf16.mxu0 %v1597
        %1651 = vmatpush1.bf16.msra.mxu0 %v1596
        %1652 = vmatprep.subr.bf16.mxu0 0
        %1653 = vmatpush2.bf16.msra.mxu0 0
        %1654 = vmatprep.subr.bf16.mxu0 0
        %1655 = vmatpush2.bf16.msra.mxu0 0
        %1656 = vmatprep.subr.bf16.mxu0 0
        %1657 = vmatpush2.bf16.msra.mxu0 0
        %1658 = vmatprep.subr.bf16.mxu0 0
        %1659 = vmatpush2.bf16.msra.mxu0 0
        %1660 = vmatprep.subr.bf16.mxu0 0
        %1661 = vmatpush2.bf16.msra.mxu0 0
        %1662 = vmatprep.subr.bf16.mxu0 0
        %1663 = vmatpush2.bf16.msra.mxu0 0
        %1664 = vmatprep.subr.bf16.mxu0 0
        %1665 = vmatpush2.bf16.msra.mxu0 0
        %1666 = vmatprep.subr.bf16.mxu0 0
        %1667 = vmatpush2.bf16.msra.mxu0 0
        %1668 = vmatprep.mubr.bf16.mxu0 0
        %1669 = vmatmul.mubr.bf16.gmra.mxu0 %v1595
        %v1670 = vpop.f32.mrf.mxu0
        %v1671 = vadd.f32 %v1624, %v1670
        %v1672 = vpop.f32.mrf.mxu0
        %v1673 = vadd.f32 %v1628, %v1672
        %v1674 = vpop.f32.mrf.mxu0
        %v1675 = vpop.f32.mrf.mxu0
        %1676 = vdwg.mxu0
        %1677 = vmatprep.subr.bf16.mxu0 0
        %1678 = vmatpush1.bf16.msra.mxu0 %v1619
        %1679 = vmatprep.subr.bf16.mxu0 0
        %1680 = vmatpush1.bf16.msra.mxu0 %v1616
        %1681 = vmatprep.subr.bf16.mxu0 0
        %1682 = vmatpush1.bf16.msra.mxu0 %v1613
        %1683 = vmatprep.subr.bf16.mxu0 0
        %1684 = vmatpush1.bf16.msra.mxu0 %v1610
        %1685 = vmatprep.subr.bf16.mxu0 0
        %1686 = vmatpush1.bf16.msra.mxu0 %v1607
        %1687 = vmatprep.subr.bf16.mxu0 0
        %1688 = vmatpush1.bf16.msra.mxu0 %v1604
        %1689 = vmatprep.subr.bf16.mxu0 0
        %1690 = vmatpush1.bf16.msra.mxu0 %v1601
        %1691 = vmatprep.subr.bf16.mxu0 0
        %1692 = vmatpush1.bf16.msra.mxu0 %v1598
        %1693 = vmatprep.subr.bf16.mxu0 0
        %1694 = vmatpush2.bf16.msra.mxu0 0
        %1695 = vmatprep.subr.bf16.mxu0 0
        %1696 = vmatpush2.bf16.msra.mxu0 0
        %1697 = vmatprep.subr.bf16.mxu0 0
        %1698 = vmatpush2.bf16.msra.mxu0 0
        %1699 = vmatprep.subr.bf16.mxu0 0
        %1700 = vmatpush2.bf16.msra.mxu0 0
        %1701 = vmatprep.subr.bf16.mxu0 0
        %1702 = vmatpush2.bf16.msra.mxu0 0
        %1703 = vmatprep.subr.bf16.mxu0 0
        %1704 = vmatpush2.bf16.msra.mxu0 0
        %1705 = vmatprep.subr.bf16.mxu0 0
        %1706 = vmatpush2.bf16.msra.mxu0 0
        %1707 = vmatprep.subr.bf16.mxu0 0
        %1708 = vmatpush2.bf16.msra.mxu0 0
        %1709 = vmatprep.mubr.bf16.mxu0 0
        %1710 = vmatmul.mubr.bf16.gmra.mxu0 %v1595
        %v1711 = vpop.f32.mrf.mxu0
        %v1712 = vadd.f32 %v1632, %v1711
        %v1713 = vpop.f32.mrf.mxu0
        %v1714 = vpop.f32.mrf.mxu0
        %v1715 = vpop.f32.mrf.mxu0
        %1716 = vdwg.mxu0
        %v1717 = vpack.c.bf16 %v722, %v722
        %v1718 = vpack.c.bf16 %v1548, %v1545
        %v1719 = vpack.c.bf16 %v1549, %v1546
        %v1720 = vpack.c.bf16 %v1550, %v1547
        %v1721 = vpack.c.bf16 %v1554, %v1551
        %v1722 = vpack.c.bf16 %v1555, %v1552
        %v1723 = vpack.c.bf16 %v1556, %v1553
        %v1724 = vpack.c.bf16 %v1560, %v1557
        %v1725 = vpack.c.bf16 %v1561, %v1558
        %v1726 = vpack.c.bf16 %v1562, %v1559
        %v1727 = vpack.c.bf16 %v1566, %v1563
        %v1728 = vpack.c.bf16 %v1567, %v1564
        %v1729 = vpack.c.bf16 %v1568, %v1565
        %v1730 = vpack.c.bf16 %v1572, %v1569
        %v1731 = vpack.c.bf16 %v1573, %v1570
        %v1732 = vpack.c.bf16 %v1574, %v1571
        %v1733 = vpack.c.bf16 %v1578, %v1575
        %v1734 = vpack.c.bf16 %v1579, %v1576
        %v1735 = vpack.c.bf16 %v1580, %v1577
        %v1736 = vpack.c.bf16 %v1584, %v1581
        %v1737 = vpack.c.bf16 %v1585, %v1582
        %v1738 = vpack.c.bf16 %v1586, %v1583
        %v1739 = vpack.c.bf16 %v1590, %v1587
        %v1740 = vpack.c.bf16 %v1591, %v1588
        %v1741 = vpack.c.bf16 %v1592, %v1589
        %v1743 = vlaneseq
        %v1744 = vshrl.u32 %v1743, 7
        %v1745 = vsub.s32 0, %v1744
        %v1746 = vrot.slane %v1594, %v1745
        %v1747 = vlaneseq
        %v1748 = vshrl.u32 %v1747, 7
        %v1749 = vsub.s32 1, %v1748
        %v1750 = vrot.slane %v1594, %v1749
        %v1751 = vlaneseq
        %v1752 = vshrl.u32 %v1751, 7
        %v1753 = vsub.s32 2, %v1752
        %v1754 = vrot.slane %v1594, %v1753
        %1758 = vmatprep.subr.bf16.mxu0 %v1740
        %1759 = vmatpush1.bf16.msra.mxu0 %v1739
        %1760 = vmatprep.subr.bf16.mxu0 %v1737
        %1761 = vmatpush1.bf16.msra.mxu0 %v1736
        %1762 = vmatprep.subr.bf16.mxu0 %v1734
        %1763 = vmatpush1.bf16.msra.mxu0 %v1733
        %1764 = vmatprep.subr.bf16.mxu0 %v1731
        %1765 = vmatpush1.bf16.msra.mxu0 %v1730
        %1766 = vmatprep.subr.bf16.mxu0 %v1728
        %1767 = vmatpush1.bf16.msra.mxu0 %v1727
        %1768 = vmatprep.subr.bf16.mxu0 %v1725
        %1769 = vmatpush1.bf16.msra.mxu0 %v1724
        %1770 = vmatprep.subr.bf16.mxu0 %v1722
        %1771 = vmatpush1.bf16.msra.mxu0 %v1721
        %1772 = vmatprep.subr.bf16.mxu0 %v1719
        %1773 = vmatpush1.bf16.msra.mxu0 %v1718
        %1774 = vmatprep.subr.bf16.mxu0 0
        %1775 = vmatpush2.bf16.msra.mxu0 0
        %1776 = vmatprep.subr.bf16.mxu0 0
        %1777 = vmatpush2.bf16.msra.mxu0 0
        %1778 = vmatprep.subr.bf16.mxu0 0
        %1779 = vmatpush2.bf16.msra.mxu0 0
        %1780 = vmatprep.subr.bf16.mxu0 0
        %1781 = vmatpush2.bf16.msra.mxu0 0
        %1782 = vmatprep.subr.bf16.mxu0 0
        %1783 = vmatpush2.bf16.msra.mxu0 0
        %1784 = vmatprep.subr.bf16.mxu0 0
        %1785 = vmatpush2.bf16.msra.mxu0 0
        %1786 = vmatprep.subr.bf16.mxu0 0
        %1787 = vmatpush2.bf16.msra.mxu0 0
        %1788 = vmatprep.subr.bf16.mxu0 0
        %1789 = vmatpush2.bf16.msra.mxu0 0
        %1790 = vmatprep.mubr.bf16.mxu0 0
        %1791 = vmatmul.mubr.bf16.gmra.mxu0 %v1717
        %v1792 = vpop.f32.mrf.mxu0
        %v1793 = vadd.f32 %v1746, %v1792
        %v1794 = vpop.f32.mrf.mxu0
        %v1795 = vadd.f32 %v1750, %v1794
        %v1796 = vpop.f32.mrf.mxu0
        %v1797 = vpop.f32.mrf.mxu0
        %1798 = vdwg.mxu0
        %1799 = vmatprep.subr.bf16.mxu0 0
        %1800 = vmatpush1.bf16.msra.mxu0 %v1741
        %1801 = vmatprep.subr.bf16.mxu0 0
        %1802 = vmatpush1.bf16.msra.mxu0 %v1738
        %1803 = vmatprep.subr.bf16.mxu0 0
        %1804 = vmatpush1.bf16.msra.mxu0 %v1735
        %1805 = vmatprep.subr.bf16.mxu0 0
        %1806 = vmatpush1.bf16.msra.mxu0 %v1732
        %1807 = vmatprep.subr.bf16.mxu0 0
        %1808 = vmatpush1.bf16.msra.mxu0 %v1729
        %1809 = vmatprep.subr.bf16.mxu0 0
        %1810 = vmatpush1.bf16.msra.mxu0 %v1726
        %1811 = vmatprep.subr.bf16.mxu0 0
        %1812 = vmatpush1.bf16.msra.mxu0 %v1723
        %1813 = vmatprep.subr.bf16.mxu0 0
        %1814 = vmatpush1.bf16.msra.mxu0 %v1720
        %1815 = vmatprep.subr.bf16.mxu0 0
        %1816 = vmatpush2.bf16.msra.mxu0 0
        %1817 = vmatprep.subr.bf16.mxu0 0
        %1818 = vmatpush2.bf16.msra.mxu0 0
        %1819 = vmatprep.subr.bf16.mxu0 0
        %1820 = vmatpush2.bf16.msra.mxu0 0
        %1821 = vmatprep.subr.bf16.mxu0 0
        %1822 = vmatpush2.bf16.msra.mxu0 0
        %1823 = vmatprep.subr.bf16.mxu0 0
        %1824 = vmatpush2.bf16.msra.mxu0 0
        %1825 = vmatprep.subr.bf16.mxu0 0
        %1826 = vmatpush2.bf16.msra.mxu0 0
        %1827 = vmatprep.subr.bf16.mxu0 0
        %1828 = vmatpush2.bf16.msra.mxu0 0
        %1829 = vmatprep.subr.bf16.mxu0 0
        %1830 = vmatpush2.bf16.msra.mxu0 0
        %1831 = vmatprep.mubr.bf16.mxu0 0
        %1832 = vmatmul.mubr.bf16.gmra.mxu0 %v1717
        %v1833 = vpop.f32.mrf.mxu0
        %v1834 = vadd.f32 %v1754, %v1833
        %v1835 = vpop.f32.mrf.mxu0
        %v1836 = vpop.f32.mrf.mxu0
        %v1837 = vpop.f32.mrf.mxu0
        %1838 = vdwg.mxu0
        %v1839 = vadd.f32 %v1671, %v1793
        %v1840 = vxor.u32 %v1839, 2147483648
        %v1841 = vmul.f32 %v1840, 1.442695
        %v1842 = vpow.pop %v1841
        %v1843 = vadd.f32 %v1842, 1.0
        %v1844 = vrcp.pop %v1843
        %v1845 = vmul.f32 1.0, %v1844
        %v1846 = vadd.f32 %v1673, %v1795
        %v1847 = vxor.u32 %v1846, 2147483648
        %v1848 = vmul.f32 %v1847, 1.442695
        %v1849 = vpow.pop %v1848
        %v1850 = vadd.f32 %v1849, 1.0
        %v1851 = vrcp.pop %v1850
        %v1852 = vmul.f32 1.0, %v1851
        %v1853 = vmul.f32 %v1845, %v1834
        %v1854 = vadd.f32 %v1712, %v1853
        %v1855 = vtanh.pop %v1854
        %v1856 = vsub.f32 1.0, %v1852
        %v1857 = vmul.f32 %v1856, %v1855
        %v1858 = vmul.f32 %v1852, %v722
        %v1859 = vadd.f32 %v1857, %v1858
        %v1860 = vmax.f32 %v1859, 0.0
        %1861 = vst [vmem:[%s640] sm:$0xff] %v1860
        %p1862 = scmp.lt.s32.totalorder %s32, 1
        %s1863 = scalar_select %p1862, %s32, 1
        %s1864 = smul.addr %s1863, 8
        %s1865 = scalar_lea.vmem %s18, %s1864
        // Predicated region
        $region101: #{attentive_fp_dense_forward.3} parent=91 // pred_check
          %p1866 = pneg %p443
        $region102: #{attentive_fp_dense_forward.3} parent=91 // pred_check_branch
          %1868 = sbr.rel (%p1866) target = $region104
        $region103: #{attentive_fp_dense_forward.3} parent=91 // pred_region
          _
        $region104: #{attentive_fp_dense_forward.3} parent=91 // pred_fallthru
          _
      $region92: #{attentive_fp_dense_forward.3} parent=5 // pred_fallthru
        _
      %p1869 = scmp.le.s32.totalorder 2, %s27
      // Predicated region
      $region105: #{attentive_fp_dense_forward.3} parent=5 // pred_check
        %p1870 = pneg %p1869
      $region106: #{attentive_fp_dense_forward.3} parent=5 // pred_check_branch
        %1872 = sbr.rel (%p1870) target = $region108
      $region107: #{attentive_fp_dense_forward.3} parent=5 // pred_region
        %s1873 = ssub.s32 %s27, 2
        // Predicated region
        $region109: #{attentive_fp_dense_forward.3} parent=107 // pred_check
          %p1874 = pneg %p449
        $region110: #{attentive_fp_dense_forward.3} parent=107 // pred_check_branch
          %1876 = sbr.rel (%p1874) target = $region112
        $region111: #{attentive_fp_dense_forward.3} parent=107 // pred_region
          %p1877 = scmp.lt.s32.totalorder %s33, 1
          %s1878 = scalar_select %p1877, %s33, 1
          %s1879 = smul.addr %s1878, 8
          %s1880 = scalar_lea.vmem %s18, %s1879
        $region112: #{attentive_fp_dense_forward.3} parent=107 // pred_fallthru
          _
      $region108: #{attentive_fp_dense_forward.3} parent=5 // pred_fallthru
        _
    $region6: #{attentive_fp_dense_forward.3} parent=1 // loop_footer
      %s31 = sadd.s32 1, %s27
    $region7: #{attentive_fp_dense_forward.3} parent=1 // loop_footer_branch
      %26 = sbr.rel target = $region3
    $region8: #{attentive_fp_dense_forward.3} parent=1 // loop_exit
      _
    %1881 = vsyncpa [#allocation4], 1
    %s1882 = scalar_lea.sflag [#allocation4], 1
    %1883 = vsyncpa %s1882, 1
    %1884 = vsyncpa [#allocation6], 1

// kernel: attentive_fp_dense_forward.5
$region0: #{attentive_fp_dense_forward.5}
  #allocation0 [shape = 'u32[]', space=smem, size = 0x4, offset = 0x4, fixed_abs, tag = 'smem constant byte address 0x4 - core index']
  #allocation1 [shape = 'u32[144,128]{1,0:T(1,128)}', space=vmem, size = 0x12000, scoped, tag = 'internal scratch']
  #allocation2 [shape = 'f32[1,1]{1,0:T(1,128)S(1)}', space=vmem, size = 0x200, scoped, tag = 'scoped memory for attentive_fp_dense_forward.5']
  %s0 = inlined_call_operand.vmem [shape: f32[16,128], index: 0, kind: input, shape index: {}]
  %s1 = inlined_call_operand.vmem [shape: f32[2,1,128], index: 1, kind: input, shape index: {}]
  %s2 = inlined_call_operand.vmem [shape: f32[2,1,128], index: 2, kind: input, shape index: {}]
  %s3 = inlined_call_operand.vmem [shape: f32[2,1], index: 3, kind: input, shape index: {}]
  %s4 = inlined_call_operand.vmem [shape: f32[2,128,128], index: 4, kind: input, shape index: {}]
  %s5 = inlined_call_operand.vmem [shape: f32[2,1,128], index: 5, kind: input, shape index: {}]
  %s6 = inlined_call_operand.vmem [shape: f32[2,128,384], index: 6, kind: input, shape index: {}]
  %s7 = inlined_call_operand.vmem [shape: f32[2,128,384], index: 7, kind: input, shape index: {}]
  %s8 = inlined_call_operand.vmem [shape: f32[2,1,384], index: 8, kind: input, shape index: {}]
  %s9 = inlined_call_operand.vmem [shape: f32[2,1,384], index: 9, kind: input, shape index: {}]
  %s10 = inlined_call_operand.vmem [shape: f32[128,128], index: 10, kind: input, shape index: {}]
  %s11 = inlined_call_operand.vmem [shape: f32[1,128], index: 11, kind: input, shape index: {}]
  %s12 = inlined_call_operand.vmem [shape: f32[128,1], index: 12, kind: input, shape index: {}]
  %s13 = inlined_call_operand.<no memory space> [shape: f32[1,1], index: 13, kind: input, shape index: {}]
  %s14 = inlined_call_operand.hbm [shape: f32[1,1], index: 14, kind: output, shape index: {}]
  %s15 = sld [smem:[#allocation0]]
  $region70: #{attentive_fp_dense_forward.5} parent=0
    _
  %s17 = ssub.s32 1, %s15
  %s18 = scalar_select 0, %s17, %s15
  %v19 = vstv %s13
  %20 = vst [vmem:[#allocation2] sm:$0x1] %v19
  $region1: #{attentive_fp_dense_forward.5} parent=0
    #allocation3 [shape = 'u8[1024]{0}', space=smem, size = 0x400, scoped, tag = 'input window, operand 3, single buffered']
    #allocation4 [shape = 's32[1]{0}', space=sflag, size = 0x4, scoped, tag = 'scoped memory for attentive_fp_dense_forward.5']
    #allocation5 [shape = 's32[1]{0}', space=sflag, size = 0x4, scoped, tag = 'scoped memory for attentive_fp_dense_forward.5']
    #allocation6 [shape = 'u8[512]{0}', space=vmem, size = 0x400, scoped, tag = 'output window, operand 0, single buffered']
    %21 = vsyncpa [#allocation5], 0
    %22 = vsyncpa [#allocation4], 0
    // Predicated region
    $region2: #{attentive_fp_dense_forward.5} parent=1 // pred_check
      _
    $region3: #{attentive_fp_dense_forward.5} parent=1 // pred_check_branch
      %24 = sbr.rel (0) target = $region5
    $region4: #{attentive_fp_dense_forward.5} parent=1 // pred_region
      _
    $region5: #{attentive_fp_dense_forward.5} parent=1 // pred_fallthru
      _
    // Predicated region
    $region6: #{attentive_fp_dense_forward.5} parent=1 // pred_check
      _
    $region7: #{attentive_fp_dense_forward.5} parent=1 // pred_check_branch
      %26 = sbr.rel (0) target = $region9
    $region8: #{attentive_fp_dense_forward.5} parent=1 // pred_region
      _
    $region9: #{attentive_fp_dense_forward.5} parent=1 // pred_fallthru
      _
    // Predicated region
    $region10: #{attentive_fp_dense_forward.5} parent=1 // pred_check
      _
    $region11: #{attentive_fp_dense_forward.5} parent=1 // pred_check_branch
      %28 = sbr.rel (0) target = $region13
    $region12: #{attentive_fp_dense_forward.5} parent=1 // pred_region
      _
    $region13: #{attentive_fp_dense_forward.5} parent=1 // pred_fallthru
      _
    // Predicated region
    $region14: #{attentive_fp_dense_forward.5} parent=1 // pred_check
      _
    $region15: #{attentive_fp_dense_forward.5} parent=1 // pred_check_branch
      %30 = sbr.rel (0) target = $region17
    $region16: #{attentive_fp_dense_forward.5} parent=1 // pred_region
      %s32 = ssub.s32 32, 32
      %33 = vsyncadd [#allocation5], %s32
      %s35 = sshll.u32 %s3, 4
      %s36 = int_to_ptr.vmem [resolvable:$true] %s35
      %38 = dma.vmem_to_smem %s36, 32, [#allocation3], [#allocation5]
    $region17: #{attentive_fp_dense_forward.5} parent=1 // pred_fallthru
      _
    // Predicated region
    $region18: #{attentive_fp_dense_forward.5} parent=1 // pred_check
      _
    $region19: #{attentive_fp_dense_forward.5} parent=1 // pred_check_branch
      %40 = sbr.rel (0) target = $region21
    $region20: #{attentive_fp_dense_forward.5} parent=1 // pred_region
      _
    $region21: #{attentive_fp_dense_forward.5} parent=1 // pred_fallthru
      _
    // Predicated region
    $region22: #{attentive_fp_dense_forward.5} parent=1 // pred_check
      _
    $region23: #{attentive_fp_dense_forward.5} parent=1 // pred_check_branch
      %42 = sbr.rel (0) target = $region25
    $region24: #{attentive_fp_dense_forward.5} parent=1 // pred_region
      _
    $region25: #{attentive_fp_dense_forward.5} parent=1 // pred_fallthru
      _
    // Predicated region
    $region26: #{attentive_fp_dense_forward.5} parent=1 // pred_check
      _
    $region27: #{attentive_fp_dense_forward.5} parent=1 // pred_check_branch
      %44 = sbr.rel (0) target = $region29
    $region28: #{attentive_fp_dense_forward.5} parent=1 // pred_region
      _
    $region29: #{attentive_fp_dense_forward.5} parent=1 // pred_fallthru
      _
    // Predicated region
    $region30: #{attentive_fp_dense_forward.5} parent=1 // pred_check
      _
    $region31: #{attentive_fp_dense_forward.5} parent=1 // pred_check_branch
      %46 = sbr.rel (0) target = $region33
    $region32: #{attentive_fp_dense_forward.5} parent=1 // pred_region
      _
    $region33: #{attentive_fp_dense_forward.5} parent=1 // pred_fallthru
      _
    // Predicated region
    $region34: #{attentive_fp_dense_forward.5} parent=1 // pred_check
      _
    $region35: #{attentive_fp_dense_forward.5} parent=1 // pred_check_branch
      %48 = sbr.rel (0) target = $region37
    $region36: #{attentive_fp_dense_forward.5} parent=1 // pred_region
      _
    $region37: #{attentive_fp_dense_forward.5} parent=1 // pred_fallthru
      _
    // Predicated region
    $region38: #{attentive_fp_dense_forward.5} parent=1 // pred_check
      _
    $region39: #{attentive_fp_dense_forward.5} parent=1 // pred_check_branch
      %50 = sbr.rel (0) target = $region41
    $region40: #{attentive_fp_dense_forward.5} parent=1 // pred_region
      _
    $region41: #{attentive_fp_dense_forward.5} parent=1 // pred_fallthru
      _
    // Predicated region
    $region42: #{attentive_fp_dense_forward.5} parent=1 // pred_check
      _
    $region43: #{attentive_fp_dense_forward.5} parent=1 // pred_check_branch
      %52 = sbr.rel (0) target = $region45
    $region44: #{attentive_fp_dense_forward.5} parent=1 // pred_region
      _
    $region45: #{attentive_fp_dense_forward.5} parent=1 // pred_fallthru
      _
    // Predicated region
    $region46: #{attentive_fp_dense_forward.5} parent=1 // pred_check
      _
    $region47: #{attentive_fp_dense_forward.5} parent=1 // pred_check_branch
      %54 = sbr.rel (0) target = $region49
    $region48: #{attentive_fp_dense_forward.5} parent=1 // pred_region
      _
    $region49: #{attentive_fp_dense_forward.5} parent=1 // pred_fallthru
      _
    // Predicated region
    $region50: #{attentive_fp_dense_forward.5} parent=1 // pred_check
      _
    $region51: #{attentive_fp_dense_forward.5} parent=1 // pred_check_branch
      %56 = sbr.rel (0) target = $region53
    $region52: #{attentive_fp_dense_forward.5} parent=1 // pred_region
      _
    $region53: #{attentive_fp_dense_forward.5} parent=1 // pred_fallthru
      _
    // Predicated region
    $region54: #{attentive_fp_dense_forward.5} parent=1 // pred_check
      _
    $region55: #{attentive_fp_dense_forward.5} parent=1 // pred_check_branch
      %58 = sbr.rel (0) target = $region57
    $region56: #{attentive_fp_dense_forward.5} parent=1 // pred_region
      _
    $region57: #{attentive_fp_dense_forward.5} parent=1 // pred_fallthru
      _
    // Predicated region
    $region58: #{attentive_fp_dense_forward.5} parent=1 // pred_check
      _
    $region59: #{attentive_fp_dense_forward.5} parent=1 // pred_check_branch
      %60 = sbr.rel (0) target = $region61
    $region60: #{attentive_fp_dense_forward.5} parent=1 // pred_region
      %61 = dma.done [#allocation5], 32
    $region61: #{attentive_fp_dense_forward.5} parent=1 // pred_fallthru
      _
    %62 = sfence
    %v64 = vld [vmem:[%s0] sm:$0xff]
    %v65 = vld [vmem:[%s0 + $0x8] sm:$0xff]
    %v66 = vadd.f32 %v64, %v65
    %v67 = vrot.slane %v66, 4
    %v68 = vadd.f32 %v66, %v67
    %v69 = vrot.slane %v68, 2
    %v70 = vadd.f32 %v68, %v69
    %v71 = vrot.slane %v70, 1
    %v72 = vadd.f32 %v70, %v71
    %v73 = vmax.f32 %v72, 0.0
    %v74 = vld [vmem:[%s1] sm:$0x1]
    %v75 = vmul.f32 %v73, %v74
    %vm76 = vcmask 1040384
    %v77 = vsel %vm76, %v75, 0.0
    %78 = vadd.xlane.f32.xlu0 %v77
    %v79 = vpop.xlane.xlu0 %78
    %v80 = vld [vmem:[%s2] sm:$0x1]
    %81 = vmatprep.subr.mxu0 0.0
    %82 = vmatpush1.xpose.msra.mxu0 0.0
    %83 = vmatprep.subr.mxu0 0.0
    %84 = vmatpush1.xpose.msra.mxu0 0.0
    %85 = vmatprep.subr.mxu0 0.0
    %86 = vmatpush1.xpose.msra.mxu0 0.0
    %87 = vmatprep.subr.mxu0 0.0
    %88 = vmatpush1.xpose.msra.mxu0 0.0
    %89 = vmatprep.subr.mxu0 0.0
    %90 = vmatpush1.xpose.msra.mxu0 0.0
    %91 = vmatprep.subr.mxu0 0.0
    %92 = vmatpush1.xpose.msra.mxu0 0.0
    %93 = vmatprep.subr.mxu0 0.0
    %94 = vmatpush1.xpose.msra.mxu0 0.0
    %95 = vmatprep.subr.mxu0 0.0
    %96 = vmatpush1.xpose.msra.mxu0 0.0
    %97 = vmatprep.subr.mxu0 0.0
    %98 = vmatpush1.xpose.msra.mxu0 0.0
    %99 = vmatprep.subr.mxu0 0.0
    %100 = vmatpush1.xpose.msra.mxu0 0.0
    %101 = vmatprep.subr.mxu0 0.0
    %102 = vmatpush1.xpose.msra.mxu0 0.0
    %103 = vmatprep.subr.mxu0 0.0
    %104 = vmatpush1.xpose.msra.mxu0 0.0
    %105 = vmatprep.subr.mxu0 0.0
    %106 = vmatpush1.xpose.msra.mxu0 0.0
    %107 = vmatprep.subr.mxu0 0.0
    %108 = vmatpush1.xpose.msra.mxu0 0.0
    %109 = vmatprep.subr.mxu0 0.0
    %110 = vmatpush1.xpose.msra.mxu0 %v65
    %111 = vmatprep.subr.mxu0 0.0
    %112 = vmatpush1.xpose.msra.mxu0 %v64
    %113 = vmatprep.subr.mxu0 0.0
    %114 = vmatpush2.xpose.msra.mxu0 0.0
    %115 = vmatprep.subr.mxu0 0.0
    %116 = vmatpush2.xpose.msra.mxu0 0.0
    %117 = vmatprep.subr.mxu0 0.0
    %118 = vmatpush2.xpose.msra.mxu0 0.0
    %119 = vmatprep.subr.mxu0 0.0
    %120 = vmatpush2.xpose.msra.mxu0 0.0
    %121 = vmatprep.subr.mxu0 0.0
    %122 = vmatpush2.xpose.msra.mxu0 0.0
    %123 = vmatprep.subr.mxu0 0.0
    %124 = vmatpush2.xpose.msra.mxu0 0.0
    %125 = vmatprep.subr.mxu0 0.0
    %126 = vmatpush2.xpose.msra.mxu0 0.0
    %127 = vmatprep.subr.mxu0 0.0
    %128 = vmatpush2.xpose.msra.mxu0 0.0
    %129 = vmatprep.subr.mxu0 0.0
    %130 = vmatpush2.xpose.msra.mxu0 0.0
    %131 = vmatprep.subr.mxu0 0.0
    %132 = vmatpush2.xpose.msra.mxu0 0.0
    %133 = vmatprep.subr.mxu0 0.0
    %134 = vmatpush2.xpose.msra.mxu0 0.0
    %135 = vmatprep.subr.mxu0 0.0
    %136 = vmatpush2.xpose.msra.mxu0 0.0
    %137 = vmatprep.subr.mxu0 0.0
    %138 = vmatpush2.xpose.msra.mxu0 0.0
    %139 = vmatprep.subr.mxu0 0.0
    %140 = vmatpush2.xpose.msra.mxu0 0.0
    %141 = vmatprep.subr.mxu0 0.0
    %142 = vmatpush2.xpose.msra.mxu0 0.0
    %143 = vmatprep.subr.mxu0 0.0
    %144 = vmatpush2.xpose.msra.mxu0 0.0
    %145 = vmatprep.mubr.f32.mxu0 0.0
    %146 = vmatmul.mubr.f32.gmra.mxu0 %v80
    %v147 = vpop.f32.mrf.mxu0
    %v148 = vadd.f32 0.0, %v147
    %v149 = vpop.f32.mrf.mxu0
    %150 = vdwg.mxu0
    %v151 = vadd.f32 %v79, %v148
    %s152 = sld [smem:[#allocation3]]
    %v153 = vstv %s152
    %v154 = vadd.f32 %v151, %v153
    %vm155 = vcmp.gt.f32.partialorder %v154, 0.0
    %v156 = vmul.f32 %v154, 0.01
    %v157 = vsel %vm155, %v154, %v156
    %vm158 = vcmask 122880
    %v159 = vsel %vm158, %v157, -inf
    %160 = vmax.xlane.f32.xlu0 %v159
    %v161 = vpop.xlane.xlu0 %160
    %v162 = vsub.f32 %v157, %v161
    %v163 = vmul.f32 %v162, 1.442695
    %v164 = vpow.pop %v163
    %v165 = vsel %vm158, %v164, 0.0
    %166 = vadd.xlane.f32.xlu0 %v165
    %v167 = vpop.xlane.xlu0 %166
    %v168 = vrcp.pop %v167
    %v169 = vmul.f32 %v164, %v168
    %v170 = vld [vmem:[%s4] sm:$0xff]
    %v171 = vld [vmem:[%s4 + $0x8] sm:$0xff]
    %v172 = vld [vmem:[%s4 + $0x10] sm:$0xff]
    %v173 = vld [vmem:[%s4 + $0x18] sm:$0xff]
    %v174 = vld [vmem:[%s4 + $0x20] sm:$0xff]
    %v175 = vld [vmem:[%s4 + $0x28] sm:$0xff]
    %v176 = vld [vmem:[%s4 + $0x30] sm:$0xff]
    %v177 = vld [vmem:[%s4 + $0x38] sm:$0xff]
    %v178 = vld [vmem:[%s4 + $0x40] sm:$0xff]
    %v179 = vld [vmem:[%s4 + $0x48] sm:$0xff]
    %v180 = vld [vmem:[%s4 + $0x50] sm:$0xff]
    %v181 = vld [vmem:[%s4 + $0x58] sm:$0xff]
    %v182 = vld [vmem:[%s4 + $0x60] sm:$0xff]
    %v183 = vld [vmem:[%s4 + $0x68] sm:$0xff]
    %v184 = vld [vmem:[%s4 + $0x70] sm:$0xff]
    %v185 = vld [vmem:[%s4 + $0x78] sm:$0xff]
    %v186 = vpack.c.bf16 %v65, %v64
    %v187 = vpack.c.bf16 %v171, %v170
    %v188 = vpack.c.bf16 %v173, %v172
    %v189 = vpack.c.bf16 %v175, %v174
    %v190 = vpack.c.bf16 %v177, %v176
    %v191 = vpack.c.bf16 %v179, %v178
    %v192 = vpack.c.bf16 %v181, %v180
    %v193 = vpack.c.bf16 %v183, %v182
    %v194 = vpack.c.bf16 %v185, %v184
    %v195 = vld [vmem:[%s5] sm:$0x1]
    %v197 = vlaneseq
    %v198 = vshrl.u32 %v197, 7
    %v199 = vsub.s32 0, %v198
    %v200 = vrot.slane %v195, %v199
    %202 = vmatprep.subr.bf16.mxu0 0
    %203 = vmatpush1.bf16.msra.mxu0 %v194
    %204 = vmatprep.subr.bf16.mxu0 0
    %205 = vmatpush1.bf16.msra.mxu0 %v193
    %206 = vmatprep.subr.bf16.mxu0 0
    %207 = vmatpush1.bf16.msra.mxu0 %v192
    %208 = vmatprep.subr.bf16.mxu0 0
    %209 = vmatpush1.bf16.msra.mxu0 %v191
    %210 = vmatprep.subr.bf16.mxu0 0
    %211 = vmatpush1.bf16.msra.mxu0 %v190
    %212 = vmatprep.subr.bf16.mxu0 0
    %213 = vmatpush1.bf16.msra.mxu0 %v189
    %214 = vmatprep.subr.bf16.mxu0 0
    %215 = vmatpush1.bf16.msra.mxu0 %v188
    %216 = vmatprep.subr.bf16.mxu0 0
    %217 = vmatpush1.bf16.msra.mxu0 %v187
    %218 = vmatprep.subr.bf16.mxu0 0
    %219 = vmatpush2.bf16.msra.mxu0 0
    %220 = vmatprep.subr.bf16.mxu0 0
    %221 = vmatpush2.bf16.msra.mxu0 0
    %222 = vmatprep.subr.bf16.mxu0 0
    %223 = vmatpush2.bf16.msra.mxu0 0
    %224 = vmatprep.subr.bf16.mxu0 0
    %225 = vmatpush2.bf16.msra.mxu0 0
    %226 = vmatprep.subr.bf16.mxu0 0
    %227 = vmatpush2.bf16.msra.mxu0 0
    %228 = vmatprep.subr.bf16.mxu0 0
    %229 = vmatpush2.bf16.msra.mxu0 0
    %230 = vmatprep.subr.bf16.mxu0 0
    %231 = vmatpush2.bf16.msra.mxu0 0
    %232 = vmatprep.subr.bf16.mxu0 0
    %233 = vmatpush2.bf16.msra.mxu0 0
    %234 = vmatprep.mubr.bf16.mxu0 0
    %235 = vmatmul.mubr.bf16.gmra.mxu0 %v186
    %v236 = vpop.f32.mrf.mxu0
    %v237 = vadd.f32 %v200, %v236
    %v238 = vpop.f32.mrf.mxu0
    %v239 = vpop.f32.mrf.mxu0
    %v240 = vadd.f32 %v200, %v239
    %v241 = vpop.f32.mrf.mxu0
    %242 = vdwg.mxu0
    %v243 = vpack.c.bf16 %v169, %v169
    %v244 = vpack.c.bf16 %v240, %v237
    %vm245 = vcmask 130048
    %v247 = vsel %vm245, %v243, 0
    %249 = vmatprep.subr.bf16.mxu0 0
    %250 = vmatpush1.bf16.msra.mxu0 0
    %251 = vmatprep.subr.bf16.mxu0 0
    %252 = vmatpush1.bf16.msra.mxu0 0
    %253 = vmatprep.subr.bf16.mxu0 0
    %254 = vmatpush1.bf16.msra.mxu0 0
    %255 = vmatprep.subr.bf16.mxu0 0
    %256 = vmatpush1.bf16.msra.mxu0 0
    %257 = vmatprep.subr.bf16.mxu0 0
    %258 = vmatpush1.bf16.msra.mxu0 0
    %259 = vmatprep.subr.bf16.mxu0 0
    %260 = vmatpush1.bf16.msra.mxu0 0
    %261 = vmatprep.subr.bf16.mxu0 0
    %262 = vmatpush1.bf16.msra.mxu0 0
    %263 = vmatprep.subr.bf16.mxu0 0
    %264 = vmatpush1.bf16.msra.mxu0 %v244
    %265 = vmatprep.subr.bf16.mxu0 0
    %266 = vmatpush2.bf16.msra.mxu0 0
    %267 = vmatprep.subr.bf16.mxu0 0
    %268 = vmatpush2.bf16.msra.mxu0 0
    %269 = vmatprep.subr.bf16.mxu0 0
    %270 = vmatpush2.bf16.msra.mxu0 0
    %271 = vmatprep.subr.bf16.mxu0 0
    %272 = vmatpush2.bf16.msra.mxu0 0
    %273 = vmatprep.subr.bf16.mxu0 0
    %274 = vmatpush2.bf16.msra.mxu0 0
    %275 = vmatprep.subr.bf16.mxu0 0
    %276 = vmatpush2.bf16.msra.mxu0 0
    %277 = vmatprep.subr.bf16.mxu0 0
    %278 = vmatpush2.bf16.msra.mxu0 0
    %279 = vmatprep.subr.bf16.mxu0 0
    %280 = vmatpush2.bf16.msra.mxu0 0
    %281 = vmatprep.mubr.bf16.mxu0 0
    %282 = vmatmul.mubr.bf16.gmra.mxu0 %v247
    %v283 = vpop.f32.mrf.mxu0
    %v284 = vadd.f32 0.0, %v283
    %v285 = vpop.f32.mrf.mxu0
    %v286 = vpop.f32.mrf.mxu0
    %v287 = vpop.f32.mrf.mxu0
    %288 = vdwg.mxu0
    %vm289 = vcmp.gt.f32.partialorder %v284, 0.0
    %v290 = vmin.f32 %v284, 0.0
    %v291 = vmul.f32 %v290, 1.442695
    %v292 = vpow.pop %v291
    %v293 = vsub.f32 %v292, 1.0
    %v294 = vsel %vm289, %v284, %v293
    %v295 = vld [vmem:[%s6] sm:$0xff]
    %v296 = vld [vmem:[%s6 + $0x8] sm:$0xff]
    %v297 = vld [vmem:[%s6 + $0x10] sm:$0xff]
    %v298 = vld [vmem:[%s6 + $0x18] sm:$0xff]
    %v299 = vld [vmem:[%s6 + $0x20] sm:$0xff]
    %v300 = vld [vmem:[%s6 + $0x28] sm:$0xff]
    %v301 = vld [vmem:[%s6 + $0x30] sm:$0xff]
    %v302 = vld [vmem:[%s6 + $0x38] sm:$0xff]
    %v303 = vld [vmem:[%s6 + $0x40] sm:$0xff]
    %v304 = vld [vmem:[%s6 + $0x48] sm:$0xff]
    %v305 = vld [vmem:[%s6 + $0x50] sm:$0xff]
    %v306 = vld [vmem:[%s6 + $0x58] sm:$0xff]
    %v307 = vld [vmem:[%s6 + $0x60] sm:$0xff]
    %v308 = vld [vmem:[%s6 + $0x68] sm:$0xff]
    %v309 = vld [vmem:[%s6 + $0x70] sm:$0xff]
    %v310 = vld [vmem:[%s6 + $0x78] sm:$0xff]
    %v311 = vld [vmem:[%s6 + $0x80] sm:$0xff]
    %v312 = vld [vmem:[%s6 + $0x88] sm:$0xff]
    %v313 = vld [vmem:[%s6 + $0x90] sm:$0xff]
    %v314 = vld [vmem:[%s6 + $0x98] sm:$0xff]
    %v315 = vld [vmem:[%s6 + $0xa0] sm:$0xff]
    %v316 = vld [vmem:[%s6 + $0xa8] sm:$0xff]
    %v317 = vld [vmem:[%s6 + $0xb0] sm:$0xff]
    %v318 = vld [vmem:[%s6 + $0xb8] sm:$0xff]
    %v319 = vld [vmem:[%s6 + $0xc0] sm:$0xff]
    %v320 = vld [vmem:[%s6 + $0xc8] sm:$0xff]
    %v321 = vld [vmem:[%s6 + $0xd0] sm:$0xff]
    %v322 = vld [vmem:[%s6 + $0xd8] sm:$0xff]
    %v323 = vld [vmem:[%s6 + $0xe0] sm:$0xff]
    %v324 = vld [vmem:[%s6 + $0xe8] sm:$0xff]
    %v325 = vld [vmem:[%s6 + $0xf0] sm:$0xff]
    %v326 = vld [vmem:[%s6 + $0xf8] sm:$0xff]
    %v327 = vld [vmem:[%s6 + $0x100] sm:$0xff]
    %v328 = vld [vmem:[%s6 + $0x108] sm:$0xff]
    %v329 = vld [vmem:[%s6 + $0x110] sm:$0xff]
    %v330 = vld [vmem:[%s6 + $0x118] sm:$0xff]
    %v331 = vld [vmem:[%s6 + $0x120] sm:$0xff]
    %v332 = vld [vmem:[%s6 + $0x128] sm:$0xff]
    %v333 = vld [vmem:[%s6 + $0x130] sm:$0xff]
    %v334 = vld [vmem:[%s6 + $0x138] sm:$0xff]
    %v335 = vld [vmem:[%s6 + $0x140] sm:$0xff]
    %v336 = vld [vmem:[%s6 + $0x148] sm:$0xff]
    %v337 = vld [vmem:[%s6 + $0x150] sm:$0xff]
    %v338 = vld [vmem:[%s6 + $0x158] sm:$0xff]
    %v339 = vld [vmem:[%s6 + $0x160] sm:$0xff]
    %v340 = vld [vmem:[%s6 + $0x168] sm:$0xff]
    %v341 = vld [vmem:[%s6 + $0x170] sm:$0xff]
    %v342 = vld [vmem:[%s6 + $0x178] sm:$0xff]
    %v343 = vld [vmem:[%s7] sm:$0xff]
    %v344 = vld [vmem:[%s7 + $0x8] sm:$0xff]
    %v345 = vld [vmem:[%s7 + $0x10] sm:$0xff]
    %v346 = vld [vmem:[%s7 + $0x18] sm:$0xff]
    %v347 = vld [vmem:[%s7 + $0x20] sm:$0xff]
    %v348 = vld [vmem:[%s7 + $0x28] sm:$0xff]
    %v349 = vld [vmem:[%s7 + $0x30] sm:$0xff]
    %v350 = vld [vmem:[%s7 + $0x38] sm:$0xff]
    %v351 = vld [vmem:[%s7 + $0x40] sm:$0xff]
    %v352 = vld [vmem:[%s7 + $0x48] sm:$0xff]
    %v353 = vld [vmem:[%s7 + $0x50] sm:$0xff]
    %v354 = vld [vmem:[%s7 + $0x58] sm:$0xff]
    %v355 = vld [vmem:[%s7 + $0x60] sm:$0xff]
    %v356 = vld [vmem:[%s7 + $0x68] sm:$0xff]
    %v357 = vld [vmem:[%s7 + $0x70] sm:$0xff]
    %v358 = vld [vmem:[%s7 + $0x78] sm:$0xff]
    %v359 = vld [vmem:[%s7 + $0x80] sm:$0xff]
    %v360 = vld [vmem:[%s7 + $0x88] sm:$0xff]
    %v361 = vld [vmem:[%s7 + $0x90] sm:$0xff]
    %v362 = vld [vmem:[%s7 + $0x98] sm:$0xff]
    %v363 = vld [vmem:[%s7 + $0xa0] sm:$0xff]
    %v364 = vld [vmem:[%s7 + $0xa8] sm:$0xff]
    %v365 = vld [vmem:[%s7 + $0xb0] sm:$0xff]
    %v366 = vld [vmem:[%s7 + $0xb8] sm:$0xff]
    %v367 = vld [vmem:[%s7 + $0xc0] sm:$0xff]
    %v368 = vld [vmem:[%s7 + $0xc8] sm:$0xff]
    %v369 = vld [vmem:[%s7 + $0xd0] sm:$0xff]
    %v370 = vld [vmem:[%s7 + $0xd8] sm:$0xff]
    %v371 = vld [vmem:[%s7 + $0xe0] sm:$0xff]
    %v372 = vld [vmem:[%s7 + $0xe8] sm:$0xff]
    %v373 = vld [vmem:[%s7 + $0xf0] sm:$0xff]
    %v374 = vld [vmem:[%s7 + $0xf8] sm:$0xff]
    %v375 = vld [vmem:[%s7 + $0x100] sm:$0xff]
    %v376 = vld [vmem:[%s7 + $0x108] sm:$0xff]
    %v377 = vld [vmem:[%s7 + $0x110] sm:$0xff]
    %v378 = vld [vmem:[%s7 + $0x118] sm:$0xff]
    %v379 = vld [vmem:[%s7 + $0x120] sm:$0xff]
    %v380 = vld [vmem:[%s7 + $0x128] sm:$0xff]
    %v381 = vld [vmem:[%s7 + $0x130] sm:$0xff]
    %v382 = vld [vmem:[%s7 + $0x138] sm:$0xff]
    %v383 = vld [vmem:[%s7 + $0x140] sm:$0xff]
    %v384 = vld [vmem:[%s7 + $0x148] sm:$0xff]
    %v385 = vld [vmem:[%s7 + $0x150] sm:$0xff]
    %v386 = vld [vmem:[%s7 + $0x158] sm:$0xff]
    %v387 = vld [vmem:[%s7 + $0x160] sm:$0xff]
    %v388 = vld [vmem:[%s7 + $0x168] sm:$0xff]
    %v389 = vld [vmem:[%s7 + $0x170] sm:$0xff]
    %v390 = vld [vmem:[%s7 + $0x178] sm:$0xff]
    %v391 = vld [vmem:[%s8] sm:$0x7]
    %v392 = vld [vmem:[%s9] sm:$0x7]
    %v393 = vpack.c.bf16 %v294, %v294
    %v394 = vpack.c.bf16 %v298, %v295
    %v395 = vpack.c.bf16 %v299, %v296
    %v396 = vpack.c.bf16 %v300, %v297
    %v397 = vpack.c.bf16 %v304, %v301
    %v398 = vpack.c.bf16 %v305, %v302
    %v399 = vpack.c.bf16 %v306, %v303
    %v400 = vpack.c.bf16 %v310, %v307
    %v401 = vpack.c.bf16 %v311, %v308
    %v402 = vpack.c.bf16 %v312, %v309
    %v403 = vpack.c.bf16 %v316, %v313
    %v404 = vpack.c.bf16 %v317, %v314
    %v405 = vpack.c.bf16 %v318, %v315
    %v406 = vpack.c.bf16 %v322, %v319
    %v407 = vpack.c.bf16 %v323, %v320
    %v408 = vpack.c.bf16 %v324, %v321
    %v409 = vpack.c.bf16 %v328, %v325
    %v410 = vpack.c.bf16 %v329, %v326
    %v411 = vpack.c.bf16 %v330, %v327
    %v412 = vpack.c.bf16 %v334, %v331
    %v413 = vpack.c.bf16 %v335, %v332
    %v414 = vpack.c.bf16 %v336, %v333
    %v415 = vpack.c.bf16 %v340, %v337
    %v416 = vpack.c.bf16 %v341, %v338
    %v417 = vpack.c.bf16 %v342, %v339
    %v419 = vlaneseq
    %v420 = vshrl.u32 %v419, 7
    %v421 = vsub.s32 0, %v420
    %v422 = vrot.slane %v391, %v421
    %v423 = vlaneseq
    %v424 = vshrl.u32 %v423, 7
    %v425 = vsub.s32 1, %v424
    %v426 = vrot.slane %v391, %v425
    %v427 = vlaneseq
    %v428 = vshrl.u32 %v427, 7
    %v429 = vsub.s32 2, %v428
    %v430 = vrot.slane %v391, %v429
    %434 = vmatprep.subr.bf16.mxu0 %v416
    %435 = vmatpush1.bf16.msra.mxu0 %v415
    %436 = vmatprep.subr.bf16.mxu0 %v413
    %437 = vmatpush1.bf16.msra.mxu0 %v412
    %438 = vmatprep.subr.bf16.mxu0 %v410
    %439 = vmatpush1.bf16.msra.mxu0 %v409
    %440 = vmatprep.subr.bf16.mxu0 %v407
    %441 = vmatpush1.bf16.msra.mxu0 %v406
    %442 = vmatprep.subr.bf16.mxu0 %v404
    %443 = vmatpush1.bf16.msra.mxu0 %v403
    %444 = vmatprep.subr.bf16.mxu0 %v401
    %445 = vmatpush1.bf16.msra.mxu0 %v400
    %446 = vmatprep.subr.bf16.mxu0 %v398
    %447 = vmatpush1.bf16.msra.mxu0 %v397
    %448 = vmatprep.subr.bf16.mxu0 %v395
    %449 = vmatpush1.bf16.msra.mxu0 %v394
    %450 = vmatprep.subr.bf16.mxu0 0
    %451 = vmatpush2.bf16.msra.mxu0 0
    %452 = vmatprep.subr.bf16.mxu0 0
    %453 = vmatpush2.bf16.msra.mxu0 0
    %454 = vmatprep.subr.bf16.mxu0 0
    %455 = vmatpush2.bf16.msra.mxu0 0
    %456 = vmatprep.subr.bf16.mxu0 0
    %457 = vmatpush2.bf16.msra.mxu0 0
    %458 = vmatprep.subr.bf16.mxu0 0
    %459 = vmatpush2.bf16.msra.mxu0 0
    %460 = vmatprep.subr.bf16.mxu0 0
    %461 = vmatpush2.bf16.msra.mxu0 0
    %462 = vmatprep.subr.bf16.mxu0 0
    %463 = vmatpush2.bf16.msra.mxu0 0
    %464 = vmatprep.subr.bf16.mxu0 0
    %465 = vmatpush2.bf16.msra.mxu0 0
    %466 = vmatprep.mubr.bf16.mxu0 0
    %467 = vmatmul.mubr.bf16.gmra.mxu0 %v393
    %v468 = vpop.f32.mrf.mxu0
    %v469 = vadd.f32 %v422, %v468
    %v470 = vpop.f32.mrf.mxu0
    %v471 = vadd.f32 %v426, %v470
    %v472 = vpop.f32.mrf.mxu0
    %v473 = vpop.f32.mrf.mxu0
    %474 = vdwg.mxu0
    %475 = vmatprep.subr.bf16.mxu0 0
    %476 = vmatpush1.bf16.msra.mxu0 %v417
    %477 = vmatprep.subr.bf16.mxu0 0
    %478 = vmatpush1.bf16.msra.mxu0 %v414
    %479 = vmatprep.subr.bf16.mxu0 0
    %480 = vmatpush1.bf16.msra.mxu0 %v411
    %481 = vmatprep.subr.bf16.mxu0 0
    %482 = vmatpush1.bf16.msra.mxu0 %v408
    %483 = vmatprep.subr.bf16.mxu0 0
    %484 = vmatpush1.bf16.msra.mxu0 %v405
    %485 = vmatprep.subr.bf16.mxu0 0
    %486 = vmatpush1.bf16.msra.mxu0 %v402
    %487 = vmatprep.subr.bf16.mxu0 0
    %488 = vmatpush1.bf16.msra.mxu0 %v399
    %489 = vmatprep.subr.bf16.mxu0 0
    %490 = vmatpush1.bf16.msra.mxu0 %v396
    %491 = vmatprep.subr.bf16.mxu0 0
    %492 = vmatpush2.bf16.msra.mxu0 0
    %493 = vmatprep.subr.bf16.mxu0 0
    %494 = vmatpush2.bf16.msra.mxu0 0
    %495 = vmatprep.subr.bf16.mxu0 0
    %496 = vmatpush2.bf16.msra.mxu0 0
    %497 = vmatprep.subr.bf16.mxu0 0
    %498 = vmatpush2.bf16.msra.mxu0 0
    %499 = vmatprep.subr.bf16.mxu0 0
    %500 = vmatpush2.bf16.msra.mxu0 0
    %501 = vmatprep.subr.bf16.mxu0 0
    %502 = vmatpush2.bf16.msra.mxu0 0
    %503 = vmatprep.subr.bf16.mxu0 0
    %504 = vmatpush2.bf16.msra.mxu0 0
    %505 = vmatprep.subr.bf16.mxu0 0
    %506 = vmatpush2.bf16.msra.mxu0 0
    %507 = vmatprep.mubr.bf16.mxu0 0
    %508 = vmatmul.mubr.bf16.gmra.mxu0 %v393
    %v509 = vpop.f32.mrf.mxu0
    %v510 = vadd.f32 %v430, %v509
    %v511 = vpop.f32.mrf.mxu0
    %v512 = vpop.f32.mrf.mxu0
    %v513 = vpop.f32.mrf.mxu0
    %514 = vdwg.mxu0
    %v515 = vpack.c.bf16 %v72, %v72
    %v516 = vpack.c.bf16 %v346, %v343
    %v517 = vpack.c.bf16 %v347, %v344
    %v518 = vpack.c.bf16 %v348, %v345
    %v519 = vpack.c.bf16 %v352, %v349
    %v520 = vpack.c.bf16 %v353, %v350
    %v521 = vpack.c.bf16 %v354, %v351
    %v522 = vpack.c.bf16 %v358, %v355
    %v523 = vpack.c.bf16 %v359, %v356
    %v524 = vpack.c.bf16 %v360, %v357
    %v525 = vpack.c.bf16 %v364, %v361
    %v526 = vpack.c.bf16 %v365, %v362
    %v527 = vpack.c.bf16 %v366, %v363
    %v528 = vpack.c.bf16 %v370, %v367
    %v529 = vpack.c.bf16 %v371, %v368
    %v530 = vpack.c.bf16 %v372, %v369
    %v531 = vpack.c.bf16 %v376, %v373
    %v532 = vpack.c.bf16 %v377, %v374
    %v533 = vpack.c.bf16 %v378, %v375
    %v534 = vpack.c.bf16 %v382, %v379
    %v535 = vpack.c.bf16 %v383, %v380
    %v536 = vpack.c.bf16 %v384, %v381
    %v537 = vpack.c.bf16 %v388, %v385
    %v538 = vpack.c.bf16 %v389, %v386
    %v539 = vpack.c.bf16 %v390, %v387
    %v541 = vlaneseq
    %v542 = vshrl.u32 %v541, 7
    %v543 = vsub.s32 0, %v542
    %v544 = vrot.slane %v392, %v543
    %v545 = vlaneseq
    %v546 = vshrl.u32 %v545, 7
    %v547 = vsub.s32 1, %v546
    %v548 = vrot.slane %v392, %v547
    %v549 = vlaneseq
    %v550 = vshrl.u32 %v549, 7
    %v551 = vsub.s32 2, %v550
    %v552 = vrot.slane %v392, %v551
    %556 = vmatprep.subr.bf16.mxu0 %v538
    %557 = vmatpush1.bf16.msra.mxu0 %v537
    %558 = vmatprep.subr.bf16.mxu0 %v535
    %559 = vmatpush1.bf16.msra.mxu0 %v534
    %560 = vmatprep.subr.bf16.mxu0 %v532
    %561 = vmatpush1.bf16.msra.mxu0 %v531
    %562 = vmatprep.subr.bf16.mxu0 %v529
    %563 = vmatpush1.bf16.msra.mxu0 %v528
    %564 = vmatprep.subr.bf16.mxu0 %v526
    %565 = vmatpush1.bf16.msra.mxu0 %v525
    %566 = vmatprep.subr.bf16.mxu0 %v523
    %567 = vmatpush1.bf16.msra.mxu0 %v522
    %568 = vmatprep.subr.bf16.mxu0 %v520
    %569 = vmatpush1.bf16.msra.mxu0 %v519
    %570 = vmatprep.subr.bf16.mxu0 %v517
    %571 = vmatpush1.bf16.msra.mxu0 %v516
    %572 = vmatprep.subr.bf16.mxu0 0
    %573 = vmatpush2.bf16.msra.mxu0 0
    %574 = vmatprep.subr.bf16.mxu0 0
    %575 = vmatpush2.bf16.msra.mxu0 0
    %576 = vmatprep.subr.bf16.mxu0 0
    %577 = vmatpush2.bf16.msra.mxu0 0
    %578 = vmatprep.subr.bf16.mxu0 0
    %579 = vmatpush2.bf16.msra.mxu0 0
    %580 = vmatprep.subr.bf16.mxu0 0
    %581 = vmatpush2.bf16.msra.mxu0 0
    %582 = vmatprep.subr.bf16.mxu0 0
    %583 = vmatpush2.bf16.msra.mxu0 0
    %584 = vmatprep.subr.bf16.mxu0 0
    %585 = vmatpush2.bf16.msra.mxu0 0
    %586 = vmatprep.subr.bf16.mxu0 0
    %587 = vmatpush2.bf16.msra.mxu0 0
    %588 = vmatprep.mubr.bf16.mxu0 0
    %589 = vmatmul.mubr.bf16.gmra.mxu0 %v515
    %v590 = vpop.f32.mrf.mxu0
    %v591 = vadd.f32 %v544, %v590
    %v592 = vpop.f32.mrf.mxu0
    %v593 = vadd.f32 %v548, %v592
    %v594 = vpop.f32.mrf.mxu0
    %v595 = vpop.f32.mrf.mxu0
    %596 = vdwg.mxu0
    %597 = vmatprep.subr.bf16.mxu0 0
    %598 = vmatpush1.bf16.msra.mxu0 %v539
    %599 = vmatprep.subr.bf16.mxu0 0
    %600 = vmatpush1.bf16.msra.mxu0 %v536
    %601 = vmatprep.subr.bf16.mxu0 0
    %602 = vmatpush1.bf16.msra.mxu0 %v533
    %603 = vmatprep.subr.bf16.mxu0 0
    %604 = vmatpush1.bf16.msra.mxu0 %v530
    %605 = vmatprep.subr.bf16.mxu0 0
    %606 = vmatpush1.bf16.msra.mxu0 %v527
    %607 = vmatprep.subr.bf16.mxu0 0
    %608 = vmatpush1.bf16.msra.mxu0 %v524
    %609 = vmatprep.subr.bf16.mxu0 0
    %610 = vmatpush1.bf16.msra.mxu0 %v521
    %611 = vmatprep.subr.bf16.mxu0 0
    %612 = vmatpush1.bf16.msra.mxu0 %v518
    %613 = vmatprep.subr.bf16.mxu0 0
    %614 = vmatpush2.bf16.msra.mxu0 0
    %615 = vmatprep.subr.bf16.mxu0 0
    %616 = vmatpush2.bf16.msra.mxu0 0
    %617 = vmatprep.subr.bf16.mxu0 0
    %618 = vmatpush2.bf16.msra.mxu0 0
    %619 = vmatprep.subr.bf16.mxu0 0
    %620 = vmatpush2.bf16.msra.mxu0 0
    %621 = vmatprep.subr.bf16.mxu0 0
    %622 = vmatpush2.bf16.msra.mxu0 0
    %623 = vmatprep.subr.bf16.mxu0 0
    %624 = vmatpush2.bf16.msra.mxu0 0
    %625 = vmatprep.subr.bf16.mxu0 0
    %626 = vmatpush2.bf16.msra.mxu0 0
    %627 = vmatprep.subr.bf16.mxu0 0
    %628 = vmatpush2.bf16.msra.mxu0 0
    %629 = vmatprep.mubr.bf16.mxu0 0
    %630 = vmatmul.mubr.bf16.gmra.mxu0 %v515
    %v631 = vpop.f32.mrf.mxu0
    %v632 = vadd.f32 %v552, %v631
    %v633 = vpop.f32.mrf.mxu0
    %v634 = vpop.f32.mrf.mxu0
    %v635 = vpop.f32.mrf.mxu0
    %636 = vdwg.mxu0
    %v637 = vadd.f32 %v469, %v591
    %v638 = vxor.u32 %v637, 2147483648
    %v639 = vmul.f32 %v638, 1.442695
    %v640 = vpow.pop %v639
    %v641 = vadd.f32 %v640, 1.0
    %v642 = vrcp.pop %v641
    %v643 = vmul.f32 1.0, %v642
    %v644 = vadd.f32 %v471, %v593
    %v645 = vxor.u32 %v644, 2147483648
    %v646 = vmul.f32 %v645, 1.442695
    %v647 = vpow.pop %v646
    %v648 = vadd.f32 %v647, 1.0
    %v649 = vrcp.pop %v648
    %v650 = vmul.f32 1.0, %v649
    %v651 = vmul.f32 %v643, %v632
    %v652 = vadd.f32 %v510, %v651
    %v653 = vtanh.pop %v652
    %v654 = vsub.f32 1.0, %v650
    %v655 = vmul.f32 %v654, %v653
    %v656 = vmul.f32 %v650, %v72
    %v657 = vadd.f32 %v655, %v656
    %v658 = vmax.f32 %v657, 0.0
    %s659 = scalar_lea.vmem %s1, 1
    %v660 = vld [vmem:[%s659] sm:$0x1]
    %v661 = vmul.f32 %v658, %v660
    %v662 = vsel %vm76, %v661, 0.0
    %663 = vadd.xlane.f32.xlu0 %v662
    %v664 = vpop.xlane.xlu0 %663
    %s665 = scalar_lea.vmem %s2, 1
    %v666 = vld [vmem:[%s665] sm:$0x1]
    %667 = vmatprep.subr.mxu0 0.0
    %668 = vmatpush1.xpose.msra.mxu0 0.0
    %669 = vmatprep.subr.mxu0 0.0
    %670 = vmatpush1.xpose.msra.mxu0 0.0
    %671 = vmatprep.subr.mxu0 0.0
    %672 = vmatpush1.xpose.msra.mxu0 0.0
    %673 = vmatprep.subr.mxu0 0.0
    %674 = vmatpush1.xpose.msra.mxu0 0.0
    %675 = vmatprep.subr.mxu0 0.0
    %676 = vmatpush1.xpose.msra.mxu0 0.0
    %677 = vmatprep.subr.mxu0 0.0
    %678 = vmatpush1.xpose.msra.mxu0 0.0
    %679 = vmatprep.subr.mxu0 0.0
    %680 = vmatpush1.xpose.msra.mxu0 0.0
    %681 = vmatprep.subr.mxu0 0.0
    %682 = vmatpush1.xpose.msra.mxu0 0.0
    %683 = vmatprep.subr.mxu0 0.0
    %684 = vmatpush1.xpose.msra.mxu0 0.0
    %685 = vmatprep.subr.mxu0 0.0
    %686 = vmatpush1.xpose.msra.mxu0 0.0
    %687 = vmatprep.subr.mxu0 0.0
    %688 = vmatpush1.xpose.msra.mxu0 0.0
    %689 = vmatprep.subr.mxu0 0.0
    %690 = vmatpush1.xpose.msra.mxu0 0.0
    %691 = vmatprep.subr.mxu0 0.0
    %692 = vmatpush1.xpose.msra.mxu0 0.0
    %693 = vmatprep.subr.mxu0 0.0
    %694 = vmatpush1.xpose.msra.mxu0 0.0
    %695 = vmatprep.subr.mxu0 0.0
    %696 = vmatpush1.xpose.msra.mxu0 %v65
    %697 = vmatprep.subr.mxu0 0.0
    %698 = vmatpush1.xpose.msra.mxu0 %v64
    %699 = vmatprep.subr.mxu0 0.0
    %700 = vmatpush2.xpose.msra.mxu0 0.0
    %701 = vmatprep.subr.mxu0 0.0
    %702 = vmatpush2.xpose.msra.mxu0 0.0
    %703 = vmatprep.subr.mxu0 0.0
    %704 = vmatpush2.xpose.msra.mxu0 0.0
    %705 = vmatprep.subr.mxu0 0.0
    %706 = vmatpush2.xpose.msra.mxu0 0.0
    %707 = vmatprep.subr.mxu0 0.0
    %708 = vmatpush2.xpose.msra.mxu0 0.0
    %709 = vmatprep.subr.mxu0 0.0
    %710 = vmatpush2.xpose.msra.mxu0 0.0
    %711 = vmatprep.subr.mxu0 0.0
    %712 = vmatpush2.xpose.msra.mxu0 0.0
    %713 = vmatprep.subr.mxu0 0.0
    %714 = vmatpush2.xpose.msra.mxu0 0.0
    %715 = vmatprep.subr.mxu0 0.0
    %716 = vmatpush2.xpose.msra.mxu0 0.0
    %717 = vmatprep.subr.mxu0 0.0
    %718 = vmatpush2.xpose.msra.mxu0 0.0
    %719 = vmatprep.subr.mxu0 0.0
    %720 = vmatpush2.xpose.msra.mxu0 0.0
    %721 = vmatprep.subr.mxu0 0.0
    %722 = vmatpush2.xpose.msra.mxu0 0.0
    %723 = vmatprep.subr.mxu0 0.0
    %724 = vmatpush2.xpose.msra.mxu0 0.0
    %725 = vmatprep.subr.mxu0 0.0
    %726 = vmatpush2.xpose.msra.mxu0 0.0
    %727 = vmatprep.subr.mxu0 0.0
    %728 = vmatpush2.xpose.msra.mxu0 0.0
    %729 = vmatprep.subr.mxu0 0.0
    %730 = vmatpush2.xpose.msra.mxu0 0.0
    %731 = vmatprep.mubr.f32.mxu0 0.0
    %732 = vmatmul.mubr.f32.gmra.mxu0 %v666
    %v733 = vpop.f32.mrf.mxu0
    %v734 = vadd.f32 0.0, %v733
    %v735 = vpop.f32.mrf.mxu0
    %736 = vdwg.mxu0
    %v737 = vadd.f32 %v664, %v734
    %s738 = sld [smem:[#allocation3 + $0x80]]
    %v739 = vstv %s738
    %v740 = vadd.f32 %v737, %v739
    %vm741 = vcmp.gt.f32.partialorder %v740, 0.0
    %v742 = vmul.f32 %v740, 0.01
    %v743 = vsel %vm741, %v740, %v742
    %v744 = vsel %vm158, %v743, -inf
    %745 = vmax.xlane.f32.xlu0 %v744
    %v746 = vpop.xlane.xlu0 %745
    %v747 = vsub.f32 %v743, %v746
    %v748 = vmul.f32 %v747, 1.442695
    %v749 = vpow.pop %v748
    %v750 = vsel %vm158, %v749, 0.0
    %751 = vadd.xlane.f32.xlu0 %v750
    %v752 = vpop.xlane.xlu0 %751
    %v753 = vrcp.pop %v752
    %v754 = vmul.f32 %v749, %v753
    %s755 = scalar_lea.vmem %s4, 128
    %v756 = vld [vmem:[%s755] sm:$0xff]
    %v757 = vld [vmem:[%s755 + $0x8] sm:$0xff]
    %v758 = vld [vmem:[%s755 + $0x10] sm:$0xff]
    %v759 = vld [vmem:[%s755 + $0x18] sm:$0xff]
    %v760 = vld [vmem:[%s755 + $0x20] sm:$0xff]
    %v761 = vld [vmem:[%s755 + $0x28] sm:$0xff]
    %v762 = vld [vmem:[%s755 + $0x30] sm:$0xff]
    %v763 = vld [vmem:[%s755 + $0x38] sm:$0xff]
    %v764 = vld [vmem:[%s755 + $0x40] sm:$0xff]
    %v765 = vld [vmem:[%s755 + $0x48] sm:$0xff]
    %v766 = vld [vmem:[%s755 + $0x50] sm:$0xff]
    %v767 = vld [vmem:[%s755 + $0x58] sm:$0xff]
    %v768 = vld [vmem:[%s755 + $0x60] sm:$0xff]
    %v769 = vld [vmem:[%s755 + $0x68] sm:$0xff]
    %v770 = vld [vmem:[%s755 + $0x70] sm:$0xff]
    %v771 = vld [vmem:[%s755 + $0x78] sm:$0xff]
    %v772 = vpack.c.bf16 %v757, %v756
    %v773 = vpack.c.bf16 %v759, %v758
    %v774 = vpack.c.bf16 %v761, %v760
    %v775 = vpack.c.bf16 %v763, %v762
    %v776 = vpack.c.bf16 %v765, %v764
    %v777 = vpack.c.bf16 %v767, %v766
    %v778 = vpack.c.bf16 %v769, %v768
    %v779 = vpack.c.bf16 %v771, %v770
    %s780 = scalar_lea.vmem %s5, 1
    %v781 = vld [vmem:[%s780] sm:$0x1]
    %v783 = vlaneseq
    %v784 = vshrl.u32 %v783, 7
    %v785 = vsub.s32 0, %v784
    %v786 = vrot.slane %v781, %v785
    %788 = vmatprep.subr.bf16.mxu0 0
    %789 = vmatpush1.bf16.msra.mxu0 %v779
    %790 = vmatprep.subr.bf16.mxu0 0
    %791 = vmatpush1.bf16.msra.mxu0 %v778
    %792 = vmatprep.subr.bf16.mxu0 0
    %793 = vmatpush1.bf16.msra.mxu0 %v777
    %794 = vmatprep.subr.bf16.mxu0 0
    %795 = vmatpush1.bf16.msra.mxu0 %v776
    %796 = vmatprep.subr.bf16.mxu0 0
    %797 = vmatpush1.bf16.msra.mxu0 %v775
    %798 = vmatprep.subr.bf16.mxu0 0
    %799 = vmatpush1.bf16.msra.mxu0 %v774
    %800 = vmatprep.subr.bf16.mxu0 0
    %801 = vmatpush1.bf16.msra.mxu0 %v773
    %802 = vmatprep.subr.bf16.mxu0 0
    %803 = vmatpush1.bf16.msra.mxu0 %v772
    %804 = vmatprep.subr.bf16.mxu0 0
    %805 = vmatpush2.bf16.msra.mxu0 0
    %806 = vmatprep.subr.bf16.mxu0 0
    %807 = vmatpush2.bf16.msra.mxu0 0
    %808 = vmatprep.subr.bf16.mxu0 0
    %809 = vmatpush2.bf16.msra.mxu0 0
    %810 = vmatprep.subr.bf16.mxu0 0
    %811 = vmatpush2.bf16.msra.mxu0 0
    %812 = vmatprep.subr.bf16.mxu0 0
    %813 = vmatpush2.bf16.msra.mxu0 0
    %814 = vmatprep.subr.bf16.mxu0 0
    %815 = vmatpush2.bf16.msra.mxu0 0
    %816 = vmatprep.subr.bf16.mxu0 0
    %817 = vmatpush2.bf16.msra.mxu0 0
    %818 = vmatprep.subr.bf16.mxu0 0
    %819 = vmatpush2.bf16.msra.mxu0 0
    %820 = vmatprep.mubr.bf16.mxu0 0
    %821 = vmatmul.mubr.bf16.gmra.mxu0 %v186
    %v822 = vpop.f32.mrf.mxu0
    %v823 = vadd.f32 %v786, %v822
    %v824 = vpop.f32.mrf.mxu0
    %v825 = vpop.f32.mrf.mxu0
    %v826 = vadd.f32 %v786, %v825
    %v827 = vpop.f32.mrf.mxu0
    %828 = vdwg.mxu0
    %v829 = vpack.c.bf16 %v754, %v754
    %v830 = vpack.c.bf16 %v826, %v823
    %v832 = vsel %vm245, %v829, 0
    %834 = vmatprep.subr.bf16.mxu0 0
    %835 = vmatpush1.bf16.msra.mxu0 0
    %836 = vmatprep.subr.bf16.mxu0 0
    %837 = vmatpush1.bf16.msra.mxu0 0
    %838 = vmatprep.subr.bf16.mxu0 0
    %839 = vmatpush1.bf16.msra.mxu0 0
    %840 = vmatprep.subr.bf16.mxu0 0
    %841 = vmatpush1.bf16.msra.mxu0 0
    %842 = vmatprep.subr.bf16.mxu0 0
    %843 = vmatpush1.bf16.msra.mxu0 0
    %844 = vmatprep.subr.bf16.mxu0 0
    %845 = vmatpush1.bf16.msra.mxu0 0
    %846 = vmatprep.subr.bf16.mxu0 0
    %847 = vmatpush1.bf16.msra.mxu0 0
    %848 = vmatprep.subr.bf16.mxu0 0
    %849 = vmatpush1.bf16.msra.mxu0 %v830
    %850 = vmatprep.subr.bf16.mxu0 0
    %851 = vmatpush2.bf16.msra.mxu0 0
    %852 = vmatprep.subr.bf16.mxu0 0
    %853 = vmatpush2.bf16.msra.mxu0 0
    %854 = vmatprep.subr.bf16.mxu0 0
    %855 = vmatpush2.bf16.msra.mxu0 0
    %856 = vmatprep.subr.bf16.mxu0 0
    %857 = vmatpush2.bf16.msra.mxu0 0
    %858 = vmatprep.subr.bf16.mxu0 0
    %859 = vmatpush2.bf16.msra.mxu0 0
    %860 = vmatprep.subr.bf16.mxu0 0
    %861 = vmatpush2.bf16.msra.mxu0 0
    %862 = vmatprep.subr.bf16.mxu0 0
    %863 = vmatpush2.bf16.msra.mxu0 0
    %864 = vmatprep.subr.bf16.mxu0 0
    %865 = vmatpush2.bf16.msra.mxu0 0
    %866 = vmatprep.mubr.bf16.mxu0 0
    %867 = vmatmul.mubr.bf16.gmra.mxu0 %v832
    %v868 = vpop.f32.mrf.mxu0
    %v869 = vadd.f32 0.0, %v868
    %v870 = vpop.f32.mrf.mxu0
    %v871 = vpop.f32.mrf.mxu0
    %v872 = vpop.f32.mrf.mxu0
    %873 = vdwg.mxu0
    %vm874 = vcmp.gt.f32.partialorder %v869, 0.0
    %v875 = vmin.f32 %v869, 0.0
    %v876 = vmul.f32 %v875, 1.442695
    %v877 = vpow.pop %v876
    %v878 = vsub.f32 %v877, 1.0
    %v879 = vsel %vm874, %v869, %v878
    %s880 = scalar_lea.vmem %s6, 384
    %v881 = vld [vmem:[%s880] sm:$0xff]
    %v882 = vld [vmem:[%s880 + $0x8] sm:$0xff]
    %v883 = vld [vmem:[%s880 + $0x10] sm:$0xff]
    %v884 = vld [vmem:[%s880 + $0x18] sm:$0xff]
    %v885 = vld [vmem:[%s880 + $0x20] sm:$0xff]
    %v886 = vld [vmem:[%s880 + $0x28] sm:$0xff]
    %v887 = vld [vmem:[%s880 + $0x30] sm:$0xff]
    %v888 = vld [vmem:[%s880 + $0x38] sm:$0xff]
    %v889 = vld [vmem:[%s880 + $0x40] sm:$0xff]
    %v890 = vld [vmem:[%s880 + $0x48] sm:$0xff]
    %v891 = vld [vmem:[%s880 + $0x50] sm:$0xff]
    %v892 = vld [vmem:[%s880 + $0x58] sm:$0xff]
    %v893 = vld [vmem:[%s880 + $0x60] sm:$0xff]
    %v894 = vld [vmem:[%s880 + $0x68] sm:$0xff]
    %v895 = vld [vmem:[%s880 + $0x70] sm:$0xff]
    %v896 = vld [vmem:[%s880 + $0x78] sm:$0xff]
    %v897 = vld [vmem:[%s880 + $0x80] sm:$0xff]
    %v898 = vld [vmem:[%s880 + $0x88] sm:$0xff]
    %v899 = vld [vmem:[%s880 + $0x90] sm:$0xff]
    %v900 = vld [vmem:[%s880 + $0x98] sm:$0xff]
    %v901 = vld [vmem:[%s880 + $0xa0] sm:$0xff]
    %v902 = vld [vmem:[%s880 + $0xa8] sm:$0xff]
    %v903 = vld [vmem:[%s880 + $0xb0] sm:$0xff]
    %v904 = vld [vmem:[%s880 + $0xb8] sm:$0xff]
    %v905 = vld [vmem:[%s880 + $0xc0] sm:$0xff]
    %v906 = vld [vmem:[%s880 + $0xc8] sm:$0xff]
    %v907 = vld [vmem:[%s880 + $0xd0] sm:$0xff]
    %v908 = vld [vmem:[%s880 + $0xd8] sm:$0xff]
    %v909 = vld [vmem:[%s880 + $0xe0] sm:$0xff]
    %v910 = vld [vmem:[%s880 + $0xe8] sm:$0xff]
    %v911 = vld [vmem:[%s880 + $0xf0] sm:$0xff]
    %v912 = vld [vmem:[%s880 + $0xf8] sm:$0xff]
    %v913 = vld [vmem:[%s880 + $0x100] sm:$0xff]
    %v914 = vld [vmem:[%s880 + $0x108] sm:$0xff]
    %v915 = vld [vmem:[%s880 + $0x110] sm:$0xff]
    %v916 = vld [vmem:[%s880 + $0x118] sm:$0xff]
    %v917 = vld [vmem:[%s880 + $0x120] sm:$0xff]
    %v918 = vld [vmem:[%s880 + $0x128] sm:$0xff]
    %v919 = vld [vmem:[%s880 + $0x130] sm:$0xff]
    %v920 = vld [vmem:[%s880 + $0x138] sm:$0xff]
    %v921 = vld [vmem:[%s880 + $0x140] sm:$0xff]
    %v922 = vld [vmem:[%s880 + $0x148] sm:$0xff]
    %v923 = vld [vmem:[%s880 + $0x150] sm:$0xff]
    %v924 = vld [vmem:[%s880 + $0x158] sm:$0xff]
    %v925 = vld [vmem:[%s880 + $0x160] sm:$0xff]
    %v926 = vld [vmem:[%s880 + $0x168] sm:$0xff]
    %v927 = vld [vmem:[%s880 + $0x170] sm:$0xff]
    %v928 = vld [vmem:[%s880 + $0x178] sm:$0xff]
    %s929 = scalar_lea.vmem %s7, 384
    %v930 = vld [vmem:[%s929] sm:$0xff]
    %v931 = vld [vmem:[%s929 + $0x8] sm:$0xff]
    %v932 = vld [vmem:[%s929 + $0x10] sm:$0xff]
    %v933 = vld [vmem:[%s929 + $0x18] sm:$0xff]
    %v934 = vld [vmem:[%s929 + $0x20] sm:$0xff]
    %v935 = vld [vmem:[%s929 + $0x28] sm:$0xff]
    %v936 = vld [vmem:[%s929 + $0x30] sm:$0xff]
    %v937 = vld [vmem:[%s929 + $0x38] sm:$0xff]
    %v938 = vld [vmem:[%s929 + $0x40] sm:$0xff]
    %v939 = vld [vmem:[%s929 + $0x48] sm:$0xff]
    %v940 = vld [vmem:[%s929 + $0x50] sm:$0xff]
    %v941 = vld [vmem:[%s929 + $0x58] sm:$0xff]
    %v942 = vld [vmem:[%s929 + $0x60] sm:$0xff]
    %v943 = vld [vmem:[%s929 + $0x68] sm:$0xff]
    %v944 = vld [vmem:[%s929 + $0x70] sm:$0xff]
    %v945 = vld [vmem:[%s929 + $0x78] sm:$0xff]
    %v946 = vld [vmem:[%s929 + $0x80] sm:$0xff]
    %v947 = vld [vmem:[%s929 + $0x88] sm:$0xff]
    %v948 = vld [vmem:[%s929 + $0x90] sm:$0xff]
    %v949 = vld [vmem:[%s929 + $0x98] sm:$0xff]
    %v950 = vld [vmem:[%s929 + $0xa0] sm:$0xff]
    %v951 = vld [vmem:[%s929 + $0xa8] sm:$0xff]
    %v952 = vld [vmem:[%s929 + $0xb0] sm:$0xff]
    %v953 = vld [vmem:[%s929 + $0xb8] sm:$0xff]
    %v954 = vld [vmem:[%s929 + $0xc0] sm:$0xff]
    %v955 = vld [vmem:[%s929 + $0xc8] sm:$0xff]
    %v956 = vld [vmem:[%s929 + $0xd0] sm:$0xff]
    %v957 = vld [vmem:[%s929 + $0xd8] sm:$0xff]
    %v958 = vld [vmem:[%s929 + $0xe0] sm:$0xff]
    %v959 = vld [vmem:[%s929 + $0xe8] sm:$0xff]
    %v960 = vld [vmem:[%s929 + $0xf0] sm:$0xff]
    %v961 = vld [vmem:[%s929 + $0xf8] sm:$0xff]
    %v962 = vld [vmem:[%s929 + $0x100] sm:$0xff]
    %v963 = vld [vmem:[%s929 + $0x108] sm:$0xff]
    %v964 = vld [vmem:[%s929 + $0x110] sm:$0xff]
    %v965 = vld [vmem:[%s929 + $0x118] sm:$0xff]
    %v966 = vld [vmem:[%s929 + $0x120] sm:$0xff]
    %v967 = vld [vmem:[%s929 + $0x128] sm:$0xff]
    %v968 = vld [vmem:[%s929 + $0x130] sm:$0xff]
    %v969 = vld [vmem:[%s929 + $0x138] sm:$0xff]
    %v970 = vld [vmem:[%s929 + $0x140] sm:$0xff]
    %v971 = vld [vmem:[%s929 + $0x148] sm:$0xff]
    %v972 = vld [vmem:[%s929 + $0x150] sm:$0xff]
    %v973 = vld [vmem:[%s929 + $0x158] sm:$0xff]
    %v974 = vld [vmem:[%s929 + $0x160] sm:$0xff]
    %v975 = vld [vmem:[%s929 + $0x168] sm:$0xff]
    %v976 = vld [vmem:[%s929 + $0x170] sm:$0xff]
    %v977 = vld [vmem:[%s929 + $0x178] sm:$0xff]
    %s978 = scalar_lea.vmem %s8, 3
    %v979 = vld [vmem:[%s978] sm:$0x7]
    %s980 = scalar_lea.vmem %s9, 3
    %v981 = vld [vmem:[%s980] sm:$0x7]
    %v982 = vpack.c.bf16 %v879, %v879
    %v983 = vpack.c.bf16 %v884, %v881
    %v984 = vpack.c.bf16 %v885, %v882
    %v985 = vpack.c.bf16 %v886, %v883
    %v986 = vpack.c.bf16 %v890, %v887
    %v987 = vpack.c.bf16 %v891, %v888
    %v988 = vpack.c.bf16 %v892, %v889
    %v989 = vpack.c.bf16 %v896, %v893
    %v990 = vpack.c.bf16 %v897, %v894
    %v991 = vpack.c.bf16 %v898, %v895
    %v992 = vpack.c.bf16 %v902, %v899
    %v993 = vpack.c.bf16 %v903, %v900
    %v994 = vpack.c.bf16 %v904, %v901
    %v995 = vpack.c.bf16 %v908, %v905
    %v996 = vpack.c.bf16 %v909, %v906
    %v997 = vpack.c.bf16 %v910, %v907
    %v998 = vpack.c.bf16 %v914, %v911
    %v999 = vpack.c.bf16 %v915, %v912
    %v1000 = vpack.c.bf16 %v916, %v913
    %v1001 = vpack.c.bf16 %v920, %v917
    %v1002 = vpack.c.bf16 %v921, %v918
    %v1003 = vpack.c.bf16 %v922, %v919
    %v1004 = vpack.c.bf16 %v926, %v923
    %v1005 = vpack.c.bf16 %v927, %v924
    %v1006 = vpack.c.bf16 %v928, %v925
    %v1008 = vlaneseq
    %v1009 = vshrl.u32 %v1008, 7
    %v1010 = vsub.s32 0, %v1009
    %v1011 = vrot.slane %v979, %v1010
    %v1012 = vlaneseq
    %v1013 = vshrl.u32 %v1012, 7
    %v1014 = vsub.s32 1, %v1013
    %v1015 = vrot.slane %v979, %v1014
    %v1016 = vlaneseq
    %v1017 = vshrl.u32 %v1016, 7
    %v1018 = vsub.s32 2, %v1017
    %v1019 = vrot.slane %v979, %v1018
    %1023 = vmatprep.subr.bf16.mxu0 %v1005
    %1024 = vmatpush1.bf16.msra.mxu0 %v1004
    %1025 = vmatprep.subr.bf16.mxu0 %v1002
    %1026 = vmatpush1.bf16.msra.mxu0 %v1001
    %1027 = vmatprep.subr.bf16.mxu0 %v999
    %1028 = vmatpush1.bf16.msra.mxu0 %v998
    %1029 = vmatprep.subr.bf16.mxu0 %v996
    %1030 = vmatpush1.bf16.msra.mxu0 %v995
    %1031 = vmatprep.subr.bf16.mxu0 %v993
    %1032 = vmatpush1.bf16.msra.mxu0 %v992
    %1033 = vmatprep.subr.bf16.mxu0 %v990
    %1034 = vmatpush1.bf16.msra.mxu0 %v989
    %1035 = vmatprep.subr.bf16.mxu0 %v987
    %1036 = vmatpush1.bf16.msra.mxu0 %v986
    %1037 = vmatprep.subr.bf16.mxu0 %v984
    %1038 = vmatpush1.bf16.msra.mxu0 %v983
    %1039 = vmatprep.subr.bf16.mxu0 0
    %1040 = vmatpush2.bf16.msra.mxu0 0
    %1041 = vmatprep.subr.bf16.mxu0 0
    %1042 = vmatpush2.bf16.msra.mxu0 0
    %1043 = vmatprep.subr.bf16.mxu0 0
    %1044 = vmatpush2.bf16.msra.mxu0 0
    %1045 = vmatprep.subr.bf16.mxu0 0
    %1046 = vmatpush2.bf16.msra.mxu0 0
    %1047 = vmatprep.subr.bf16.mxu0 0
    %1048 = vmatpush2.bf16.msra.mxu0 0
    %1049 = vmatprep.subr.bf16.mxu0 0
    %1050 = vmatpush2.bf16.msra.mxu0 0
    %1051 = vmatprep.subr.bf16.mxu0 0
    %1052 = vmatpush2.bf16.msra.mxu0 0
    %1053 = vmatprep.subr.bf16.mxu0 0
    %1054 = vmatpush2.bf16.msra.mxu0 0
    %1055 = vmatprep.mubr.bf16.mxu0 0
    %1056 = vmatmul.mubr.bf16.gmra.mxu0 %v982
    %v1057 = vpop.f32.mrf.mxu0
    %v1058 = vadd.f32 %v1011, %v1057
    %v1059 = vpop.f32.mrf.mxu0
    %v1060 = vadd.f32 %v1015, %v1059
    %v1061 = vpop.f32.mrf.mxu0
    %v1062 = vpop.f32.mrf.mxu0
    %1063 = vdwg.mxu0
    %1064 = vmatprep.subr.bf16.mxu0 0
    %1065 = vmatpush1.bf16.msra.mxu0 %v1006
    %1066 = vmatprep.subr.bf16.mxu0 0
    %1067 = vmatpush1.bf16.msra.mxu0 %v1003
    %1068 = vmatprep.subr.bf16.mxu0 0
    %1069 = vmatpush1.bf16.msra.mxu0 %v1000
    %1070 = vmatprep.subr.bf16.mxu0 0
    %1071 = vmatpush1.bf16.msra.mxu0 %v997
    %1072 = vmatprep.subr.bf16.mxu0 0
    %1073 = vmatpush1.bf16.msra.mxu0 %v994
    %1074 = vmatprep.subr.bf16.mxu0 0
    %1075 = vmatpush1.bf16.msra.mxu0 %v991
    %1076 = vmatprep.subr.bf16.mxu0 0
    %1077 = vmatpush1.bf16.msra.mxu0 %v988
    %1078 = vmatprep.subr.bf16.mxu0 0
    %1079 = vmatpush1.bf16.msra.mxu0 %v985
    %1080 = vmatprep.subr.bf16.mxu0 0
    %1081 = vmatpush2.bf16.msra.mxu0 0
    %1082 = vmatprep.subr.bf16.mxu0 0
    %1083 = vmatpush2.bf16.msra.mxu0 0
    %1084 = vmatprep.subr.bf16.mxu0 0
    %1085 = vmatpush2.bf16.msra.mxu0 0
    %1086 = vmatprep.subr.bf16.mxu0 0
    %1087 = vmatpush2.bf16.msra.mxu0 0
    %1088 = vmatprep.subr.bf16.mxu0 0
    %1089 = vmatpush2.bf16.msra.mxu0 0
    %1090 = vmatprep.subr.bf16.mxu0 0
    %1091 = vmatpush2.bf16.msra.mxu0 0
    %1092 = vmatprep.subr.bf16.mxu0 0
    %1093 = vmatpush2.bf16.msra.mxu0 0
    %1094 = vmatprep.subr.bf16.mxu0 0
    %1095 = vmatpush2.bf16.msra.mxu0 0
    %1096 = vmatprep.mubr.bf16.mxu0 0
    %1097 = vmatmul.mubr.bf16.gmra.mxu0 %v982
    %v1098 = vpop.f32.mrf.mxu0
    %v1099 = vadd.f32 %v1019, %v1098
    %v1100 = vpop.f32.mrf.mxu0
    %v1101 = vpop.f32.mrf.mxu0
    %v1102 = vpop.f32.mrf.mxu0
    %1103 = vdwg.mxu0
    %v1104 = vpack.c.bf16 %v657, %v657
    %v1105 = vpack.c.bf16 %v933, %v930
    %v1106 = vpack.c.bf16 %v934, %v931
    %v1107 = vpack.c.bf16 %v935, %v932
    %v1108 = vpack.c.bf16 %v939, %v936
    %v1109 = vpack.c.bf16 %v940, %v937
    %v1110 = vpack.c.bf16 %v941, %v938
    %v1111 = vpack.c.bf16 %v945, %v942
    %v1112 = vpack.c.bf16 %v946, %v943
    %v1113 = vpack.c.bf16 %v947, %v944
    %v1114 = vpack.c.bf16 %v951, %v948
    %v1115 = vpack.c.bf16 %v952, %v949
    %v1116 = vpack.c.bf16 %v953, %v950
    %v1117 = vpack.c.bf16 %v957, %v954
    %v1118 = vpack.c.bf16 %v958, %v955
    %v1119 = vpack.c.bf16 %v959, %v956
    %v1120 = vpack.c.bf16 %v963, %v960
    %v1121 = vpack.c.bf16 %v964, %v961
    %v1122 = vpack.c.bf16 %v965, %v962
    %v1123 = vpack.c.bf16 %v969, %v966
    %v1124 = vpack.c.bf16 %v970, %v967
    %v1125 = vpack.c.bf16 %v971, %v968
    %v1126 = vpack.c.bf16 %v975, %v972
    %v1127 = vpack.c.bf16 %v976, %v973
    %v1128 = vpack.c.bf16 %v977, %v974
    %v1130 = vlaneseq
    %v1131 = vshrl.u32 %v1130, 7
    %v1132 = vsub.s32 0, %v1131
    %v1133 = vrot.slane %v981, %v1132
    %v1134 = vlaneseq
    %v1135 = vshrl.u32 %v1134, 7
    %v1136 = vsub.s32 1, %v1135
    %v1137 = vrot.slane %v981, %v1136
    %v1138 = vlaneseq
    %v1139 = vshrl.u32 %v1138, 7
    %v1140 = vsub.s32 2, %v1139
    %v1141 = vrot.slane %v981, %v1140
    %1145 = vmatprep.subr.bf16.mxu0 %v1127
    %1146 = vmatpush1.bf16.msra.mxu0 %v1126
    %1147 = vmatprep.subr.bf16.mxu0 %v1124
    %1148 = vmatpush1.bf16.msra.mxu0 %v1123
    %1149 = vmatprep.subr.bf16.mxu0 %v1121
    %1150 = vmatpush1.bf16.msra.mxu0 %v1120
    %1151 = vmatprep.subr.bf16.mxu0 %v1118
    %1152 = vmatpush1.bf16.msra.mxu0 %v1117
    %1153 = vmatprep.subr.bf16.mxu0 %v1115
    %1154 = vmatpush1.bf16.msra.mxu0 %v1114
    %1155 = vmatprep.subr.bf16.mxu0 %v1112
    %1156 = vmatpush1.bf16.msra.mxu0 %v1111
    %1157 = vmatprep.subr.bf16.mxu0 %v1109
    %1158 = vmatpush1.bf16.msra.mxu0 %v1108
    %1159 = vmatprep.subr.bf16.mxu0 %v1106
    %1160 = vmatpush1.bf16.msra.mxu0 %v1105
    %1161 = vmatprep.subr.bf16.mxu0 0
    %1162 = vmatpush2.bf16.msra.mxu0 0
    %1163 = vmatprep.subr.bf16.mxu0 0
    %1164 = vmatpush2.bf16.msra.mxu0 0
    %1165 = vmatprep.subr.bf16.mxu0 0
    %1166 = vmatpush2.bf16.msra.mxu0 0
    %1167 = vmatprep.subr.bf16.mxu0 0
    %1168 = vmatpush2.bf16.msra.mxu0 0
    %1169 = vmatprep.subr.bf16.mxu0 0
    %1170 = vmatpush2.bf16.msra.mxu0 0
    %1171 = vmatprep.subr.bf16.mxu0 0
    %1172 = vmatpush2.bf16.msra.mxu0 0
    %1173 = vmatprep.subr.bf16.mxu0 0
    %1174 = vmatpush2.bf16.msra.mxu0 0
    %1175 = vmatprep.subr.bf16.mxu0 0
    %1176 = vmatpush2.bf16.msra.mxu0 0
    %1177 = vmatprep.mubr.bf16.mxu0 0
    %1178 = vmatmul.mubr.bf16.gmra.mxu0 %v1104
    %v1179 = vpop.f32.mrf.mxu0
    %v1180 = vadd.f32 %v1133, %v1179
    %v1181 = vpop.f32.mrf.mxu0
    %v1182 = vadd.f32 %v1137, %v1181
    %v1183 = vpop.f32.mrf.mxu0
    %v1184 = vpop.f32.mrf.mxu0
    %1185 = vdwg.mxu0
    %1186 = vmatprep.subr.bf16.mxu0 0
    %1187 = vmatpush1.bf16.msra.mxu0 %v1128
    %1188 = vmatprep.subr.bf16.mxu0 0
    %1189 = vmatpush1.bf16.msra.mxu0 %v1125
    %1190 = vmatprep.subr.bf16.mxu0 0
    %1191 = vmatpush1.bf16.msra.mxu0 %v1122
    %1192 = vmatprep.subr.bf16.mxu0 0
    %1193 = vmatpush1.bf16.msra.mxu0 %v1119
    %1194 = vmatprep.subr.bf16.mxu0 0
    %1195 = vmatpush1.bf16.msra.mxu0 %v1116
    %1196 = vmatprep.subr.bf16.mxu0 0
    %1197 = vmatpush1.bf16.msra.mxu0 %v1113
    %1198 = vmatprep.subr.bf16.mxu0 0
    %1199 = vmatpush1.bf16.msra.mxu0 %v1110
    %1200 = vmatprep.subr.bf16.mxu0 0
    %1201 = vmatpush1.bf16.msra.mxu0 %v1107
    %1202 = vmatprep.subr.bf16.mxu0 0
    %1203 = vmatpush2.bf16.msra.mxu0 0
    %1204 = vmatprep.subr.bf16.mxu0 0
    %1205 = vmatpush2.bf16.msra.mxu0 0
    %1206 = vmatprep.subr.bf16.mxu0 0
    %1207 = vmatpush2.bf16.msra.mxu0 0
    %1208 = vmatprep.subr.bf16.mxu0 0
    %1209 = vmatpush2.bf16.msra.mxu0 0
    %1210 = vmatprep.subr.bf16.mxu0 0
    %1211 = vmatpush2.bf16.msra.mxu0 0
    %1212 = vmatprep.subr.bf16.mxu0 0
    %1213 = vmatpush2.bf16.msra.mxu0 0
    %1214 = vmatprep.subr.bf16.mxu0 0
    %1215 = vmatpush2.bf16.msra.mxu0 0
    %1216 = vmatprep.subr.bf16.mxu0 0
    %1217 = vmatpush2.bf16.msra.mxu0 0
    %1218 = vmatprep.mubr.bf16.mxu0 0
    %1219 = vmatmul.mubr.bf16.gmra.mxu0 %v1104
    %v1220 = vpop.f32.mrf.mxu0
    %v1221 = vadd.f32 %v1141, %v1220
    %v1222 = vpop.f32.mrf.mxu0
    %v1223 = vpop.f32.mrf.mxu0
    %v1224 = vpop.f32.mrf.mxu0
    %1225 = vdwg.mxu0
    %v1226 = vadd.f32 %v1058, %v1180
    %v1227 = vxor.u32 %v1226, 2147483648
    %v1228 = vmul.f32 %v1227, 1.442695
    %v1229 = vpow.pop %v1228
    %v1230 = vadd.f32 %v1229, 1.0
    %v1231 = vrcp.pop %v1230
    %v1232 = vmul.f32 1.0, %v1231
    %v1233 = vadd.f32 %v1060, %v1182
    %v1234 = vxor.u32 %v1233, 2147483648
    %v1235 = vmul.f32 %v1234, 1.442695
    %v1236 = vpow.pop %v1235
    %v1237 = vadd.f32 %v1236, 1.0
    %v1238 = vrcp.pop %v1237
    %v1239 = vmul.f32 1.0, %v1238
    %v1240 = vmul.f32 %v1232, %v1221
    %v1241 = vadd.f32 %v1099, %v1240
    %v1242 = vtanh.pop %v1241
    %v1243 = vsub.f32 1.0, %v1239
    %v1244 = vmul.f32 %v1243, %v1242
    %v1245 = vmul.f32 %v1239, %v657
    %v1246 = vadd.f32 %v1244, %v1245
    %v1247 = vld [vmem:[%s10] sm:$0xff]
    %v1248 = vld [vmem:[%s10 + $0x8] sm:$0xff]
    %v1249 = vld [vmem:[%s10 + $0x10] sm:$0xff]
    %v1250 = vld [vmem:[%s10 + $0x18] sm:$0xff]
    %v1251 = vld [vmem:[%s10 + $0x20] sm:$0xff]
    %v1252 = vld [vmem:[%s10 + $0x28] sm:$0xff]
    %v1253 = vld [vmem:[%s10 + $0x30] sm:$0xff]
    %v1254 = vld [vmem:[%s10 + $0x38] sm:$0xff]
    %v1255 = vld [vmem:[%s10 + $0x40] sm:$0xff]
    %v1256 = vld [vmem:[%s10 + $0x48] sm:$0xff]
    %v1257 = vld [vmem:[%s10 + $0x50] sm:$0xff]
    %v1258 = vld [vmem:[%s10 + $0x58] sm:$0xff]
    %v1259 = vld [vmem:[%s10 + $0x60] sm:$0xff]
    %v1260 = vld [vmem:[%s10 + $0x68] sm:$0xff]
    %v1261 = vld [vmem:[%s10 + $0x70] sm:$0xff]
    %v1262 = vld [vmem:[%s10 + $0x78] sm:$0xff]
    %v1263 = vpack.c.bf16 %v1246, %v1246
    %v1264 = vpack.c.bf16 %v1248, %v1247
    %v1265 = vpack.c.bf16 %v1250, %v1249
    %v1266 = vpack.c.bf16 %v1252, %v1251
    %v1267 = vpack.c.bf16 %v1254, %v1253
    %v1268 = vpack.c.bf16 %v1256, %v1255
    %v1269 = vpack.c.bf16 %v1258, %v1257
    %v1270 = vpack.c.bf16 %v1260, %v1259
    %v1271 = vpack.c.bf16 %v1262, %v1261
    %v1272 = vld [vmem:[%s11] sm:$0x1]
    %1273 = vmatprep.subr.bf16.mxu0 0
    %1274 = vmatpush1.bf16.msra.mxu0 %v1271
    %1275 = vmatprep.subr.bf16.mxu0 0
    %1276 = vmatpush1.bf16.msra.mxu0 %v1270
    %1277 = vmatprep.subr.bf16.mxu0 0
    %1278 = vmatpush1.bf16.msra.mxu0 %v1269
    %1279 = vmatprep.subr.bf16.mxu0 0
    %1280 = vmatpush1.bf16.msra.mxu0 %v1268
    %1281 = vmatprep.subr.bf16.mxu0 0
    %1282 = vmatpush1.bf16.msra.mxu0 %v1267
    %1283 = vmatprep.subr.bf16.mxu0 0
    %1284 = vmatpush1.bf16.msra.mxu0 %v1266
    %1285 = vmatprep.subr.bf16.mxu0 0
    %1286 = vmatpush1.bf16.msra.mxu0 %v1265
    %1287 = vmatprep.subr.bf16.mxu0 0
    %1288 = vmatpush1.bf16.msra.mxu0 %v1264
    %1289 = vmatprep.subr.bf16.mxu0 0
    %1290 = vmatpush2.bf16.msra.mxu0 0
    %1291 = vmatprep.subr.bf16.mxu0 0
    %1292 = vmatpush2.bf16.msra.mxu0 0
    %1293 = vmatprep.subr.bf16.mxu0 0
    %1294 = vmatpush2.bf16.msra.mxu0 0
    %1295 = vmatprep.subr.bf16.mxu0 0
    %1296 = vmatpush2.bf16.msra.mxu0 0
    %1297 = vmatprep.subr.bf16.mxu0 0
    %1298 = vmatpush2.bf16.msra.mxu0 0
    %1299 = vmatprep.subr.bf16.mxu0 0
    %1300 = vmatpush2.bf16.msra.mxu0 0
    %1301 = vmatprep.subr.bf16.mxu0 0
    %1302 = vmatpush2.bf16.msra.mxu0 0
    %1303 = vmatprep.subr.bf16.mxu0 0
    %1304 = vmatpush2.bf16.msra.mxu0 0
    %1305 = vmatprep.mubr.bf16.mxu0 0
    %1306 = vmatmul.mubr.bf16.gmra.mxu0 %v1263
    %v1307 = vpop.f32.mrf.mxu0
    %v1308 = vadd.f32 %v1272, %v1307
    %v1309 = vpop.f32.mrf.mxu0
    %v1310 = vpop.f32.mrf.mxu0
    %v1311 = vpop.f32.mrf.mxu0
    %1312 = vdwg.mxu0
    %v1313 = vmax.f32 %v1308, 0.0
    %v1314 = vld [vmem:[%s12] sm:$0xff]
    %v1315 = vld [vmem:[%s12 + $0x8] sm:$0xff]
    %v1316 = vld [vmem:[%s12 + $0x10] sm:$0xff]
    %v1317 = vld [vmem:[%s12 + $0x18] sm:$0xff]
    %v1318 = vld [vmem:[%s12 + $0x20] sm:$0xff]
    %v1319 = vld [vmem:[%s12 + $0x28] sm:$0xff]
    %v1320 = vld [vmem:[%s12 + $0x30] sm:$0xff]
    %v1321 = vld [vmem:[%s12 + $0x38] sm:$0xff]
    %v1322 = vld [vmem:[%s12 + $0x40] sm:$0xff]
    %v1323 = vld [vmem:[%s12 + $0x48] sm:$0xff]
    %v1324 = vld [vmem:[%s12 + $0x50] sm:$0xff]
    %v1325 = vld [vmem:[%s12 + $0x58] sm:$0xff]
    %v1326 = vld [vmem:[%s12 + $0x60] sm:$0xff]
    %v1327 = vld [vmem:[%s12 + $0x68] sm:$0xff]
    %v1328 = vld [vmem:[%s12 + $0x70] sm:$0xff]
    %v1329 = vld [vmem:[%s12 + $0x78] sm:$0xff]
    %v1330 = vld [vmem:[#allocation2] sm:$0x1]
    %1331 = vmatprep.subr.mxu0 0.0
    %1332 = vmatpush1.msra.mxu0 %v1329
    %1333 = vmatprep.subr.mxu0 0.0
    %1334 = vmatpush1.msra.mxu0 %v1328
    %1335 = vmatprep.subr.mxu0 0.0
    %1336 = vmatpush1.msra.mxu0 %v1327
    %1337 = vmatprep.subr.mxu0 0.0
    %1338 = vmatpush1.msra.mxu0 %v1326
    %1339 = vmatprep.subr.mxu0 0.0
    %1340 = vmatpush1.msra.mxu0 %v1325
    %1341 = vmatprep.subr.mxu0 0.0
    %1342 = vmatpush1.msra.mxu0 %v1324
    %1343 = vmatprep.subr.mxu0 0.0
    %1344 = vmatpush1.msra.mxu0 %v1323
    %1345 = vmatprep.subr.mxu0 0.0
    %1346 = vmatpush1.msra.mxu0 %v1322
    %1347 = vmatprep.subr.mxu0 0.0
    %1348 = vmatpush1.msra.mxu0 %v1321
    %1349 = vmatprep.subr.mxu0 0.0
    %1350 = vmatpush1.msra.mxu0 %v1320
    %1351 = vmatprep.subr.mxu0 0.0
    %1352 = vmatpush1.msra.mxu0 %v1319
    %1353 = vmatprep.subr.mxu0 0.0
    %1354 = vmatpush1.msra.mxu0 %v1318
    %1355 = vmatprep.subr.mxu0 0.0
    %1356 = vmatpush1.msra.mxu0 %v1317
    %1357 = vmatprep.subr.mxu0 0.0
    %1358 = vmatpush1.msra.mxu0 %v1316
    %1359 = vmatprep.subr.mxu0 0.0
    %1360 = vmatpush1.msra.mxu0 %v1315
    %1361 = vmatprep.subr.mxu0 0.0
    %1362 = vmatpush1.msra.mxu0 %v1314
    %1363 = vmatprep.subr.mxu0 0.0
    %1364 = vmatpush2.msra.mxu0 0.0
    %1365 = vmatprep.subr.mxu0 0.0
    %1366 = vmatpush2.msra.mxu0 0.0
    %1367 = vmatprep.subr.mxu0 0.0
    %1368 = vmatpush2.msra.mxu0 0.0
    %1369 = vmatprep.subr.mxu0 0.0
    %1370 = vmatpush2.msra.mxu0 0.0
    %1371 = vmatprep.subr.mxu0 0.0
    %1372 = vmatpush2.msra.mxu0 0.0
    %1373 = vmatprep.subr.mxu0 0.0
    %1374 = vmatpush2.msra.mxu0 0.0
    %1375 = vmatprep.subr.mxu0 0.0
    %1376 = vmatpush2.msra.mxu0 0.0
    %1377 = vmatprep.subr.mxu0 0.0
    %1378 = vmatpush2.msra.mxu0 0.0
    %1379 = vmatprep.subr.mxu0 0.0
    %1380 = vmatpush2.msra.mxu0 0.0
    %1381 = vmatprep.subr.mxu0 0.0
    %1382 = vmatpush2.msra.mxu0 0.0
    %1383 = vmatprep.subr.mxu0 0.0
    %1384 = vmatpush2.msra.mxu0 0.0
    %1385 = vmatprep.subr.mxu0 0.0
    %1386 = vmatpush2.msra.mxu0 0.0
    %1387 = vmatprep.subr.mxu0 0.0
    %1388 = vmatpush2.msra.mxu0 0.0
    %1389 = vmatprep.subr.mxu0 0.0
    %1390 = vmatpush2.msra.mxu0 0.0
    %1391 = vmatprep.subr.mxu0 0.0
    %1392 = vmatpush2.msra.mxu0 0.0
    %1393 = vmatprep.subr.mxu0 0.0
    %1394 = vmatpush2.msra.mxu0 0.0
    %1395 = vmatprep.mubr.f32.mxu0 0.0
    %1396 = vmatmul.mubr.f32.gmra.mxu0 %v1313
    %v1397 = vpop.f32.mrf.mxu0
    %v1398 = vadd.f32 %v1330, %v1397
    %v1399 = vpop.f32.mrf.mxu0
    %1400 = vdwg.mxu0
    %vm1401 = vcmask 0
    %1402 = vst.msk [vmem:[#allocation6] sm:$0x1] %vm1401, %v1398
    // Predicated region
    $region62: #{attentive_fp_dense_forward.5} parent=1 // pred_check
      _
    $region63: #{attentive_fp_dense_forward.5} parent=1 // pred_check_branch
      %1404 = sbr.rel (0) target = $region65
    $region64: #{attentive_fp_dense_forward.5} parent=1 // pred_region
      %s1406 = ssub.s32 16, 16
      %1407 = vsyncadd [#allocation4], %s1406
      %s1409 = sshll.u32 [#allocation6], 4
      %s1410 = int_to_ptr.vmem [resolvable:$true] %s1409
      %1412 = dma.vmem_to_hbm [thread:$0]  %s1410, 16, %s14, [#allocation4]
    $region65: #{attentive_fp_dense_forward.5} parent=1 // pred_fallthru
      _
    // Predicated region
    $region66: #{attentive_fp_dense_forward.5} parent=1 // pred_check
      _
    $region67: #{attentive_fp_dense_forward.5} parent=1 // pred_check_branch
      %1414 = sbr.rel (0) target = $region69
    $region68: #{attentive_fp_dense_forward.5} parent=1 // pred_region
      %1415 = dma.done [#allocation4], 16
    $region69: #{attentive_fp_dense_forward.5} parent=1 // pred_fallthru
      _
    %1416 = vsyncpa [#allocation4], 1
    %1417 = vsyncpa [#allocation5], 1

</llo_original>
